<compile_context>
chip_gen: v7x
topology: tpu7x:2x2x1
jax: 0.10.0
libtpu: 0.0.40
codegen_flags: <defaults>
</compile_context>

<pallas_src>
import functools

import jax
import jax.numpy as jnp
from jax.experimental import pallas as pl
from jax.experimental.pallas import tpu as pltpu

# ----------------------------- model config (small) -------------------------
SA_NPOINTS = [32, 16]
SA_RADIUS = [[0.5, 1.0], [1.0, 2.0]]
SA_NSAMPLE = [[8, 16], [8, 16]]
SA_MLPS = [[[16, 16], [16, 32]], [[32, 32], [32, 64]]]
FP_MLPS = [[32, 32], [64, 64]]
USE_XYZ = True

LANE = 128                 # lane-dense channel padding
MAX_TILE_CENTERS = 256     # SA fused kernel: centers per block (rows = centers*nsample)
MAX_TILE_ROWS = 1024       # FP fused kernel: rows per block


# ----------------------------- helpers ---------------------------------------
def _round_up(x, m):
    return ((x + m - 1) // m) * m


def _choose_tile(rows, max_tile):
    """Row tile: multiple of 8, and >=2 grid steps whenever possible (v7x 2 TCs)."""
    if rows <= 8:
        return 8
    half = _round_up((rows + 1) // 2, 8)
    return min(max_tile, half)


def _pad_cols(x, c_pad):
    c = x.shape[-1]
    if c == c_pad:
        return x
    return jnp.pad(x, ((0, 0), (0, c_pad - c)))


def _fold_and_pad_mlp(layer_params, cin):
    """Fold BN scale into weights, zero-pad channels to lane multiples, cast w->bf16."""
    cin_p = _round_up(max(cin, LANE), LANE)
    ws, bs = [], []
    c_prev_real, c_prev_pad = cin, cin_p
    for (w, scale, shift) in layer_params:
        co = w.shape[1]
        co_p = _round_up(max(co, LANE), LANE)
        w_fold = w * scale[None, :]                       # BN scale folded into weight
        wp = jnp.zeros((c_prev_pad, co_p), jnp.float32)
        wp = wp.at[:c_prev_real, :co].set(w_fold).astype(jnp.bfloat16)
        bp = jnp.zeros((1, co_p), jnp.float32).at[0, :co].set(shift)
        ws.append(wp)
        bs.append(bp)
        c_prev_real, c_prev_pad = co, co_p
    return cin_p, c_prev_real, c_prev_pad, ws, bs


# ----------------------------- Pallas kernels -------------------------------
def _fused_mlp_kernel(num_layers, x_ref, *refs):
    # refs = [w0, b0, w1, b1, ..., o_ref]; relu((x @ w)*1 + b) chained on-chip.
    o_ref = refs[-1]
    h = x_ref[...]                                        # bf16 (rows, cin_p)
    for l in range(num_layers):
        w = refs[2 * l][...]                              # bf16 (cin_p, cout_p)
        b = refs[2 * l + 1][...]                          # f32  (1, cout_p)
        y = jnp.dot(h, w, preferred_element_type=jnp.float32) + b
        y = jnp.maximum(y, 0.0)
        h = y.astype(jnp.bfloat16) if l + 1 < num_layers else y
    o_ref[...] = h.astype(o_ref.dtype)


def _fused_mlp_max_kernel(nsample, num_layers, x_ref, *refs):
    # Same MLP chain, then max-pool over the nsample axis (fused, XLU reduction).
    o_ref = refs[-1]
    h = x_ref[...]                                        # bf16 (tm*nsample, cin_p)
    for l in range(num_layers):
        w = refs[2 * l][...]
        b = refs[2 * l + 1][...]
        y = jnp.dot(h, w, preferred_element_type=jnp.float32) + b
        y = jnp.maximum(y, 0.0)
        h = y.astype(jnp.bfloat16) if l + 1 < num_layers else y
    tm, cp = o_ref.shape
    o_ref[...] = jnp.max(h.reshape(tm, nsample, cp), axis=1).astype(o_ref.dtype)


# ----------------------------- Pallas wrappers -------------------------------
def fused_pointwise_mlp(x, layer_params):
    """x: (R, Cin) f32 -> (R, Cout) f32. Whole shared-MLP chain in one pallas_call."""
    R, cin = x.shape
    cin_p, cout_real, cout_p, ws, bs = _fold_and_pad_mlp(layer_params, cin)
    xp = _pad_cols(x, cin_p).astype(jnp.bfloat16)
    tr = _choose_tile(R, MAX_TILE_ROWS)
    rp = _round_up(R, tr)
    if rp != R:
        xp = jnp.pad(xp, ((0, rp - R), (0, 0)))
    in_specs = [pl.BlockSpec((tr, cin_p), lambda i: (i, 0))]
    args = [xp]
    for w, b in zip(ws, bs):
        # constant block index -> weights loaded once, not re-fetched per grid step
        in_specs.append(pl.BlockSpec(w.shape, lambda i: (0, 0)))
        in_specs.append(pl.BlockSpec(b.shape, lambda i: (0, 0)))
        args.extend([w, b])
    out = pl.pallas_call(
        functools.partial(_fused_mlp_kernel, len(layer_params)),
        out_shape=jax.ShapeDtypeStruct((rp, cout_p), jnp.float32),
        grid=(rp // tr,),
        in_specs=in_specs,
        out_specs=pl.BlockSpec((tr, cout_p), lambda i: (i, 0)),
        compiler_params=pltpu.CompilerParams(dimension_semantics=("parallel",)),
    )(*args)
    return out[:R, :cout_real]


def fused_group_mlp_max(grouped, layer_params):
    """grouped: (M, nsample, Cin) f32 -> (M, Cout) f32.
    Shared MLP chain + neighbourhood max fused into one pallas_call.
    Padded rows are whole (dummy) centers, so they never corrupt real maxima."""
    M, S, cin = grouped.shape
    cin_p, cout_real, cout_p, ws, bs = _fold_and_pad_mlp(layer_params, cin)
    xp = _pad_cols(grouped.reshape(M * S, cin), cin_p).astype(jnp.bfloat16)
    tm = _choose_tile(M, MAX_TILE_CENTERS)
    mp = _round_up(M, tm)
    if mp != M:
        xp = jnp.pad(xp, ((0, (mp - M) * S), (0, 0)))
    in_specs = [pl.BlockSpec((tm * S, cin_p), lambda i: (i, 0))]
    args = [xp]
    for w, b in zip(ws, bs):
        in_specs.append(pl.BlockSpec(w.shape, lambda i: (0, 0)))
        in_specs.append(pl.BlockSpec(b.shape, lambda i: (0, 0)))
        args.extend([w, b])
    out = pl.pallas_call(
        functools.partial(_fused_mlp_max_kernel, S, len(layer_params)),
        out_shape=jax.ShapeDtypeStruct((mp, cout_p), jnp.float32),
        grid=(mp // tm,),
        in_specs=in_specs,
        out_specs=pl.BlockSpec((tm, cout_p), lambda i: (i, 0)),
        compiler_params=pltpu.CompilerParams(dimension_semantics=("parallel",)),
    )(*args)
    return out[:M, :cout_real]


# ----------------------------- JAX glue ops ---------------------------------
# TODO(synk): at realistic N (16k+ points) FPS, ball-query and the gathers should
# move into Pallas with scalar-prefetch / manual-DMA gathers; kept in XLA here.
def farthest_point_sample(xyz, npoint):
    """xyz: (n, 3) -> (npoint,) int32 indices (starts at index 0, like the CUDA op)."""
    n = xyz.shape[0]

    def body(i, carry):
        idxs, dists = carry
        last = idxs[i - 1]
        d = jnp.sum((xyz - xyz[last]) ** 2, axis=-1)
        dists = jnp.minimum(dists, d)
        idxs = idxs.at[i].set(jnp.argmax(dists).astype(jnp.int32))
        return idxs, dists

    idxs = jnp.zeros((npoint,), jnp.int32)
    dists = jnp.full((n,), 1e10, jnp.float32)
    idxs, _ = jax.lax.fori_loop(1, npoint, body, (idxs, dists))
    return idxs


def ball_query_group(new_xyz, xyz, feats, radius, nsample):
    """Ball query + grouping (per batch): first nsample in-ball indices, empty
    slots filled with the first neighbour; empty-ball centers zeroed (matches
    stack QueryAndGroup).  new_xyz: (m,3), xyz: (n,3), feats: (n,C)|None."""
    n = xyz.shape[0]
    d2 = jnp.sum((new_xyz[:, None, :] - xyz[None, :, :]) ** 2, axis=-1)  # (m, n)
    in_ball = d2 < radius * radius
    # top_k instead of a full argsort: pick the nsample smallest in-ball indices
    key = jnp.where(in_ball, -jnp.arange(n, dtype=jnp.int32)[None, :], -n)
    _, sorted_idx = jax.lax.top_k(key, nsample)                          # (m, nsample)
    sorted_idx = sorted_idx.astype(jnp.int32)
    cnt = jnp.sum(in_ball, axis=1)
    first = sorted_idx[:, :1]
    pos = jnp.arange(nsample, dtype=jnp.int32)[None, :]
    idx = jnp.where(pos < jnp.maximum(cnt, 1)[:, None], sorted_idx, first)
    empty = (cnt == 0)

    grouped_xyz = xyz[idx] - new_xyz[:, None, :]                         # (m, nsample, 3)
    grouped_xyz = jnp.where(empty[:, None, None], 0.0, grouped_xyz)
    if feats is not None:
        grouped_feats = feats[idx]                                       # (m, nsample, C)
        grouped_feats = jnp.where(empty[:, None, None], 0.0, grouped_feats)
        if USE_XYZ:
            return jnp.concatenate([grouped_xyz, grouped_feats], axis=-1)
        return grouped_feats
    return grouped_xyz


def sa_module_msg(xyz_b, feats_b, new_xyz_b, radii, nsamples, scale_params):
    """StackSAModuleMSG: multi-scale group -> fused MLP+max Pallas kernel per scale."""
    B, m = new_xyz_b.shape[0], new_xyz_b.shape[1]
    outs = []
    for radius, nsample, layer_params in zip(radii, nsamples, scale_params):
        group_fn = functools.partial(ball_query_group, radius=radius, nsample=nsample)
        if feats_b is None:
            grouped = jax.vmap(lambda nx, x: group_fn(nx, x, None))(new_xyz_b, xyz_b)
        else:
            grouped = jax.vmap(group_fn)(new_xyz_b, xyz_b, feats_b)       # (B, m, ns, cin)
        cin = grouped.shape[-1]
        pooled = fused_group_mlp_max(grouped.reshape(B * m, nsample, cin), layer_params)
        outs.append(pooled)                                               # (B*m, cout)
    return jnp.concatenate(outs, axis=-1)                                 # (B*m, sum cout)


def fp_module(unknown_b, known_b, unknown_feats_b, known_feats_b, mlp_params):
    """StackPointnetFPModule: three-NN interpolation + fused MLP Pallas kernel."""
    B, n = unknown_b.shape[0], unknown_b.shape[1]

    def per_batch(u, k, kf):
        d2 = jnp.sum((u[:, None, :] - k[None, :, :]) ** 2, axis=-1)       # (n, m)
        neg_d2, idx = jax.lax.top_k(-d2, 3)
        dist = jnp.sqrt(jnp.maximum(-neg_d2, 0.0))   # stack three_nn returns sqrt(dist2)
        recip = 1.0 / (dist + 1e-8)
        weight = recip / jnp.sum(recip, axis=-1, keepdims=True)
        return jnp.sum(kf[idx] * weight[..., None], axis=1)               # (n, C_known)

    interp = jax.vmap(per_batch)(unknown_b, known_b, known_feats_b)       # (B, n, C_known)
    if unknown_feats_b is not None:
        h = jnp.concatenate([interp, unknown_feats_b], axis=-1)
    else:
        h = interp
    out = fused_pointwise_mlp(h.reshape(B * n, h.shape[-1]), mlp_params)
    return out.reshape(B, n, -1)


# ----------------------------- parameter init -------------------------------
def init_mlp_params(key, channels):
    params = []
    for cin, cout in zip(channels[:-1], channels[1:]):
        key, k1 = jax.random.split(key)
        w = jax.random.normal(k1, (cin, cout), jnp.float32) * (1.0 / jnp.sqrt(cin))
        scale = jnp.ones((cout,), jnp.float32)    # BN gamma / sqrt(var) folded
        shift = jnp.zeros((cout,), jnp.float32)   # BN beta - mean*scale folded
        params.append((w, scale, shift))
    return key, params


def build_params(key, input_channels):
    params = {"sa": [], "fp": []}
    channel_in = input_channels - 3
    skip_channel_list = [input_channels]
    channel_out = 0
    for k in range(len(SA_NPOINTS)):
        channel_out = 0
        scale_params = []
        for m in SA_MLPS[k]:
            channels = [channel_in + (3 if USE_XYZ else 0)] + list(m)
            key, p = init_mlp_params(key, channels)
            scale_params.append(p)
            channel_out += m[-1]
        params["sa"].append(scale_params)
        skip_channel_list.append(channel_out)
        channel_in = channel_out
    for k in range(len(FP_MLPS)):
        pre_channel = FP_MLPS[k + 1][-1] if k + 1 < len(FP_MLPS) else channel_out
        channels = [pre_channel + skip_channel_list[k]] + list(FP_MLPS[k])
        key, p = init_mlp_params(key, channels)
        params["fp"].append(p)
    return params


# ----------------------------- full forward ---------------------------------
def pointnet2_backbone_forward(points, params, *, batch_size):
    # points: (N, 4 + C) = [batch_idx, x, y, z, feats...]; equal points per batch,
    # sorted by batch_idx.
    # TODO(synk): variable-length stacked batches (xyz_batch_cnt) are assumed
    # equal-sized here; true ragged batching needs scalar-prefetch index maps.
    N = points.shape[0]
    n_per_batch = N // batch_size
    batch_idx = points[:, 0]
    xyz = points[:, 1:4]
    feats = points[:, 4:] if points.shape[-1] > 4 else None

    xyz_b = xyz.reshape(batch_size, n_per_batch, 3)
    feats_b = feats.reshape(batch_size, n_per_batch, -1) if feats is not None else None

    l_xyz, l_feats = [xyz_b], [feats_b]
    for i in range(len(SA_NPOINTS)):
        npoint = SA_NPOINTS[i]
        fps_idx = jax.vmap(lambda x: farthest_point_sample(x, npoint))(l_xyz[i])
        new_xyz_b = jax.vmap(lambda x, idx: x[idx])(l_xyz[i], fps_idx)     # (B, npoint, 3)
        new_feats = sa_module_msg(l_xyz[i], l_feats[i], new_xyz_b,
                                  SA_RADIUS[i], SA_NSAMPLE[i], params["sa"][i])
        l_xyz.append(new_xyz_b)
        l_feats.append(new_feats.reshape(batch_size, npoint, -1))

    # feature propagation (FP) — same negative-index order as the PyTorch module
    l_feats[0] = points[:, 1:].reshape(batch_size, n_per_batch, -1)
    for i in range(-1, -(len(FP_MLPS) + 1), -1):
        l_feats[i - 1] = fp_module(l_xyz[i - 1], l_xyz[i],
                                   l_feats[i - 1], l_feats[i], params["fp"][i])

    point_features = l_feats[0].reshape(N, -1)                            # (N, FP_MLPS[0][-1])
    point_coords = jnp.concatenate([batch_idx[:, None], xyz], axis=1)     # (N, 4)
    return point_features, point_coords


# ----------------------------- main -----------------------------------------
if __name__ == "__main__":
    key = jax.random.PRNGKey(0)
    batch_size = 2
    n_per_batch = 64
    input_channels = 4  # xyz + 1 extra feature

    k_xyz, k_feat, k_param = jax.random.split(key, 3)
    xyz = jax.random.uniform(k_xyz, (batch_size * n_per_batch, 3),
                             minval=-2.0, maxval=2.0, dtype=jnp.float32)
    extra = jax.random.normal(k_feat, (batch_size * n_per_batch, input_channels - 3),
                              dtype=jnp.float32)
    bidx = jnp.repeat(jnp.arange(batch_size, dtype=jnp.float32), n_per_batch)[:, None]
    points = jnp.concatenate([bidx, xyz, extra], axis=1)   # (128, 5)

    params = build_params(k_param, input_channels)

    fwd = jax.jit(functools.partial(pointnet2_backbone_forward, batch_size=batch_size))
    point_features, point_coords = fwd(points, params)
    jax.block_until_ready((point_features, point_coords))

    assert point_features.shape == (batch_size * n_per_batch, FP_MLPS[0][-1])
    assert point_coords.shape == (batch_size * n_per_batch, 4)
    assert jnp.all(jnp.isfinite(point_features))
    print("KERNEL_OK")
</pallas_src>

<mosaic_0001>
module attributes {stable_mosaic.version = 11 : i64} {
  func.func @_fused_mlp_max_kernel(%arg0: i32, %arg1: memref<256x128xbf16, #tpu.memory_space<vmem>>, %arg2: memref<128x128xbf16, #tpu.memory_space<vmem>>, %arg3: memref<1x128xf32, #tpu.memory_space<vmem>>, %arg4: memref<128x128xbf16, #tpu.memory_space<vmem>>, %arg5: memref<1x128xf32, #tpu.memory_space<vmem>>, %arg6: memref<32x128xf32, #tpu.memory_space<vmem>>) attributes {dimension_semantics = [#tpu.dimension_semantics<parallel>], iteration_bounds = array<i64: 2>, scalar_prefetch = 0 : i64, scratch_operands = 0 : i64, tpu.core_type = #tpu.core_type<tc>, window_params = [{transform_indices = @transform_0, window_bounds = array<i64: 256, 128>}, {pipeline_mode = #tpu.pipeline_mode<synchronous>, transform_indices = @transform_1, window_bounds = array<i64: 128, 128>}, {pipeline_mode = #tpu.pipeline_mode<synchronous>, transform_indices = @transform_2, window_bounds = array<i64: 1, 128>}, {pipeline_mode = #tpu.pipeline_mode<synchronous>, transform_indices = @transform_3, window_bounds = array<i64: 128, 128>}, {pipeline_mode = #tpu.pipeline_mode<synchronous>, transform_indices = @transform_4, window_bounds = array<i64: 1, 128>}, {transform_indices = @transform_5, window_bounds = array<i64: 32, 128>}]} {
    %c0 = arith.constant 0 : index
    %c0_0 = arith.constant 0 : index
    %0 = vector.load %arg1[%c0, %c0_0] : memref<256x128xbf16, #tpu.memory_space<vmem>>, vector<256x128xbf16>
    %c0_1 = arith.constant 0 : index
    %c0_2 = arith.constant 0 : index
    %1 = vector.load %arg2[%c0_1, %c0_2] : memref<128x128xbf16, #tpu.memory_space<vmem>>, vector<128x128xbf16>
    %c0_3 = arith.constant 0 : index
    %c0_4 = arith.constant 0 : index
    %2 = vector.load %arg3[%c0_3, %c0_4] : memref<1x128xf32, #tpu.memory_space<vmem>>, vector<1x128xf32>
    %cst = arith.constant dense<0.000000e+00> : vector<256x128xf32>
    %3 = tpu.matmul %0, %1, %cst {dimension_numbers = #tpu.dot_dimension_numbers<[1], [0], [0], [1], [0, 0, 1, 1], [], []>} : vector<256x128xbf16>, vector<128x128xbf16>, vector<256x128xf32> -> vector<256x128xf32>
    %4 = vector.broadcast %2 : vector<1x128xf32> to vector<256x128xf32>
    %5 = arith.addf %3, %4 : vector<256x128xf32>
    %cst_5 = arith.constant 0.000000e+00 : f32
    %6 = vector.broadcast %cst_5 : f32 to vector<256x128xf32>
    %7 = arith.maximumf %5, %6 : vector<256x128xf32>
    %8 = arith.truncf %7 : vector<256x128xf32> to vector<256x128xbf16>
    %c0_6 = arith.constant 0 : index
    %c0_7 = arith.constant 0 : index
    %9 = vector.load %arg4[%c0_6, %c0_7] : memref<128x128xbf16, #tpu.memory_space<vmem>>, vector<128x128xbf16>
    %c0_8 = arith.constant 0 : index
    %c0_9 = arith.constant 0 : index
    %10 = vector.load %arg5[%c0_8, %c0_9] : memref<1x128xf32, #tpu.memory_space<vmem>>, vector<1x128xf32>
    %cst_10 = arith.constant dense<0.000000e+00> : vector<256x128xf32>
    %11 = tpu.matmul %8, %9, %cst_10 {dimension_numbers = #tpu.dot_dimension_numbers<[1], [0], [0], [1], [0, 0, 1, 1], [], []>} : vector<256x128xbf16>, vector<128x128xbf16>, vector<256x128xf32> -> vector<256x128xf32>
    %12 = vector.broadcast %10 : vector<1x128xf32> to vector<256x128xf32>
    %13 = arith.addf %11, %12 : vector<256x128xf32>
    %cst_11 = arith.constant 0.000000e+00 : f32
    %14 = vector.broadcast %cst_11 : f32 to vector<256x128xf32>
    %15 = arith.maximumf %13, %14 : vector<256x128xf32>
    %16 = vector.shape_cast %15 : vector<256x128xf32> to vector<32x8x128xf32>
    %cst_12 = arith.constant dense<0xFF800000> : vector<32x128xf32>
    %17 = vector.multi_reduction <maximumf>, %16, %cst_12 [1] : vector<32x8x128xf32> to vector<32x128xf32>
    %c0_13 = arith.constant 0 : index
    %c0_14 = arith.constant 0 : index
    %18 = vector.load %arg6[%c0_13, %c0_14] : memref<32x128xf32, #tpu.memory_space<vmem>>, vector<32x128xf32>
    tpu.vector_store %arg6[%c0_13, %c0_14], %17 {strides = array<i32>} : memref<32x128xf32, #tpu.memory_space<vmem>>, vector<32x128xf32>,
    return
  }
  func.func @transform_0(%arg0: i32) -> (i32, i32) {
    %c0_i32 = arith.constant 0 : i32
    %c0_i32_0 = arith.constant 0 : i32
    return %arg0, %c0_i32 : i32, i32
  }
  func.func @transform_1(%arg0: i32) -> (i32, i32) {
    %c0_i32 = arith.constant 0 : i32
    %c0_i32_0 = arith.constant 0 : i32
    %c0_i32_1 = arith.constant 0 : i32
    return %c0_i32, %c0_i32_0 : i32, i32
  }
  func.func @transform_2(%arg0: i32) -> (i32, i32) {
    %c0_i32 = arith.constant 0 : i32
    %c0_i32_0 = arith.constant 0 : i32
    %c0_i32_1 = arith.constant 0 : i32
    return %c0_i32, %c0_i32_0 : i32, i32
  }
  func.func @transform_3(%arg0: i32) -> (i32, i32) {
    %c0_i32 = arith.constant 0 : i32
    %c0_i32_0 = arith.constant 0 : i32
    %c0_i32_1 = arith.constant 0 : i32
    return %c0_i32, %c0_i32_0 : i32, i32
  }
  func.func @transform_4(%arg0: i32) -> (i32, i32) {
    %c0_i32 = arith.constant 0 : i32
    %c0_i32_0 = arith.constant 0 : i32
    %c0_i32_1 = arith.constant 0 : i32
    return %c0_i32, %c0_i32_0 : i32, i32
  }
  func.func @transform_5(%arg0: i32) -> (i32, i32) {
    %c0_i32 = arith.constant 0 : i32
    %c0_i32_0 = arith.constant 0 : i32
    return %arg0, %c0_i32 : i32, i32
  }
}

module attributes {stable_mosaic.version = 11 : i64} {
  func.func @_fused_mlp_max_kernel(%arg0: i32, %arg1: memref<512x128xbf16, #tpu.memory_space<vmem>>, %arg2: memref<128x128xbf16, #tpu.memory_space<vmem>>, %arg3: memref<1x128xf32, #tpu.memory_space<vmem>>, %arg4: memref<128x128xbf16, #tpu.memory_space<vmem>>, %arg5: memref<1x128xf32, #tpu.memory_space<vmem>>, %arg6: memref<32x128xf32, #tpu.memory_space<vmem>>) attributes {dimension_semantics = [#tpu.dimension_semantics<parallel>], iteration_bounds = array<i64: 2>, scalar_prefetch = 0 : i64, scratch_operands = 0 : i64, tpu.core_type = #tpu.core_type<tc>, window_params = [{transform_indices = @transform_0, window_bounds = array<i64: 512, 128>}, {pipeline_mode = #tpu.pipeline_mode<synchronous>, transform_indices = @transform_1, window_bounds = array<i64: 128, 128>}, {pipeline_mode = #tpu.pipeline_mode<synchronous>, transform_indices = @transform_2, window_bounds = array<i64: 1, 128>}, {pipeline_mode = #tpu.pipeline_mode<synchronous>, transform_indices = @transform_3, window_bounds = array<i64: 128, 128>}, {pipeline_mode = #tpu.pipeline_mode<synchronous>, transform_indices = @transform_4, window_bounds = array<i64: 1, 128>}, {transform_indices = @transform_5, window_bounds = array<i64: 32, 128>}]} {
    %c0 = arith.constant 0 : index
    %c0_0 = arith.constant 0 : index
    %0 = vector.load %arg1[%c0, %c0_0] : memref<512x128xbf16, #tpu.memory_space<vmem>>, vector<512x128xbf16>
    %c0_1 = arith.constant 0 : index
    %c0_2 = arith.constant 0 : index
    %1 = vector.load %arg2[%c0_1, %c0_2] : memref<128x128xbf16, #tpu.memory_space<vmem>>, vector<128x128xbf16>
    %c0_3 = arith.constant 0 : index
    %c0_4 = arith.constant 0 : index
    %2 = vector.load %arg3[%c0_3, %c0_4] : memref<1x128xf32, #tpu.memory_space<vmem>>, vector<1x128xf32>
    %cst = arith.constant dense<0.000000e+00> : vector<512x128xf32>
    %3 = tpu.matmul %0, %1, %cst {dimension_numbers = #tpu.dot_dimension_numbers<[1], [0], [0], [1], [0, 0, 1, 1], [], []>} : vector<512x128xbf16>, vector<128x128xbf16>, vector<512x128xf32> -> vector<512x128xf32>
    %4 = vector.broadcast %2 : vector<1x128xf32> to vector<512x128xf32>
    %5 = arith.addf %3, %4 : vector<512x128xf32>
    %cst_5 = arith.constant 0.000000e+00 : f32
    %6 = vector.broadcast %cst_5 : f32 to vector<512x128xf32>
    %7 = arith.maximumf %5, %6 : vector<512x128xf32>
    %8 = arith.truncf %7 : vector<512x128xf32> to vector<512x128xbf16>
    %c0_6 = arith.constant 0 : index
    %c0_7 = arith.constant 0 : index
    %9 = vector.load %arg4[%c0_6, %c0_7] : memref<128x128xbf16, #tpu.memory_space<vmem>>, vector<128x128xbf16>
    %c0_8 = arith.constant 0 : index
    %c0_9 = arith.constant 0 : index
    %10 = vector.load %arg5[%c0_8, %c0_9] : memref<1x128xf32, #tpu.memory_space<vmem>>, vector<1x128xf32>
    %cst_10 = arith.constant dense<0.000000e+00> : vector<512x128xf32>
    %11 = tpu.matmul %8, %9, %cst_10 {dimension_numbers = #tpu.dot_dimension_numbers<[1], [0], [0], [1], [0, 0, 1, 1], [], []>} : vector<512x128xbf16>, vector<128x128xbf16>, vector<512x128xf32> -> vector<512x128xf32>
    %12 = vector.broadcast %10 : vector<1x128xf32> to vector<512x128xf32>
    %13 = arith.addf %11, %12 : vector<512x128xf32>
    %cst_11 = arith.constant 0.000000e+00 : f32
    %14 = vector.broadcast %cst_11 : f32 to vector<512x128xf32>
    %15 = arith.maximumf %13, %14 : vector<512x128xf32>
    %16 = vector.shape_cast %15 : vector<512x128xf32> to vector<32x16x128xf32>
    %cst_12 = arith.constant dense<0xFF800000> : vector<32x128xf32>
    %17 = vector.multi_reduction <maximumf>, %16, %cst_12 [1] : vector<32x16x128xf32> to vector<32x128xf32>
    %c0_13 = arith.constant 0 : index
    %c0_14 = arith.constant 0 : index
    %18 = vector.load %arg6[%c0_13, %c0_14] : memref<32x128xf32, #tpu.memory_space<vmem>>, vector<32x128xf32>
    tpu.vector_store %arg6[%c0_13, %c0_14], %17 {strides = array<i32>} : memref<32x128xf32, #tpu.memory_space<vmem>>, vector<32x128xf32>,
    return
  }
  func.func @transform_0(%arg0: i32) -> (i32, i32) {
    %c0_i32 = arith.constant 0 : i32
    %c0_i32_0 = arith.constant 0 : i32
    return %arg0, %c0_i32 : i32, i32
  }
  func.func @transform_1(%arg0: i32) -> (i32, i32) {
    %c0_i32 = arith.constant 0 : i32
    %c0_i32_0 = arith.constant 0 : i32
    %c0_i32_1 = arith.constant 0 : i32
    return %c0_i32, %c0_i32_0 : i32, i32
  }
  func.func @transform_2(%arg0: i32) -> (i32, i32) {
    %c0_i32 = arith.constant 0 : i32
    %c0_i32_0 = arith.constant 0 : i32
    %c0_i32_1 = arith.constant 0 : i32
    return %c0_i32, %c0_i32_0 : i32, i32
  }
  func.func @transform_3(%arg0: i32) -> (i32, i32) {
    %c0_i32 = arith.constant 0 : i32
    %c0_i32_0 = arith.constant 0 : i32
    %c0_i32_1 = arith.constant 0 : i32
    return %c0_i32, %c0_i32_0 : i32, i32
  }
  func.func @transform_4(%arg0: i32) -> (i32, i32) {
    %c0_i32 = arith.constant 0 : i32
    %c0_i32_0 = arith.constant 0 : i32
    %c0_i32_1 = arith.constant 0 : i32
    return %c0_i32, %c0_i32_0 : i32, i32
  }
  func.func @transform_5(%arg0: i32) -> (i32, i32) {
    %c0_i32 = arith.constant 0 : i32
    %c0_i32_0 = arith.constant 0 : i32
    return %arg0, %c0_i32 : i32, i32
  }
}

module attributes {stable_mosaic.version = 11 : i64} {
  func.func @_fused_mlp_max_kernel(%arg0: i32, %arg1: memref<128x128xbf16, #tpu.memory_space<vmem>>, %arg2: memref<128x128xbf16, #tpu.memory_space<vmem>>, %arg3: memref<1x128xf32, #tpu.memory_space<vmem>>, %arg4: memref<128x128xbf16, #tpu.memory_space<vmem>>, %arg5: memref<1x128xf32, #tpu.memory_space<vmem>>, %arg6: memref<16x128xf32, #tpu.memory_space<vmem>>) attributes {dimension_semantics = [#tpu.dimension_semantics<parallel>], iteration_bounds = array<i64: 2>, scalar_prefetch = 0 : i64, scratch_operands = 0 : i64, tpu.core_type = #tpu.core_type<tc>, window_params = [{transform_indices = @transform_0, window_bounds = array<i64: 128, 128>}, {pipeline_mode = #tpu.pipeline_mode<synchronous>, transform_indices = @transform_1, window_bounds = array<i64: 128, 128>}, {pipeline_mode = #tpu.pipeline_mode<synchronous>, transform_indices = @transform_2, window_bounds = array<i64: 1, 128>}, {pipeline_mode = #tpu.pipeline_mode<synchronous>, transform_indices = @transform_3, window_bounds = array<i64: 128, 128>}, {pipeline_mode = #tpu.pipeline_mode<synchronous>, transform_indices = @transform_4, window_bounds = array<i64: 1, 128>}, {transform_indices = @transform_5, window_bounds = array<i64: 16, 128>}]} {
    %c0 = arith.constant 0 : index
    %c0_0 = arith.constant 0 : index
    %0 = vector.load %arg1[%c0, %c0_0] : memref<128x128xbf16, #tpu.memory_space<vmem>>, vector<128x128xbf16>
    %c0_1 = arith.constant 0 : index
    %c0_2 = arith.constant 0 : index
    %1 = vector.load %arg2[%c0_1, %c0_2] : memref<128x128xbf16, #tpu.memory_space<vmem>>, vector<128x128xbf16>
    %c0_3 = arith.constant 0 : index
    %c0_4 = arith.constant 0 : index
    %2 = vector.load %arg3[%c0_3, %c0_4] : memref<1x128xf32, #tpu.memory_space<vmem>>, vector<1x128xf32>
    %cst = arith.constant dense<0.000000e+00> : vector<128x128xf32>
    %3 = tpu.matmul %0, %1, %cst {dimension_numbers = #tpu.dot_dimension_numbers<[1], [0], [0], [1], [0, 0, 1, 1], [], []>} : vector<128x128xbf16>, vector<128x128xbf16>, vector<128x128xf32> -> vector<128x128xf32>
    %4 = vector.broadcast %2 : vector<1x128xf32> to vector<128x128xf32>
    %5 = arith.addf %3, %4 : vector<128x128xf32>
    %cst_5 = arith.constant 0.000000e+00 : f32
    %6 = vector.broadcast %cst_5 : f32 to vector<128x128xf32>
    %7 = arith.maximumf %5, %6 : vector<128x128xf32>
    %8 = arith.truncf %7 : vector<128x128xf32> to vector<128x128xbf16>
    %c0_6 = arith.constant 0 : index
    %c0_7 = arith.constant 0 : index
    %9 = vector.load %arg4[%c0_6, %c0_7] : memref<128x128xbf16, #tpu.memory_space<vmem>>, vector<128x128xbf16>
    %c0_8 = arith.constant 0 : index
    %c0_9 = arith.constant 0 : index
    %10 = vector.load %arg5[%c0_8, %c0_9] : memref<1x128xf32, #tpu.memory_space<vmem>>, vector<1x128xf32>
    %cst_10 = arith.constant dense<0.000000e+00> : vector<128x128xf32>
    %11 = tpu.matmul %8, %9, %cst_10 {dimension_numbers = #tpu.dot_dimension_numbers<[1], [0], [0], [1], [0, 0, 1, 1], [], []>} : vector<128x128xbf16>, vector<128x128xbf16>, vector<128x128xf32> -> vector<128x128xf32>
    %12 = vector.broadcast %10 : vector<1x128xf32> to vector<128x128xf32>
    %13 = arith.addf %11, %12 : vector<128x128xf32>
    %cst_11 = arith.constant 0.000000e+00 : f32
    %14 = vector.broadcast %cst_11 : f32 to vector<128x128xf32>
    %15 = arith.maximumf %13, %14 : vector<128x128xf32>
    %16 = vector.shape_cast %15 : vector<128x128xf32> to vector<16x8x128xf32>
    %cst_12 = arith.constant dense<0xFF800000> : vector<16x128xf32>
    %17 = vector.multi_reduction <maximumf>, %16, %cst_12 [1] : vector<16x8x128xf32> to vector<16x128xf32>
    %c0_13 = arith.constant 0 : index
    %c0_14 = arith.constant 0 : index
    %18 = vector.load %arg6[%c0_13, %c0_14] : memref<16x128xf32, #tpu.memory_space<vmem>>, vector<16x128xf32>
    tpu.vector_store %arg6[%c0_13, %c0_14], %17 {strides = array<i32>} : memref<16x128xf32, #tpu.memory_space<vmem>>, vector<16x128xf32>,
    return
  }
  func.func @transform_0(%arg0: i32) -> (i32, i32) {
    %c0_i32 = arith.constant 0 : i32
    %c0_i32_0 = arith.constant 0 : i32
    return %arg0, %c0_i32 : i32, i32
  }
  func.func @transform_1(%arg0: i32) -> (i32, i32) {
    %c0_i32 = arith.constant 0 : i32
    %c0_i32_0 = arith.constant 0 : i32
    %c0_i32_1 = arith.constant 0 : i32
    return %c0_i32, %c0_i32_0 : i32, i32
  }
  func.func @transform_2(%arg0: i32) -> (i32, i32) {
    %c0_i32 = arith.constant 0 : i32
    %c0_i32_0 = arith.constant 0 : i32
    %c0_i32_1 = arith.constant 0 : i32
    return %c0_i32, %c0_i32_0 : i32, i32
  }
  func.func @transform_3(%arg0: i32) -> (i32, i32) {
    %c0_i32 = arith.constant 0 : i32
    %c0_i32_0 = arith.constant 0 : i32
    %c0_i32_1 = arith.constant 0 : i32
    return %c0_i32, %c0_i32_0 : i32, i32
  }
  func.func @transform_4(%arg0: i32) -> (i32, i32) {
    %c0_i32 = arith.constant 0 : i32
    %c0_i32_0 = arith.constant 0 : i32
    %c0_i32_1 = arith.constant 0 : i32
    return %c0_i32, %c0_i32_0 : i32, i32
  }
  func.func @transform_5(%arg0: i32) -> (i32, i32) {
    %c0_i32 = arith.constant 0 : i32
    %c0_i32_0 = arith.constant 0 : i32
    return %arg0, %c0_i32 : i32, i32
  }
}

module attributes {stable_mosaic.version = 11 : i64} {
  func.func @_fused_mlp_max_kernel(%arg0: i32, %arg1: memref<256x128xbf16, #tpu.memory_space<vmem>>, %arg2: memref<128x128xbf16, #tpu.memory_space<vmem>>, %arg3: memref<1x128xf32, #tpu.memory_space<vmem>>, %arg4: memref<128x128xbf16, #tpu.memory_space<vmem>>, %arg5: memref<1x128xf32, #tpu.memory_space<vmem>>, %arg6: memref<16x128xf32, #tpu.memory_space<vmem>>) attributes {dimension_semantics = [#tpu.dimension_semantics<parallel>], iteration_bounds = array<i64: 2>, scalar_prefetch = 0 : i64, scratch_operands = 0 : i64, tpu.core_type = #tpu.core_type<tc>, window_params = [{transform_indices = @transform_0, window_bounds = array<i64: 256, 128>}, {pipeline_mode = #tpu.pipeline_mode<synchronous>, transform_indices = @transform_1, window_bounds = array<i64: 128, 128>}, {pipeline_mode = #tpu.pipeline_mode<synchronous>, transform_indices = @transform_2, window_bounds = array<i64: 1, 128>}, {pipeline_mode = #tpu.pipeline_mode<synchronous>, transform_indices = @transform_3, window_bounds = array<i64: 128, 128>}, {pipeline_mode = #tpu.pipeline_mode<synchronous>, transform_indices = @transform_4, window_bounds = array<i64: 1, 128>}, {transform_indices = @transform_5, window_bounds = array<i64: 16, 128>}]} {
    %c0 = arith.constant 0 : index
    %c0_0 = arith.constant 0 : index
    %0 = vector.load %arg1[%c0, %c0_0] : memref<256x128xbf16, #tpu.memory_space<vmem>>, vector<256x128xbf16>
    %c0_1 = arith.constant 0 : index
    %c0_2 = arith.constant 0 : index
    %1 = vector.load %arg2[%c0_1, %c0_2] : memref<128x128xbf16, #tpu.memory_space<vmem>>, vector<128x128xbf16>
    %c0_3 = arith.constant 0 : index
    %c0_4 = arith.constant 0 : index
    %2 = vector.load %arg3[%c0_3, %c0_4] : memref<1x128xf32, #tpu.memory_space<vmem>>, vector<1x128xf32>
    %cst = arith.constant dense<0.000000e+00> : vector<256x128xf32>
    %3 = tpu.matmul %0, %1, %cst {dimension_numbers = #tpu.dot_dimension_numbers<[1], [0], [0], [1], [0, 0, 1, 1], [], []>} : vector<256x128xbf16>, vector<128x128xbf16>, vector<256x128xf32> -> vector<256x128xf32>
    %4 = vector.broadcast %2 : vector<1x128xf32> to vector<256x128xf32>
    %5 = arith.addf %3, %4 : vector<256x128xf32>
    %cst_5 = arith.constant 0.000000e+00 : f32
    %6 = vector.broadcast %cst_5 : f32 to vector<256x128xf32>
    %7 = arith.maximumf %5, %6 : vector<256x128xf32>
    %8 = arith.truncf %7 : vector<256x128xf32> to vector<256x128xbf16>
    %c0_6 = arith.constant 0 : index
    %c0_7 = arith.constant 0 : index
    %9 = vector.load %arg4[%c0_6, %c0_7] : memref<128x128xbf16, #tpu.memory_space<vmem>>, vector<128x128xbf16>
    %c0_8 = arith.constant 0 : index
    %c0_9 = arith.constant 0 : index
    %10 = vector.load %arg5[%c0_8, %c0_9] : memref<1x128xf32, #tpu.memory_space<vmem>>, vector<1x128xf32>
    %cst_10 = arith.constant dense<0.000000e+00> : vector<256x128xf32>
    %11 = tpu.matmul %8, %9, %cst_10 {dimension_numbers = #tpu.dot_dimension_numbers<[1], [0], [0], [1], [0, 0, 1, 1], [], []>} : vector<256x128xbf16>, vector<128x128xbf16>, vector<256x128xf32> -> vector<256x128xf32>
    %12 = vector.broadcast %10 : vector<1x128xf32> to vector<256x128xf32>
    %13 = arith.addf %11, %12 : vector<256x128xf32>
    %cst_11 = arith.constant 0.000000e+00 : f32
    %14 = vector.broadcast %cst_11 : f32 to vector<256x128xf32>
    %15 = arith.maximumf %13, %14 : vector<256x128xf32>
    %16 = vector.shape_cast %15 : vector<256x128xf32> to vector<16x16x128xf32>
    %cst_12 = arith.constant dense<0xFF800000> : vector<16x128xf32>
    %17 = vector.multi_reduction <maximumf>, %16, %cst_12 [1] : vector<16x16x128xf32> to vector<16x128xf32>
    %c0_13 = arith.constant 0 : index
    %c0_14 = arith.constant 0 : index
    %18 = vector.load %arg6[%c0_13, %c0_14] : memref<16x128xf32, #tpu.memory_space<vmem>>, vector<16x128xf32>
    tpu.vector_store %arg6[%c0_13, %c0_14], %17 {strides = array<i32>} : memref<16x128xf32, #tpu.memory_space<vmem>>, vector<16x128xf32>,
    return
  }
  func.func @transform_0(%arg0: i32) -> (i32, i32) {
    %c0_i32 = arith.constant 0 : i32
    %c0_i32_0 = arith.constant 0 : i32
    return %arg0, %c0_i32 : i32, i32
  }
  func.func @transform_1(%arg0: i32) -> (i32, i32) {
    %c0_i32 = arith.constant 0 : i32
    %c0_i32_0 = arith.constant 0 : i32
    %c0_i32_1 = arith.constant 0 : i32
    return %c0_i32, %c0_i32_0 : i32, i32
  }
  func.func @transform_2(%arg0: i32) -> (i32, i32) {
    %c0_i32 = arith.constant 0 : i32
    %c0_i32_0 = arith.constant 0 : i32
    %c0_i32_1 = arith.constant 0 : i32
    return %c0_i32, %c0_i32_0 : i32, i32
  }
  func.func @transform_3(%arg0: i32) -> (i32, i32) {
    %c0_i32 = arith.constant 0 : i32
    %c0_i32_0 = arith.constant 0 : i32
    %c0_i32_1 = arith.constant 0 : i32
    return %c0_i32, %c0_i32_0 : i32, i32
  }
  func.func @transform_4(%arg0: i32) -> (i32, i32) {
    %c0_i32 = arith.constant 0 : i32
    %c0_i32_0 = arith.constant 0 : i32
    %c0_i32_1 = arith.constant 0 : i32
    return %c0_i32, %c0_i32_0 : i32, i32
  }
  func.func @transform_5(%arg0: i32) -> (i32, i32) {
    %c0_i32 = arith.constant 0 : i32
    %c0_i32_0 = arith.constant 0 : i32
    return %arg0, %c0_i32 : i32, i32
  }
}

module attributes {stable_mosaic.version = 11 : i64} {
  func.func @_fused_mlp_kernel(%arg0: i32, %arg1: memref<32x256xbf16, #tpu.memory_space<vmem>>, %arg2: memref<256x128xbf16, #tpu.memory_space<vmem>>, %arg3: memref<1x128xf32, #tpu.memory_space<vmem>>, %arg4: memref<128x128xbf16, #tpu.memory_space<vmem>>, %arg5: memref<1x128xf32, #tpu.memory_space<vmem>>, %arg6: memref<32x128xf32, #tpu.memory_space<vmem>>) attributes {dimension_semantics = [#tpu.dimension_semantics<parallel>], iteration_bounds = array<i64: 2>, scalar_prefetch = 0 : i64, scratch_operands = 0 : i64, tpu.core_type = #tpu.core_type<tc>, window_params = [{transform_indices = @transform_0, window_bounds = array<i64: 32, 256>}, {pipeline_mode = #tpu.pipeline_mode<synchronous>, transform_indices = @transform_1, window_bounds = array<i64: 256, 128>}, {pipeline_mode = #tpu.pipeline_mode<synchronous>, transform_indices = @transform_2, window_bounds = array<i64: 1, 128>}, {pipeline_mode = #tpu.pipeline_mode<synchronous>, transform_indices = @transform_3, window_bounds = array<i64: 128, 128>}, {pipeline_mode = #tpu.pipeline_mode<synchronous>, transform_indices = @transform_4, window_bounds = array<i64: 1, 128>}, {transform_indices = @transform_5, window_bounds = array<i64: 32, 128>}]} {
    %c0 = arith.constant 0 : index
    %c0_0 = arith.constant 0 : index
    %0 = vector.load %arg1[%c0, %c0_0] : memref<32x256xbf16, #tpu.memory_space<vmem>>, vector<32x256xbf16>
    %c0_1 = arith.constant 0 : index
    %c0_2 = arith.constant 0 : index
    %1 = vector.load %arg2[%c0_1, %c0_2] : memref<256x128xbf16, #tpu.memory_space<vmem>>, vector<256x128xbf16>
    %c0_3 = arith.constant 0 : index
    %c0_4 = arith.constant 0 : index
    %2 = vector.load %arg3[%c0_3, %c0_4] : memref<1x128xf32, #tpu.memory_space<vmem>>, vector<1x128xf32>
    %cst = arith.constant dense<0.000000e+00> : vector<32x128xf32>
    %3 = tpu.matmul %0, %1, %cst {dimension_numbers = #tpu.dot_dimension_numbers<[1], [0], [0], [1], [0, 0, 1, 1], [], []>} : vector<32x256xbf16>, vector<256x128xbf16>, vector<32x128xf32> -> vector<32x128xf32>
    %4 = vector.broadcast %2 : vector<1x128xf32> to vector<32x128xf32>
    %5 = arith.addf %3, %4 : vector<32x128xf32>
    %cst_5 = arith.constant 0.000000e+00 : f32
    %6 = vector.broadcast %cst_5 : f32 to vector<32x128xf32>
    %7 = arith.maximumf %5, %6 : vector<32x128xf32>
    %8 = arith.truncf %7 : vector<32x128xf32> to vector<32x128xbf16>
    %c0_6 = arith.constant 0 : index
    %c0_7 = arith.constant 0 : index
    %9 = vector.load %arg4[%c0_6, %c0_7] : memref<128x128xbf16, #tpu.memory_space<vmem>>, vector<128x128xbf16>
    %c0_8 = arith.constant 0 : index
    %c0_9 = arith.constant 0 : index
    %10 = vector.load %arg5[%c0_8, %c0_9] : memref<1x128xf32, #tpu.memory_space<vmem>>, vector<1x128xf32>
    %cst_10 = arith.constant dense<0.000000e+00> : vector<32x128xf32>
    %11 = tpu.matmul %8, %9, %cst_10 {dimension_numbers = #tpu.dot_dimension_numbers<[1], [0], [0], [1], [0, 0, 1, 1], [], []>} : vector<32x128xbf16>, vector<128x128xbf16>, vector<32x128xf32> -> vector<32x128xf32>
    %12 = vector.broadcast %10 : vector<1x128xf32> to vector<32x128xf32>
    %13 = arith.addf %11, %12 : vector<32x128xf32>
    %cst_11 = arith.constant 0.000000e+00 : f32
    %14 = vector.broadcast %cst_11 : f32 to vector<32x128xf32>
    %15 = arith.maximumf %13, %14 : vector<32x128xf32>
    %c0_12 = arith.constant 0 : index
    %c0_13 = arith.constant 0 : index
    %16 = vector.load %arg6[%c0_12, %c0_13] : memref<32x128xf32, #tpu.memory_space<vmem>>, vector<32x128xf32>
    tpu.vector_store %arg6[%c0_12, %c0_13], %15 {strides = array<i32>} : memref<32x128xf32, #tpu.memory_space<vmem>>, vector<32x128xf32>,
    return
  }
  func.func @transform_0(%arg0: i32) -> (i32, i32) {
    %c0_i32 = arith.constant 0 : i32
    %c0_i32_0 = arith.constant 0 : i32
    return %arg0, %c0_i32 : i32, i32
  }
  func.func @transform_1(%arg0: i32) -> (i32, i32) {
    %c0_i32 = arith.constant 0 : i32
    %c0_i32_0 = arith.constant 0 : i32
    %c0_i32_1 = arith.constant 0 : i32
    return %c0_i32, %c0_i32_0 : i32, i32
  }
  func.func @transform_2(%arg0: i32) -> (i32, i32) {
    %c0_i32 = arith.constant 0 : i32
    %c0_i32_0 = arith.constant 0 : i32
    %c0_i32_1 = arith.constant 0 : i32
    return %c0_i32, %c0_i32_0 : i32, i32
  }
  func.func @transform_3(%arg0: i32) -> (i32, i32) {
    %c0_i32 = arith.constant 0 : i32
    %c0_i32_0 = arith.constant 0 : i32
    %c0_i32_1 = arith.constant 0 : i32
    return %c0_i32, %c0_i32_0 : i32, i32
  }
  func.func @transform_4(%arg0: i32) -> (i32, i32) {
    %c0_i32 = arith.constant 0 : i32
    %c0_i32_0 = arith.constant 0 : i32
    %c0_i32_1 = arith.constant 0 : i32
    return %c0_i32, %c0_i32_0 : i32, i32
  }
  func.func @transform_5(%arg0: i32) -> (i32, i32) {
    %c0_i32 = arith.constant 0 : i32
    %c0_i32_0 = arith.constant 0 : i32
    return %arg0, %c0_i32 : i32, i32
  }
}

module attributes {stable_mosaic.version = 11 : i64} {
  func.func @_fused_mlp_kernel(%arg0: i32, %arg1: memref<64x128xbf16, #tpu.memory_space<vmem>>, %arg2: memref<128x128xbf16, #tpu.memory_space<vmem>>, %arg3: memref<1x128xf32, #tpu.memory_space<vmem>>, %arg4: memref<128x128xbf16, #tpu.memory_space<vmem>>, %arg5: memref<1x128xf32, #tpu.memory_space<vmem>>, %arg6: memref<64x128xf32, #tpu.memory_space<vmem>>) attributes {dimension_semantics = [#tpu.dimension_semantics<parallel>], iteration_bounds = array<i64: 2>, scalar_prefetch = 0 : i64, scratch_operands = 0 : i64, tpu.core_type = #tpu.core_type<tc>, window_params = [{transform_indices = @transform_0, window_bounds = array<i64: 64, 128>}, {pipeline_mode = #tpu.pipeline_mode<synchronous>, transform_indices = @transform_1, window_bounds = array<i64: 128, 128>}, {pipeline_mode = #tpu.pipeline_mode<synchronous>, transform_indices = @transform_2, window_bounds = array<i64: 1, 128>}, {pipeline_mode = #tpu.pipeline_mode<synchronous>, transform_indices = @transform_3, window_bounds = array<i64: 128, 128>}, {pipeline_mode = #tpu.pipeline_mode<synchronous>, transform_indices = @transform_4, window_bounds = array<i64: 1, 128>}, {transform_indices = @transform_5, window_bounds = array<i64: 64, 128>}]} {
    %c0 = arith.constant 0 : index
    %c0_0 = arith.constant 0 : index
    %0 = vector.load %arg1[%c0, %c0_0] : memref<64x128xbf16, #tpu.memory_space<vmem>>, vector<64x128xbf16>
    %c0_1 = arith.constant 0 : index
    %c0_2 = arith.constant 0 : index
    %1 = vector.load %arg2[%c0_1, %c0_2] : memref<128x128xbf16, #tpu.memory_space<vmem>>, vector<128x128xbf16>
    %c0_3 = arith.constant 0 : index
    %c0_4 = arith.constant 0 : index
    %2 = vector.load %arg3[%c0_3, %c0_4] : memref<1x128xf32, #tpu.memory_space<vmem>>, vector<1x128xf32>
    %cst = arith.constant dense<0.000000e+00> : vector<64x128xf32>
    %3 = tpu.matmul %0, %1, %cst {dimension_numbers = #tpu.dot_dimension_numbers<[1], [0], [0], [1], [0, 0, 1, 1], [], []>} : vector<64x128xbf16>, vector<128x128xbf16>, vector<64x128xf32> -> vector<64x128xf32>
    %4 = vector.broadcast %2 : vector<1x128xf32> to vector<64x128xf32>
    %5 = arith.addf %3, %4 : vector<64x128xf32>
    %cst_5 = arith.constant 0.000000e+00 : f32
    %6 = vector.broadcast %cst_5 : f32 to vector<64x128xf32>
    %7 = arith.maximumf %5, %6 : vector<64x128xf32>
    %8 = arith.truncf %7 : vector<64x128xf32> to vector<64x128xbf16>
    %c0_6 = arith.constant 0 : index
    %c0_7 = arith.constant 0 : index
    %9 = vector.load %arg4[%c0_6, %c0_7] : memref<128x128xbf16, #tpu.memory_space<vmem>>, vector<128x128xbf16>
    %c0_8 = arith.constant 0 : index
    %c0_9 = arith.constant 0 : index
    %10 = vector.load %arg5[%c0_8, %c0_9] : memref<1x128xf32, #tpu.memory_space<vmem>>, vector<1x128xf32>
    %cst_10 = arith.constant dense<0.000000e+00> : vector<64x128xf32>
    %11 = tpu.matmul %8, %9, %cst_10 {dimension_numbers = #tpu.dot_dimension_numbers<[1], [0], [0], [1], [0, 0, 1, 1], [], []>} : vector<64x128xbf16>, vector<128x128xbf16>, vector<64x128xf32> -> vector<64x128xf32>
    %12 = vector.broadcast %10 : vector<1x128xf32> to vector<64x128xf32>
    %13 = arith.addf %11, %12 : vector<64x128xf32>
    %cst_11 = arith.constant 0.000000e+00 : f32
    %14 = vector.broadcast %cst_11 : f32 to vector<64x128xf32>
    %15 = arith.maximumf %13, %14 : vector<64x128xf32>
    %c0_12 = arith.constant 0 : index
    %c0_13 = arith.constant 0 : index
    %16 = vector.load %arg6[%c0_12, %c0_13] : memref<64x128xf32, #tpu.memory_space<vmem>>, vector<64x128xf32>
    tpu.vector_store %arg6[%c0_12, %c0_13], %15 {strides = array<i32>} : memref<64x128xf32, #tpu.memory_space<vmem>>, vector<64x128xf32>,
    return
  }
  func.func @transform_0(%arg0: i32) -> (i32, i32) {
    %c0_i32 = arith.constant 0 : i32
    %c0_i32_0 = arith.constant 0 : i32
    return %arg0, %c0_i32 : i32, i32
  }
  func.func @transform_1(%arg0: i32) -> (i32, i32) {
    %c0_i32 = arith.constant 0 : i32
    %c0_i32_0 = arith.constant 0 : i32
    %c0_i32_1 = arith.constant 0 : i32
    return %c0_i32, %c0_i32_0 : i32, i32
  }
  func.func @transform_2(%arg0: i32) -> (i32, i32) {
    %c0_i32 = arith.constant 0 : i32
    %c0_i32_0 = arith.constant 0 : i32
    %c0_i32_1 = arith.constant 0 : i32
    return %c0_i32, %c0_i32_0 : i32, i32
  }
  func.func @transform_3(%arg0: i32) -> (i32, i32) {
    %c0_i32 = arith.constant 0 : i32
    %c0_i32_0 = arith.constant 0 : i32
    %c0_i32_1 = arith.constant 0 : i32
    return %c0_i32, %c0_i32_0 : i32, i32
  }
  func.func @transform_4(%arg0: i32) -> (i32, i32) {
    %c0_i32 = arith.constant 0 : i32
    %c0_i32_0 = arith.constant 0 : i32
    %c0_i32_1 = arith.constant 0 : i32
    return %c0_i32, %c0_i32_0 : i32, i32
  }
  func.func @transform_5(%arg0: i32) -> (i32, i32) {
    %c0_i32 = arith.constant 0 : i32
    %c0_i32_0 = arith.constant 0 : i32
    return %arg0, %c0_i32 : i32, i32
  }
}

</mosaic_0001>

<llo_original>
// kernel: custom-call.28
$region0: #{custom-call.28}
  %s0 = inlined_call_operand.vmem [shape: f32[2,64], index: 0, kind: output, shape index: {}]

// kernel: custom-call.29
$region0: #{custom-call.29}
  %s0 = inlined_call_operand.vmem [shape: f32[2,32], index: 0, kind: output, shape index: {}]

// kernel: pointnet2_backbone_forward.6
$region0: #{pointnet2_backbone_forward.6}
  #allocation0 [shape = 'u32[]', space=smem, size = 0x4, offset = 0x4, fixed_abs, tag = 'smem constant byte address 0x4 - core index']
  #allocation1 [shape = 'u32[144,128]{1,0:T(1,128)}', space=vmem, size = 0x12000, scoped, tag = 'internal scratch']
  %s0 = inlined_call_operand.vmem [shape: bf16[512,128], index: 0, kind: input, shape index: {}]
  %s1 = inlined_call_operand.vmem [shape: bf16[128,128], index: 1, kind: input, shape index: {}]
  %s2 = inlined_call_operand.vmem [shape: f32[1,128], index: 2, kind: input, shape index: {}]
  %s3 = inlined_call_operand.vmem [shape: bf16[128,128], index: 3, kind: input, shape index: {}]
  %s4 = inlined_call_operand.vmem [shape: f32[1,128], index: 4, kind: input, shape index: {}]
  %s5 = inlined_call_operand.vmem [shape: f32[64,128], index: 5, kind: output, shape index: {}]
  %s6 = sld [smem:[#allocation0]]
  $region53: #{pointnet2_backbone_forward.6} parent=0
    _
  %s8 = ssub.s32 1, %s6
  %s9 = scalar_select 0, %s8, %s6
  loop: start=0, step=1, limit=4
  $region2: #{pointnet2_backbone_forward.6} parent=0 // loop_pre_header
    _
  $region3: #{pointnet2_backbone_forward.6} parent=0 // loop_header
    %s11 = sphi 0, %s15
    %p12 = scmp.ge.s32.totalorder %s11, 4
    %s21 = sphi 0, %s23
    %s24 = sphi 0, %s21
    %s25 = sphi 0, %s24
    %s41 = sphi 0, %s25
    %s45 = sphi 0, %s45
    %s47 = sphi 0, %s45
    %s48 = sphi 0, %s47
    %s62 = sphi 0, %s48
    %s66 = sphi 0, %s66
    %s68 = sphi 0, %s66
    %s69 = sphi 0, %s68
    %s83 = sphi 0, %s69
    %s87 = sphi 0, %s87
    %s89 = sphi 0, %s87
    %s90 = sphi 0, %s89
    %s104 = sphi 0, %s90
    %s108 = sphi 0, %s108
    %s110 = sphi 0, %s108
    %s111 = sphi 0, %s110
    %s125 = sphi 0, %s111
    %s131 = sphi 0, %s133
    %s134 = sphi 0, %s131
    %s135 = sphi 0, %s134
    %s151 = sphi 0, %s135
  $region4: #{pointnet2_backbone_forward.6} parent=0 // loop_header_branch
    %14 = sbr.rel (%p12) target = $region8
  $region5: #{pointnet2_backbone_forward.6} parent=0 // loop_body
    %s16 = ssub.s32 %s11, 1
    %s17 = ssub.s32 %s11, 2
    %s18 = sadd.s32 %s11, 1
    %s19 = ssub.s32 %s11, %s18
    %p20 = scmp.eq.s32.totalorder %s19, 0
    %s22 = sadd.s32 %s21, 1
    %s23 = scalar_select %p20, %s21, %s22
    %p26 = pneg %p20
    %p27 = scmp.eq.s32.totalorder %s11, 1
    %p28 = por %p26, %p27
    %p29 = scmp.ne.s32.totalorder %s21, %s24
    %p30 = scmp.eq.s32.totalorder %s11, 0
    %p31 = por %p29, %p30
    %p32 = scmp.ne.s32.totalorder %s21, %s24
    %p33 = scmp.eq.s32.totalorder %s16, 1
    %p34 = por %p32, %p33
    %p35 = scmp.ne.s32.totalorder %s24, %s25
    %p36 = scmp.eq.s32.totalorder %s16, 0
    %p37 = por %p35, %p36
    %p38 = scmp.ne.s32.totalorder %s24, %s25
    %p39 = scmp.eq.s32.totalorder %s17, 1
    %p40 = por %p38, %p39
    %p42 = scmp.ne.s32.totalorder %s25, %s41
    %p43 = scmp.eq.s32.totalorder %s17, 0
    %p44 = por %p42, %p43
    %s46 = sadd.s32 %s45, 1
    %p49 = scmp.eq.s32.totalorder %s11, 1
    %p50 = scmp.ne.s32.totalorder %s45, %s47
    %p51 = scmp.eq.s32.totalorder %s11, 0
    %p52 = por %p50, %p51
    %p53 = scmp.ne.s32.totalorder %s45, %s47
    %p54 = scmp.eq.s32.totalorder %s16, 1
    %p55 = por %p53, %p54
    %p56 = scmp.ne.s32.totalorder %s47, %s48
    %p57 = scmp.eq.s32.totalorder %s16, 0
    %p58 = por %p56, %p57
    %p59 = scmp.ne.s32.totalorder %s47, %s48
    %p60 = scmp.eq.s32.totalorder %s17, 1
    %p61 = por %p59, %p60
    %p63 = scmp.ne.s32.totalorder %s48, %s62
    %p64 = scmp.eq.s32.totalorder %s17, 0
    %p65 = por %p63, %p64
    %s67 = sadd.s32 %s66, 1
    %p70 = scmp.eq.s32.totalorder %s11, 1
    %p71 = scmp.ne.s32.totalorder %s66, %s68
    %p72 = scmp.eq.s32.totalorder %s11, 0
    %p73 = por %p71, %p72
    %p74 = scmp.ne.s32.totalorder %s66, %s68
    %p75 = scmp.eq.s32.totalorder %s16, 1
    %p76 = por %p74, %p75
    %p77 = scmp.ne.s32.totalorder %s68, %s69
    %p78 = scmp.eq.s32.totalorder %s16, 0
    %p79 = por %p77, %p78
    %p80 = scmp.ne.s32.totalorder %s68, %s69
    %p81 = scmp.eq.s32.totalorder %s17, 1
    %p82 = por %p80, %p81
    %p84 = scmp.ne.s32.totalorder %s69, %s83
    %p85 = scmp.eq.s32.totalorder %s17, 0
    %p86 = por %p84, %p85
    %s88 = sadd.s32 %s87, 1
    %p91 = scmp.eq.s32.totalorder %s11, 1
    %p92 = scmp.ne.s32.totalorder %s87, %s89
    %p93 = scmp.eq.s32.totalorder %s11, 0
    %p94 = por %p92, %p93
    %p95 = scmp.ne.s32.totalorder %s87, %s89
    %p96 = scmp.eq.s32.totalorder %s16, 1
    %p97 = por %p95, %p96
    %p98 = scmp.ne.s32.totalorder %s89, %s90
    %p99 = scmp.eq.s32.totalorder %s16, 0
    %p100 = por %p98, %p99
    %p101 = scmp.ne.s32.totalorder %s89, %s90
    %p102 = scmp.eq.s32.totalorder %s17, 1
    %p103 = por %p101, %p102
    %p105 = scmp.ne.s32.totalorder %s90, %s104
    %p106 = scmp.eq.s32.totalorder %s17, 0
    %p107 = por %p105, %p106
    %s109 = sadd.s32 %s108, 1
    %p112 = scmp.eq.s32.totalorder %s11, 1
    %p113 = scmp.ne.s32.totalorder %s108, %s110
    %p114 = scmp.eq.s32.totalorder %s11, 0
    %p115 = por %p113, %p114
    %p116 = scmp.ne.s32.totalorder %s108, %s110
    %p117 = scmp.eq.s32.totalorder %s16, 1
    %p118 = por %p116, %p117
    %p119 = scmp.ne.s32.totalorder %s110, %s111
    %p120 = scmp.eq.s32.totalorder %s16, 0
    %p121 = por %p119, %p120
    %p122 = scmp.ne.s32.totalorder %s110, %s111
    %p123 = scmp.eq.s32.totalorder %s17, 1
    %p124 = por %p122, %p123
    %p126 = scmp.ne.s32.totalorder %s111, %s125
    %p127 = scmp.eq.s32.totalorder %s17, 0
    %p128 = por %p126, %p127
    %s129 = ssub.s32 %s11, %s18
    %p130 = scmp.eq.s32.totalorder %s129, 0
    %s132 = sadd.s32 %s131, 1
    %s133 = scalar_select %p130, %s131, %s132
    %p136 = pneg %p130
    %p137 = scmp.eq.s32.totalorder %s11, 1
    %p138 = por %p136, %p137
    %p139 = scmp.ne.s32.totalorder %s131, %s134
    %p140 = scmp.eq.s32.totalorder %s11, 0
    %p141 = por %p139, %p140
    %p142 = scmp.ne.s32.totalorder %s131, %s134
    %p143 = scmp.eq.s32.totalorder %s16, 1
    %p144 = por %p142, %p143
    %p145 = scmp.ne.s32.totalorder %s134, %s135
    %p146 = scmp.eq.s32.totalorder %s16, 0
    %p147 = por %p145, %p146
    %p148 = scmp.ne.s32.totalorder %s134, %s135
    %p149 = scmp.eq.s32.totalorder %s17, 1
    %p150 = por %p148, %p149
    %p152 = scmp.ne.s32.totalorder %s135, %s151
    %p153 = scmp.eq.s32.totalorder %s17, 0
    %p154 = por %p152, %p153
    %p155 = scmp.le.s32.totalorder 1, %s11
    %p156 = scmp.lt.s32.totalorder %s11, 3
    %p157 = pnand %p155, %p156
    %p158 = pneg %p157
    // Predicated region
    $region9: #{pointnet2_backbone_forward.6} parent=5 // pred_check
      _
    $region10: #{pointnet2_backbone_forward.6} parent=5 // pred_check_branch
      %160 = sbr.rel (%p157) target = $region12
    $region11: #{pointnet2_backbone_forward.6} parent=5 // pred_region
      %s161 = ssub.s32 %s11, 1
      // Predicated region
      $region13: #{pointnet2_backbone_forward.6} parent=11 // pred_check
        %p162 = pneg %p58
      $region14: #{pointnet2_backbone_forward.6} parent=11 // pred_check_branch
        %164 = sbr.rel (%p162) target = $region16
      $region15: #{pointnet2_backbone_forward.6} parent=11 // pred_region
        _
      $region16: #{pointnet2_backbone_forward.6} parent=11 // pred_fallthru
        _
      // Predicated region
      $region17: #{pointnet2_backbone_forward.6} parent=11 // pred_check
        %p165 = pneg %p79
      $region18: #{pointnet2_backbone_forward.6} parent=11 // pred_check_branch
        %167 = sbr.rel (%p165) target = $region20
      $region19: #{pointnet2_backbone_forward.6} parent=11 // pred_region
        _
      $region20: #{pointnet2_backbone_forward.6} parent=11 // pred_fallthru
        _
      // Predicated region
      $region21: #{pointnet2_backbone_forward.6} parent=11 // pred_check
        %p168 = pneg %p100
      $region22: #{pointnet2_backbone_forward.6} parent=11 // pred_check_branch
        %170 = sbr.rel (%p168) target = $region24
      $region23: #{pointnet2_backbone_forward.6} parent=11 // pred_region
        _
      $region24: #{pointnet2_backbone_forward.6} parent=11 // pred_fallthru
        _
      // Predicated region
      $region25: #{pointnet2_backbone_forward.6} parent=11 // pred_check
        %p171 = pneg %p121
      $region26: #{pointnet2_backbone_forward.6} parent=11 // pred_check_branch
        %173 = sbr.rel (%p171) target = $region28
      $region27: #{pointnet2_backbone_forward.6} parent=11 // pred_region
        _
      $region28: #{pointnet2_backbone_forward.6} parent=11 // pred_fallthru
        _
    $region12: #{pointnet2_backbone_forward.6} parent=5 // pred_fallthru
      _
    %p174 = scmp.lt.s32.totalorder %s11, 2
    // Predicated region
    $region29: #{pointnet2_backbone_forward.6} parent=5 // pred_check
      %p175 = pneg %p174
    $region30: #{pointnet2_backbone_forward.6} parent=5 // pred_check_branch
      %177 = sbr.rel (%p175) target = $region32
    $region31: #{pointnet2_backbone_forward.6} parent=5 // pred_region
      // Predicated region
      $region33: #{pointnet2_backbone_forward.6} parent=31 // pred_check
        %p178 = pneg %p31
      $region34: #{pointnet2_backbone_forward.6} parent=31 // pred_check_branch
        %180 = sbr.rel (%p178) target = $region36
      $region35: #{pointnet2_backbone_forward.6} parent=31 // pred_region
        %s181 = smul.u32 32, %s11
        %p182 = scmp.lt.s32.totalorder %s181, 63
        %s183 = scalar_select %p182, %s181, 63
        %s184 = smul.addr %s183, 4
        %s185 = scalar_lea.vmem %s0, %s184
        %s186 = smul.u32 32, %s11
      $region36: #{pointnet2_backbone_forward.6} parent=31 // pred_fallthru
        _
    $region32: #{pointnet2_backbone_forward.6} parent=5 // pred_fallthru
      _
    %p187 = scmp.le.s32.totalorder 1, %s11
    %p188 = scmp.lt.s32.totalorder %s11, 3
    %p189 = pnand %p187, %p188
    %p190 = pneg %p189
    // Predicated region
    $region37: #{pointnet2_backbone_forward.6} parent=5 // pred_check
      _
    $region38: #{pointnet2_backbone_forward.6} parent=5 // pred_check_branch
      %192 = sbr.rel (%p189) target = $region40
    $region39: #{pointnet2_backbone_forward.6} parent=5 // pred_region
      %s193 = ssub.s32 %s11, 1
      %s194 = smul.u32 32, %s16
      %p195 = scmp.lt.s32.totalorder %s194, 63
      %s196 = scalar_select %p195, %s194, 63
      %s197 = smul.addr %s196, 4
      %s198 = scalar_lea.vmem %s0, %s197
      %p199 = pneg %p37
      %p200 = pneg %p34
      %p201 = pneg %p58
      %p202 = pneg %p55
      %p203 = pneg %p79
      %p204 = pneg %p76
      %p205 = pneg %p100
      %p206 = pneg %p97
      %p207 = pneg %p121
      %p208 = pneg %p118
      %p209 = pneg %p147
      %p210 = pneg %p144
      %s211 = smul.u32 4, %s16
      %p212 = scmp.lt.s32.totalorder %s211, 7
      %s213 = scalar_select %p212, %s211, 7
      %s214 = smul.addr %s213, 8
      %s215 = scalar_lea.vmem %s5, %s214
      %s216 = smul.u32 32, %s16
      %p217 = scmp.lt.s32.totalorder %s216, 63
      %s218 = scalar_select %p217, %s216, 63
      %s219 = smul.addr %s218, 4
      %s220 = scalar_lea.vmem %s0, %s219
      %s221 = smul.u32 32, %s16
      %s222 = smul.u32 4, %s16
      %p223 = scmp.lt.s32.totalorder %s222, 7
      %s224 = scalar_select %p223, %s222, 7
      %s225 = smul.addr %s224, 8
      %s226 = scalar_lea.vmem %s5, %s225
      %s227 = smul.u32 4, %s16
      %v229 = vld [vmem:[%s220] sm:$0xf]
      %v230 = vld [vmem:[%s220 + $0x4] sm:$0xf]
      %v231 = vld [vmem:[%s220 + $0x8] sm:$0xf]
      %v232 = vld [vmem:[%s220 + $0xc] sm:$0xf]
      %v233 = vld [vmem:[%s220 + $0x10] sm:$0xf]
      %v234 = vld [vmem:[%s220 + $0x14] sm:$0xf]
      %v235 = vld [vmem:[%s220 + $0x18] sm:$0xf]
      %v236 = vld [vmem:[%s220 + $0x1c] sm:$0xf]
      %v237 = vld [vmem:[%s220 + $0x20] sm:$0xf]
      %v238 = vld [vmem:[%s220 + $0x24] sm:$0xf]
      %v239 = vld [vmem:[%s220 + $0x28] sm:$0xf]
      %v240 = vld [vmem:[%s220 + $0x2c] sm:$0xf]
      %v241 = vld [vmem:[%s220 + $0x30] sm:$0xf]
      %v242 = vld [vmem:[%s220 + $0x34] sm:$0xf]
      %v243 = vld [vmem:[%s220 + $0x38] sm:$0xf]
      %v244 = vld [vmem:[%s220 + $0x3c] sm:$0xf]
      %v245 = vld [vmem:[%s220 + $0x40] sm:$0xf]
      %v246 = vld [vmem:[%s220 + $0x44] sm:$0xf]
      %v247 = vld [vmem:[%s220 + $0x48] sm:$0xf]
      %v248 = vld [vmem:[%s220 + $0x4c] sm:$0xf]
      %v249 = vld [vmem:[%s220 + $0x50] sm:$0xf]
      %v250 = vld [vmem:[%s220 + $0x54] sm:$0xf]
      %v251 = vld [vmem:[%s220 + $0x58] sm:$0xf]
      %v252 = vld [vmem:[%s220 + $0x5c] sm:$0xf]
      %v253 = vld [vmem:[%s220 + $0x60] sm:$0xf]
      %v254 = vld [vmem:[%s220 + $0x64] sm:$0xf]
      %v255 = vld [vmem:[%s220 + $0x68] sm:$0xf]
      %v256 = vld [vmem:[%s220 + $0x6c] sm:$0xf]
      %v257 = vld [vmem:[%s220 + $0x70] sm:$0xf]
      %v258 = vld [vmem:[%s220 + $0x74] sm:$0xf]
      %v259 = vld [vmem:[%s220 + $0x78] sm:$0xf]
      %v260 = vld [vmem:[%s220 + $0x7c] sm:$0xf]
      %v261 = vld [vmem:[%s1] sm:$0xf]
      %v262 = vld [vmem:[%s1 + $0x4] sm:$0xf]
      %v263 = vld [vmem:[%s1 + $0x8] sm:$0xf]
      %v264 = vld [vmem:[%s1 + $0xc] sm:$0xf]
      %v265 = vld [vmem:[%s1 + $0x10] sm:$0xf]
      %v266 = vld [vmem:[%s1 + $0x14] sm:$0xf]
      %v267 = vld [vmem:[%s1 + $0x18] sm:$0xf]
      %v268 = vld [vmem:[%s1 + $0x1c] sm:$0xf]
      %v269 = vld [vmem:[%s1 + $0x20] sm:$0xf]
      %v270 = vld [vmem:[%s1 + $0x24] sm:$0xf]
      %v271 = vld [vmem:[%s1 + $0x28] sm:$0xf]
      %v272 = vld [vmem:[%s1 + $0x2c] sm:$0xf]
      %v273 = vld [vmem:[%s1 + $0x30] sm:$0xf]
      %v274 = vld [vmem:[%s1 + $0x34] sm:$0xf]
      %v275 = vld [vmem:[%s1 + $0x38] sm:$0xf]
      %v276 = vld [vmem:[%s1 + $0x3c] sm:$0xf]
      %v277 = vld [vmem:[%s2] sm:$0x1]
      %v279 = vlaneseq
      %v280 = vshrl.u32 %v279, 7
      %v281 = vsub.s32 0, %v280
      %v282 = vrot.slane %v277, %v281
      %v316 = vunpack.c.l.b16 %v229
      %v317 = vunpack.c.l.b16 %v230
      %v318 = vunpack.c.l.b16 %v231
      %v319 = vunpack.c.l.b16 %v232
      %v320 = vunpack.c.l.b16 %v233
      %v321 = vunpack.c.l.b16 %v234
      %v322 = vunpack.c.l.b16 %v235
      %v323 = vunpack.c.l.b16 %v236
      %v324 = vunpack.c.l.b16 %v237
      %v325 = vunpack.c.l.b16 %v238
      %v326 = vunpack.c.l.b16 %v239
      %v327 = vunpack.c.l.b16 %v240
      %v328 = vunpack.c.l.b16 %v241
      %v329 = vunpack.c.l.b16 %v242
      %v330 = vunpack.c.l.b16 %v243
      %v331 = vunpack.c.l.b16 %v244
      %v332 = vunpack.c.l.b16 %v245
      %v333 = vunpack.c.l.b16 %v246
      %v334 = vunpack.c.l.b16 %v247
      %v335 = vunpack.c.l.b16 %v248
      %v336 = vunpack.c.l.b16 %v249
      %v337 = vunpack.c.l.b16 %v250
      %v338 = vunpack.c.l.b16 %v251
      %v339 = vunpack.c.l.b16 %v252
      %v340 = vunpack.c.l.b16 %v253
      %v341 = vunpack.c.l.b16 %v254
      %v342 = vunpack.c.l.b16 %v255
      %v343 = vunpack.c.l.b16 %v256
      %v344 = vunpack.c.l.b16 %v257
      %v345 = vunpack.c.l.b16 %v258
      %v346 = vunpack.c.l.b16 %v259
      %v347 = vunpack.c.l.b16 %v260
      %v348 = vpack.c.b16 %v317, %v316
      %v349 = vpack.c.b16 %v319, %v318
      %v350 = vpack.c.b16 %v321, %v320
      %v351 = vpack.c.b16 %v323, %v322
      %v352 = vpack.c.b16 %v325, %v324
      %v353 = vpack.c.b16 %v327, %v326
      %v354 = vpack.c.b16 %v329, %v328
      %v355 = vpack.c.b16 %v331, %v330
      %v356 = vpack.c.b16 %v333, %v332
      %v357 = vpack.c.b16 %v335, %v334
      %v358 = vpack.c.b16 %v337, %v336
      %v359 = vpack.c.b16 %v339, %v338
      %v360 = vpack.c.b16 %v341, %v340
      %v361 = vpack.c.b16 %v343, %v342
      %v362 = vpack.c.b16 %v345, %v344
      %v363 = vpack.c.b16 %v347, %v346
      %v396 = vunpack.c.l.b16 %v261
      %v397 = vunpack.c.l.b16 %v262
      %v398 = vunpack.c.l.b16 %v263
      %v399 = vunpack.c.l.b16 %v264
      %v400 = vunpack.c.l.b16 %v265
      %v401 = vunpack.c.l.b16 %v266
      %v402 = vunpack.c.l.b16 %v267
      %v403 = vunpack.c.l.b16 %v268
      %v404 = vunpack.c.l.b16 %v269
      %v405 = vunpack.c.l.b16 %v270
      %v406 = vunpack.c.l.b16 %v271
      %v407 = vunpack.c.l.b16 %v272
      %v408 = vunpack.c.l.b16 %v273
      %v409 = vunpack.c.l.b16 %v274
      %v410 = vunpack.c.l.b16 %v275
      %v411 = vunpack.c.l.b16 %v276
      %v412 = vpack.c.b16 %v397, %v396
      %v413 = vpack.c.b16 %v399, %v398
      %v414 = vpack.c.b16 %v401, %v400
      %v415 = vpack.c.b16 %v403, %v402
      %v416 = vpack.c.b16 %v405, %v404
      %v417 = vpack.c.b16 %v407, %v406
      %v418 = vpack.c.b16 %v409, %v408
      %v419 = vpack.c.b16 %v411, %v410
      %428 = vmatprep.subr.bf16.mxu0 0
      %429 = vmatpush1.bf16.msra.mxu0 %v412
      %430 = vmatprep.subr.bf16.mxu0 0
      %431 = vmatpush1.bf16.msra.mxu0 %v413
      %432 = vmatprep.subr.bf16.mxu0 0
      %433 = vmatpush1.bf16.msra.mxu0 %v414
      %434 = vmatprep.subr.bf16.mxu0 0
      %435 = vmatpush1.bf16.msra.mxu0 %v415
      %436 = vmatprep.subr.bf16.mxu0 0
      %437 = vmatpush1.bf16.msra.mxu0 %v416
      %438 = vmatprep.subr.bf16.mxu0 0
      %439 = vmatpush1.bf16.msra.mxu0 %v417
      %440 = vmatprep.subr.bf16.mxu0 0
      %441 = vmatpush1.bf16.msra.mxu0 %v418
      %442 = vmatprep.subr.bf16.mxu0 0
      %443 = vmatpush1.bf16.msra.mxu0 %v419
      %444 = vmatprep.subr.bf16.mxu0 0
      %445 = vmatpush1.bf16.msra.mxu0 0
      %446 = vmatprep.subr.bf16.mxu0 0
      %447 = vmatpush1.bf16.msra.mxu0 0
      %448 = vmatprep.subr.bf16.mxu0 0
      %449 = vmatpush1.bf16.msra.mxu0 0
      %450 = vmatprep.subr.bf16.mxu0 0
      %451 = vmatpush1.bf16.msra.mxu0 0
      %452 = vmatprep.subr.bf16.mxu0 0
      %453 = vmatpush1.bf16.msra.mxu0 0
      %454 = vmatprep.subr.bf16.mxu0 0
      %455 = vmatpush1.bf16.msra.mxu0 0
      %456 = vmatprep.subr.bf16.mxu0 0
      %457 = vmatpush1.bf16.msra.mxu0 0
      %458 = vmatprep.subr.bf16.mxu0 0
      %459 = vmatpush1.bf16.msra.mxu0 0
      %460 = vmatprep.mubr.bf16.mxu0 0
      %461 = vmatmul.mubr.bf16.gmra.mrb[0].mxu0 %v348
      %v462 = vpop.f32.mrb[0].mxu0
      %v463 = vadd.f32 %v282, %v462
      %v464 = vpop.f32.mrb[0].mxu0
      %v465 = vpop.f32.mrb[0].mxu0
      %v466 = vadd.f32 %v282, %v465
      %v467 = vpop.f32.mrb[0].mxu0
      %468 = vmatprep.mubr.bf16.mxu0 0
      %469 = vmatmul.mubr.bf16.gmra.mrb[0].mxu0 %v349
      %v470 = vpop.f32.mrb[0].mxu0
      %v471 = vadd.f32 %v282, %v470
      %v472 = vpop.f32.mrb[0].mxu0
      %v473 = vpop.f32.mrb[0].mxu0
      %v474 = vadd.f32 %v282, %v473
      %v475 = vpop.f32.mrb[0].mxu0
      %476 = vmatprep.mubr.bf16.mxu0 0
      %477 = vmatmul.mubr.bf16.gmra.mrb[0].mxu0 %v350
      %v478 = vpop.f32.mrb[0].mxu0
      %v479 = vadd.f32 %v282, %v478
      %v480 = vpop.f32.mrb[0].mxu0
      %v481 = vpop.f32.mrb[0].mxu0
      %v482 = vadd.f32 %v282, %v481
      %v483 = vpop.f32.mrb[0].mxu0
      %484 = vmatprep.mubr.bf16.mxu0 0
      %485 = vmatmul.mubr.bf16.gmra.mrb[0].mxu0 %v351
      %v486 = vpop.f32.mrb[0].mxu0
      %v487 = vadd.f32 %v282, %v486
      %v488 = vpop.f32.mrb[0].mxu0
      %v489 = vpop.f32.mrb[0].mxu0
      %v490 = vadd.f32 %v282, %v489
      %v491 = vpop.f32.mrb[0].mxu0
      %492 = vmatprep.mubr.bf16.mxu0 0
      %493 = vmatmul.mubr.bf16.gmra.mrb[0].mxu0 %v352
      %v494 = vpop.f32.mrb[0].mxu0
      %v495 = vadd.f32 %v282, %v494
      %v496 = vpop.f32.mrb[0].mxu0
      %v497 = vpop.f32.mrb[0].mxu0
      %v498 = vadd.f32 %v282, %v497
      %v499 = vpop.f32.mrb[0].mxu0
      %500 = vmatprep.mubr.bf16.mxu0 0
      %501 = vmatmul.mubr.bf16.gmra.mrb[0].mxu0 %v353
      %v502 = vpop.f32.mrb[0].mxu0
      %v503 = vadd.f32 %v282, %v502
      %v504 = vpop.f32.mrb[0].mxu0
      %v505 = vpop.f32.mrb[0].mxu0
      %v506 = vadd.f32 %v282, %v505
      %v507 = vpop.f32.mrb[0].mxu0
      %508 = vmatprep.mubr.bf16.mxu0 0
      %509 = vmatmul.mubr.bf16.gmra.mrb[0].mxu0 %v354
      %v510 = vpop.f32.mrb[0].mxu0
      %v511 = vadd.f32 %v282, %v510
      %v512 = vpop.f32.mrb[0].mxu0
      %v513 = vpop.f32.mrb[0].mxu0
      %v514 = vadd.f32 %v282, %v513
      %v515 = vpop.f32.mrb[0].mxu0
      %516 = vmatprep.mubr.bf16.mxu0 0
      %517 = vmatmul.mubr.bf16.gmra.mrb[0].mxu0 %v355
      %v518 = vpop.f32.mrb[0].mxu0
      %v519 = vadd.f32 %v282, %v518
      %v520 = vpop.f32.mrb[0].mxu0
      %v521 = vpop.f32.mrb[0].mxu0
      %v522 = vadd.f32 %v282, %v521
      %v523 = vpop.f32.mrb[0].mxu0
      %524 = vmatprep.mubr.bf16.mxu0 0
      %525 = vmatmul.mubr.bf16.gmra.mrb[0].mxu0 %v356
      %v526 = vpop.f32.mrb[0].mxu0
      %v527 = vadd.f32 %v282, %v526
      %v528 = vpop.f32.mrb[0].mxu0
      %v529 = vpop.f32.mrb[0].mxu0
      %v530 = vadd.f32 %v282, %v529
      %v531 = vpop.f32.mrb[0].mxu0
      %532 = vmatprep.mubr.bf16.mxu0 0
      %533 = vmatmul.mubr.bf16.gmra.mrb[0].mxu0 %v357
      %v534 = vpop.f32.mrb[0].mxu0
      %v535 = vadd.f32 %v282, %v534
      %v536 = vpop.f32.mrb[0].mxu0
      %v537 = vpop.f32.mrb[0].mxu0
      %v538 = vadd.f32 %v282, %v537
      %v539 = vpop.f32.mrb[0].mxu0
      %540 = vmatprep.mubr.bf16.mxu0 0
      %541 = vmatmul.mubr.bf16.gmra.mrb[0].mxu0 %v358
      %v542 = vpop.f32.mrb[0].mxu0
      %v543 = vadd.f32 %v282, %v542
      %v544 = vpop.f32.mrb[0].mxu0
      %v545 = vpop.f32.mrb[0].mxu0
      %v546 = vadd.f32 %v282, %v545
      %v547 = vpop.f32.mrb[0].mxu0
      %548 = vmatprep.mubr.bf16.mxu0 0
      %549 = vmatmul.mubr.bf16.gmra.mrb[0].mxu0 %v359
      %v550 = vpop.f32.mrb[0].mxu0
      %v551 = vadd.f32 %v282, %v550
      %v552 = vpop.f32.mrb[0].mxu0
      %v553 = vpop.f32.mrb[0].mxu0
      %v554 = vadd.f32 %v282, %v553
      %v555 = vpop.f32.mrb[0].mxu0
      %556 = vmatprep.mubr.bf16.mxu0 0
      %557 = vmatmul.mubr.bf16.gmra.mrb[0].mxu0 %v360
      %v558 = vpop.f32.mrb[0].mxu0
      %v559 = vadd.f32 %v282, %v558
      %v560 = vpop.f32.mrb[0].mxu0
      %v561 = vpop.f32.mrb[0].mxu0
      %v562 = vadd.f32 %v282, %v561
      %v563 = vpop.f32.mrb[0].mxu0
      %564 = vmatprep.mubr.bf16.mxu0 0
      %565 = vmatmul.mubr.bf16.gmra.mrb[0].mxu0 %v361
      %v566 = vpop.f32.mrb[0].mxu0
      %v567 = vadd.f32 %v282, %v566
      %v568 = vpop.f32.mrb[0].mxu0
      %v569 = vpop.f32.mrb[0].mxu0
      %v570 = vadd.f32 %v282, %v569
      %v571 = vpop.f32.mrb[0].mxu0
      %572 = vmatprep.mubr.bf16.mxu0 0
      %573 = vmatmul.mubr.bf16.gmra.mrb[0].mxu0 %v362
      %v574 = vpop.f32.mrb[0].mxu0
      %v575 = vadd.f32 %v282, %v574
      %v576 = vpop.f32.mrb[0].mxu0
      %v577 = vpop.f32.mrb[0].mxu0
      %v578 = vadd.f32 %v282, %v577
      %v579 = vpop.f32.mrb[0].mxu0
      %580 = vmatprep.mubr.bf16.mxu0 0
      %581 = vmatmul.mubr.bf16.gmra.mrb[0].mxu0 %v363
      %v582 = vpop.f32.mrb[0].mxu0
      %v583 = vadd.f32 %v282, %v582
      %v584 = vpop.f32.mrb[0].mxu0
      %v585 = vpop.f32.mrb[0].mxu0
      %v586 = vadd.f32 %v282, %v585
      %v587 = vpop.f32.mrb[0].mxu0
      %588 = vdwg.mxu0
      %v589 = vmax.f32 %v463, 0.0
      %v590 = vmax.f32 %v466, 0.0
      %v591 = vmax.f32 %v471, 0.0
      %v592 = vmax.f32 %v474, 0.0
      %v593 = vmax.f32 %v479, 0.0
      %v594 = vmax.f32 %v482, 0.0
      %v595 = vmax.f32 %v487, 0.0
      %v596 = vmax.f32 %v490, 0.0
      %v597 = vmax.f32 %v495, 0.0
      %v598 = vmax.f32 %v498, 0.0
      %v599 = vmax.f32 %v503, 0.0
      %v600 = vmax.f32 %v506, 0.0
      %v601 = vmax.f32 %v511, 0.0
      %v602 = vmax.f32 %v514, 0.0
      %v603 = vmax.f32 %v519, 0.0
      %v604 = vmax.f32 %v522, 0.0
      %v605 = vmax.f32 %v527, 0.0
      %v606 = vmax.f32 %v530, 0.0
      %v607 = vmax.f32 %v535, 0.0
      %v608 = vmax.f32 %v538, 0.0
      %v609 = vmax.f32 %v543, 0.0
      %v610 = vmax.f32 %v546, 0.0
      %v611 = vmax.f32 %v551, 0.0
      %v612 = vmax.f32 %v554, 0.0
      %v613 = vmax.f32 %v559, 0.0
      %v614 = vmax.f32 %v562, 0.0
      %v615 = vmax.f32 %v567, 0.0
      %v616 = vmax.f32 %v570, 0.0
      %v617 = vmax.f32 %v575, 0.0
      %v618 = vmax.f32 %v578, 0.0
      %v619 = vmax.f32 %v583, 0.0
      %v620 = vmax.f32 %v586, 0.0
      %v621 = vpack.c.bf16 %v590, %v589
      %v622 = vpack.c.bf16 %v592, %v591
      %v623 = vpack.c.bf16 %v594, %v593
      %v624 = vpack.c.bf16 %v596, %v595
      %v625 = vpack.c.bf16 %v598, %v597
      %v626 = vpack.c.bf16 %v600, %v599
      %v627 = vpack.c.bf16 %v602, %v601
      %v628 = vpack.c.bf16 %v604, %v603
      %v629 = vpack.c.bf16 %v606, %v605
      %v630 = vpack.c.bf16 %v608, %v607
      %v631 = vpack.c.bf16 %v610, %v609
      %v632 = vpack.c.bf16 %v612, %v611
      %v633 = vpack.c.bf16 %v614, %v613
      %v634 = vpack.c.bf16 %v616, %v615
      %v635 = vpack.c.bf16 %v618, %v617
      %v636 = vpack.c.bf16 %v620, %v619
      %v637 = vld [vmem:[%s3] sm:$0xf]
      %v638 = vld [vmem:[%s3 + $0x4] sm:$0xf]
      %v639 = vld [vmem:[%s3 + $0x8] sm:$0xf]
      %v640 = vld [vmem:[%s3 + $0xc] sm:$0xf]
      %v641 = vld [vmem:[%s3 + $0x10] sm:$0xf]
      %v642 = vld [vmem:[%s3 + $0x14] sm:$0xf]
      %v643 = vld [vmem:[%s3 + $0x18] sm:$0xf]
      %v644 = vld [vmem:[%s3 + $0x1c] sm:$0xf]
      %v645 = vld [vmem:[%s3 + $0x20] sm:$0xf]
      %v646 = vld [vmem:[%s3 + $0x24] sm:$0xf]
      %v647 = vld [vmem:[%s3 + $0x28] sm:$0xf]
      %v648 = vld [vmem:[%s3 + $0x2c] sm:$0xf]
      %v649 = vld [vmem:[%s3 + $0x30] sm:$0xf]
      %v650 = vld [vmem:[%s3 + $0x34] sm:$0xf]
      %v651 = vld [vmem:[%s3 + $0x38] sm:$0xf]
      %v652 = vld [vmem:[%s3 + $0x3c] sm:$0xf]
      %v653 = vld [vmem:[%s4] sm:$0x1]
      %v655 = vlaneseq
      %v656 = vshrl.u32 %v655, 7
      %v657 = vsub.s32 0, %v656
      %v658 = vrot.slane %v653, %v657
      %v676 = vunpack.c.l.b16 %v637
      %v677 = vunpack.c.l.b16 %v638
      %v678 = vunpack.c.l.b16 %v639
      %v679 = vunpack.c.l.b16 %v640
      %v680 = vunpack.c.l.b16 %v641
      %v681 = vunpack.c.l.b16 %v642
      %v682 = vunpack.c.l.b16 %v643
      %v683 = vunpack.c.l.b16 %v644
      %v684 = vunpack.c.l.b16 %v645
      %v685 = vunpack.c.l.b16 %v646
      %v686 = vunpack.c.l.b16 %v647
      %v687 = vunpack.c.l.b16 %v648
      %v688 = vunpack.c.l.b16 %v649
      %v689 = vunpack.c.l.b16 %v650
      %v690 = vunpack.c.l.b16 %v651
      %v691 = vunpack.c.l.b16 %v652
      %v692 = vpack.c.b16 %v677, %v676
      %v693 = vpack.c.b16 %v679, %v678
      %v694 = vpack.c.b16 %v681, %v680
      %v695 = vpack.c.b16 %v683, %v682
      %v696 = vpack.c.b16 %v685, %v684
      %v697 = vpack.c.b16 %v687, %v686
      %v698 = vpack.c.b16 %v689, %v688
      %v699 = vpack.c.b16 %v691, %v690
      %708 = vmatprep.subr.bf16.mxu0 0
      %709 = vmatpush1.bf16.msra.mxu0 %v692
      %710 = vmatprep.subr.bf16.mxu0 0
      %711 = vmatpush1.bf16.msra.mxu0 %v693
      %712 = vmatprep.subr.bf16.mxu0 0
      %713 = vmatpush1.bf16.msra.mxu0 %v694
      %714 = vmatprep.subr.bf16.mxu0 0
      %715 = vmatpush1.bf16.msra.mxu0 %v695
      %716 = vmatprep.subr.bf16.mxu0 0
      %717 = vmatpush1.bf16.msra.mxu0 %v696
      %718 = vmatprep.subr.bf16.mxu0 0
      %719 = vmatpush1.bf16.msra.mxu0 %v697
      %720 = vmatprep.subr.bf16.mxu0 0
      %721 = vmatpush1.bf16.msra.mxu0 %v698
      %722 = vmatprep.subr.bf16.mxu0 0
      %723 = vmatpush1.bf16.msra.mxu0 %v699
      %724 = vmatprep.subr.bf16.mxu0 0
      %725 = vmatpush1.bf16.msra.mxu0 0
      %726 = vmatprep.subr.bf16.mxu0 0
      %727 = vmatpush1.bf16.msra.mxu0 0
      %728 = vmatprep.subr.bf16.mxu0 0
      %729 = vmatpush1.bf16.msra.mxu0 0
      %730 = vmatprep.subr.bf16.mxu0 0
      %731 = vmatpush1.bf16.msra.mxu0 0
      %732 = vmatprep.subr.bf16.mxu0 0
      %733 = vmatpush1.bf16.msra.mxu0 0
      %734 = vmatprep.subr.bf16.mxu0 0
      %735 = vmatpush1.bf16.msra.mxu0 0
      %736 = vmatprep.subr.bf16.mxu0 0
      %737 = vmatpush1.bf16.msra.mxu0 0
      %738 = vmatprep.subr.bf16.mxu0 0
      %739 = vmatpush1.bf16.msra.mxu0 0
      %740 = vmatprep.mubr.bf16.mxu0 0
      %741 = vmatmul.mubr.bf16.gmra.mrb[0].mxu0 %v621
      %v742 = vpop.f32.mrb[0].mxu0
      %v743 = vadd.f32 %v658, %v742
      %v744 = vpop.f32.mrb[0].mxu0
      %v745 = vpop.f32.mrb[0].mxu0
      %v746 = vadd.f32 %v658, %v745
      %v747 = vpop.f32.mrb[0].mxu0
      %748 = vmatprep.mubr.bf16.mxu0 0
      %749 = vmatmul.mubr.bf16.gmra.mrb[0].mxu0 %v622
      %v750 = vpop.f32.mrb[0].mxu0
      %v751 = vadd.f32 %v658, %v750
      %v752 = vpop.f32.mrb[0].mxu0
      %v753 = vpop.f32.mrb[0].mxu0
      %v754 = vadd.f32 %v658, %v753
      %v755 = vpop.f32.mrb[0].mxu0
      %756 = vmatprep.mubr.bf16.mxu0 0
      %757 = vmatmul.mubr.bf16.gmra.mrb[0].mxu0 %v623
      %v758 = vpop.f32.mrb[0].mxu0
      %v759 = vadd.f32 %v658, %v758
      %v760 = vpop.f32.mrb[0].mxu0
      %v761 = vpop.f32.mrb[0].mxu0
      %v762 = vadd.f32 %v658, %v761
      %v763 = vpop.f32.mrb[0].mxu0
      %764 = vmatprep.mubr.bf16.mxu0 0
      %765 = vmatmul.mubr.bf16.gmra.mrb[0].mxu0 %v624
      %v766 = vpop.f32.mrb[0].mxu0
      %v767 = vadd.f32 %v658, %v766
      %v768 = vpop.f32.mrb[0].mxu0
      %v769 = vpop.f32.mrb[0].mxu0
      %v770 = vadd.f32 %v658, %v769
      %v771 = vpop.f32.mrb[0].mxu0
      %772 = vmatprep.mubr.bf16.mxu0 0
      %773 = vmatmul.mubr.bf16.gmra.mrb[0].mxu0 %v625
      %v774 = vpop.f32.mrb[0].mxu0
      %v775 = vadd.f32 %v658, %v774
      %v776 = vpop.f32.mrb[0].mxu0
      %v777 = vpop.f32.mrb[0].mxu0
      %v778 = vadd.f32 %v658, %v777
      %v779 = vpop.f32.mrb[0].mxu0
      %780 = vmatprep.mubr.bf16.mxu0 0
      %781 = vmatmul.mubr.bf16.gmra.mrb[0].mxu0 %v626
      %v782 = vpop.f32.mrb[0].mxu0
      %v783 = vadd.f32 %v658, %v782
      %v784 = vpop.f32.mrb[0].mxu0
      %v785 = vpop.f32.mrb[0].mxu0
      %v786 = vadd.f32 %v658, %v785
      %v787 = vpop.f32.mrb[0].mxu0
      %788 = vmatprep.mubr.bf16.mxu0 0
      %789 = vmatmul.mubr.bf16.gmra.mrb[0].mxu0 %v627
      %v790 = vpop.f32.mrb[0].mxu0
      %v791 = vadd.f32 %v658, %v790
      %v792 = vpop.f32.mrb[0].mxu0
      %v793 = vpop.f32.mrb[0].mxu0
      %v794 = vadd.f32 %v658, %v793
      %v795 = vpop.f32.mrb[0].mxu0
      %796 = vmatprep.mubr.bf16.mxu0 0
      %797 = vmatmul.mubr.bf16.gmra.mrb[0].mxu0 %v628
      %v798 = vpop.f32.mrb[0].mxu0
      %v799 = vadd.f32 %v658, %v798
      %v800 = vpop.f32.mrb[0].mxu0
      %v801 = vpop.f32.mrb[0].mxu0
      %v802 = vadd.f32 %v658, %v801
      %v803 = vpop.f32.mrb[0].mxu0
      %804 = vmatprep.mubr.bf16.mxu0 0
      %805 = vmatmul.mubr.bf16.gmra.mrb[0].mxu0 %v629
      %v806 = vpop.f32.mrb[0].mxu0
      %v807 = vadd.f32 %v658, %v806
      %v808 = vpop.f32.mrb[0].mxu0
      %v809 = vpop.f32.mrb[0].mxu0
      %v810 = vadd.f32 %v658, %v809
      %v811 = vpop.f32.mrb[0].mxu0
      %812 = vmatprep.mubr.bf16.mxu0 0
      %813 = vmatmul.mubr.bf16.gmra.mrb[0].mxu0 %v630
      %v814 = vpop.f32.mrb[0].mxu0
      %v815 = vadd.f32 %v658, %v814
      %v816 = vpop.f32.mrb[0].mxu0
      %v817 = vpop.f32.mrb[0].mxu0
      %v818 = vadd.f32 %v658, %v817
      %v819 = vpop.f32.mrb[0].mxu0
      %820 = vmatprep.mubr.bf16.mxu0 0
      %821 = vmatmul.mubr.bf16.gmra.mrb[0].mxu0 %v631
      %v822 = vpop.f32.mrb[0].mxu0
      %v823 = vadd.f32 %v658, %v822
      %v824 = vpop.f32.mrb[0].mxu0
      %v825 = vpop.f32.mrb[0].mxu0
      %v826 = vadd.f32 %v658, %v825
      %v827 = vpop.f32.mrb[0].mxu0
      %828 = vmatprep.mubr.bf16.mxu0 0
      %829 = vmatmul.mubr.bf16.gmra.mrb[0].mxu0 %v632
      %v830 = vpop.f32.mrb[0].mxu0
      %v831 = vadd.f32 %v658, %v830
      %v832 = vpop.f32.mrb[0].mxu0
      %v833 = vpop.f32.mrb[0].mxu0
      %v834 = vadd.f32 %v658, %v833
      %v835 = vpop.f32.mrb[0].mxu0
      %836 = vmatprep.mubr.bf16.mxu0 0
      %837 = vmatmul.mubr.bf16.gmra.mrb[0].mxu0 %v633
      %v838 = vpop.f32.mrb[0].mxu0
      %v839 = vadd.f32 %v658, %v838
      %v840 = vpop.f32.mrb[0].mxu0
      %v841 = vpop.f32.mrb[0].mxu0
      %v842 = vadd.f32 %v658, %v841
      %v843 = vpop.f32.mrb[0].mxu0
      %844 = vmatprep.mubr.bf16.mxu0 0
      %845 = vmatmul.mubr.bf16.gmra.mrb[0].mxu0 %v634
      %v846 = vpop.f32.mrb[0].mxu0
      %v847 = vadd.f32 %v658, %v846
      %v848 = vpop.f32.mrb[0].mxu0
      %v849 = vpop.f32.mrb[0].mxu0
      %v850 = vadd.f32 %v658, %v849
      %v851 = vpop.f32.mrb[0].mxu0
      %852 = vmatprep.mubr.bf16.mxu0 0
      %853 = vmatmul.mubr.bf16.gmra.mrb[0].mxu0 %v635
      %v854 = vpop.f32.mrb[0].mxu0
      %v855 = vadd.f32 %v658, %v854
      %v856 = vpop.f32.mrb[0].mxu0
      %v857 = vpop.f32.mrb[0].mxu0
      %v858 = vadd.f32 %v658, %v857
      %v859 = vpop.f32.mrb[0].mxu0
      %860 = vmatprep.mubr.bf16.mxu0 0
      %861 = vmatmul.mubr.bf16.gmra.mrb[0].mxu0 %v636
      %v862 = vpop.f32.mrb[0].mxu0
      %v863 = vadd.f32 %v658, %v862
      %v864 = vpop.f32.mrb[0].mxu0
      %v865 = vpop.f32.mrb[0].mxu0
      %v866 = vadd.f32 %v658, %v865
      %v867 = vpop.f32.mrb[0].mxu0
      %868 = vdwg.mxu0
      %v869 = vmax.f32 %v743, 0.0
      %v870 = vmax.f32 %v746, 0.0
      %v871 = vmax.f32 %v751, 0.0
      %v872 = vmax.f32 %v754, 0.0
      %v873 = vmax.f32 %v759, 0.0
      %v874 = vmax.f32 %v762, 0.0
      %v875 = vmax.f32 %v767, 0.0
      %v876 = vmax.f32 %v770, 0.0
      %v877 = vmax.f32 %v775, 0.0
      %v878 = vmax.f32 %v778, 0.0
      %v879 = vmax.f32 %v783, 0.0
      %v880 = vmax.f32 %v786, 0.0
      %v881 = vmax.f32 %v791, 0.0
      %v882 = vmax.f32 %v794, 0.0
      %v883 = vmax.f32 %v799, 0.0
      %v884 = vmax.f32 %v802, 0.0
      %v885 = vmax.f32 %v807, 0.0
      %v886 = vmax.f32 %v810, 0.0
      %v887 = vmax.f32 %v815, 0.0
      %v888 = vmax.f32 %v818, 0.0
      %v889 = vmax.f32 %v823, 0.0
      %v890 = vmax.f32 %v826, 0.0
      %v891 = vmax.f32 %v831, 0.0
      %v892 = vmax.f32 %v834, 0.0
      %v893 = vmax.f32 %v839, 0.0
      %v894 = vmax.f32 %v842, 0.0
      %v895 = vmax.f32 %v847, 0.0
      %v896 = vmax.f32 %v850, 0.0
      %v897 = vmax.f32 %v855, 0.0
      %v898 = vmax.f32 %v858, 0.0
      %v899 = vmax.f32 %v863, 0.0
      %v900 = vmax.f32 %v866, 0.0
      %v901 = vrot.slane %v869, 4
      %v902 = vmax.f32 %v869, %v901
      %v903 = vrot.slane %v902, 2
      %v904 = vmax.f32 %v902, %v903
      %v905 = vrot.slane %v904, 1
      %v906 = vmax.f32 %v904, %v905
      %v907 = vrot.slane %v870, 4
      %v908 = vmax.f32 %v870, %v907
      %v909 = vrot.slane %v908, 2
      %v910 = vmax.f32 %v908, %v909
      %v911 = vrot.slane %v910, 1
      %v912 = vmax.f32 %v910, %v911
      %v913 = vrot.slane %v871, 4
      %v914 = vmax.f32 %v871, %v913
      %v915 = vrot.slane %v914, 2
      %v916 = vmax.f32 %v914, %v915
      %v917 = vrot.slane %v916, 1
      %v918 = vmax.f32 %v916, %v917
      %v919 = vrot.slane %v872, 4
      %v920 = vmax.f32 %v872, %v919
      %v921 = vrot.slane %v920, 2
      %v922 = vmax.f32 %v920, %v921
      %v923 = vrot.slane %v922, 1
      %v924 = vmax.f32 %v922, %v923
      %v925 = vrot.slane %v873, 4
      %v926 = vmax.f32 %v873, %v925
      %v927 = vrot.slane %v926, 2
      %v928 = vmax.f32 %v926, %v927
      %v929 = vrot.slane %v928, 1
      %v930 = vmax.f32 %v928, %v929
      %v931 = vrot.slane %v874, 4
      %v932 = vmax.f32 %v874, %v931
      %v933 = vrot.slane %v932, 2
      %v934 = vmax.f32 %v932, %v933
      %v935 = vrot.slane %v934, 1
      %v936 = vmax.f32 %v934, %v935
      %v937 = vrot.slane %v875, 4
      %v938 = vmax.f32 %v875, %v937
      %v939 = vrot.slane %v938, 2
      %v940 = vmax.f32 %v938, %v939
      %v941 = vrot.slane %v940, 1
      %v942 = vmax.f32 %v940, %v941
      %v943 = vrot.slane %v876, 4
      %v944 = vmax.f32 %v876, %v943
      %v945 = vrot.slane %v944, 2
      %v946 = vmax.f32 %v944, %v945
      %v947 = vrot.slane %v946, 1
      %v948 = vmax.f32 %v946, %v947
      %v949 = vrot.slane %v877, 4
      %v950 = vmax.f32 %v877, %v949
      %v951 = vrot.slane %v950, 2
      %v952 = vmax.f32 %v950, %v951
      %v953 = vrot.slane %v952, 1
      %v954 = vmax.f32 %v952, %v953
      %v955 = vrot.slane %v878, 4
      %v956 = vmax.f32 %v878, %v955
      %v957 = vrot.slane %v956, 2
      %v958 = vmax.f32 %v956, %v957
      %v959 = vrot.slane %v958, 1
      %v960 = vmax.f32 %v958, %v959
      %v961 = vrot.slane %v879, 4
      %v962 = vmax.f32 %v879, %v961
      %v963 = vrot.slane %v962, 2
      %v964 = vmax.f32 %v962, %v963
      %v965 = vrot.slane %v964, 1
      %v966 = vmax.f32 %v964, %v965
      %v967 = vrot.slane %v880, 4
      %v968 = vmax.f32 %v880, %v967
      %v969 = vrot.slane %v968, 2
      %v970 = vmax.f32 %v968, %v969
      %v971 = vrot.slane %v970, 1
      %v972 = vmax.f32 %v970, %v971
      %v973 = vrot.slane %v881, 4
      %v974 = vmax.f32 %v881, %v973
      %v975 = vrot.slane %v974, 2
      %v976 = vmax.f32 %v974, %v975
      %v977 = vrot.slane %v976, 1
      %v978 = vmax.f32 %v976, %v977
      %v979 = vrot.slane %v882, 4
      %v980 = vmax.f32 %v882, %v979
      %v981 = vrot.slane %v980, 2
      %v982 = vmax.f32 %v980, %v981
      %v983 = vrot.slane %v982, 1
      %v984 = vmax.f32 %v982, %v983
      %v985 = vrot.slane %v883, 4
      %v986 = vmax.f32 %v883, %v985
      %v987 = vrot.slane %v986, 2
      %v988 = vmax.f32 %v986, %v987
      %v989 = vrot.slane %v988, 1
      %v990 = vmax.f32 %v988, %v989
      %v991 = vrot.slane %v884, 4
      %v992 = vmax.f32 %v884, %v991
      %v993 = vrot.slane %v992, 2
      %v994 = vmax.f32 %v992, %v993
      %v995 = vrot.slane %v994, 1
      %v996 = vmax.f32 %v994, %v995
      %v997 = vrot.slane %v885, 4
      %v998 = vmax.f32 %v885, %v997
      %v999 = vrot.slane %v998, 2
      %v1000 = vmax.f32 %v998, %v999
      %v1001 = vrot.slane %v1000, 1
      %v1002 = vmax.f32 %v1000, %v1001
      %v1003 = vrot.slane %v886, 4
      %v1004 = vmax.f32 %v886, %v1003
      %v1005 = vrot.slane %v1004, 2
      %v1006 = vmax.f32 %v1004, %v1005
      %v1007 = vrot.slane %v1006, 1
      %v1008 = vmax.f32 %v1006, %v1007
      %v1009 = vrot.slane %v887, 4
      %v1010 = vmax.f32 %v887, %v1009
      %v1011 = vrot.slane %v1010, 2
      %v1012 = vmax.f32 %v1010, %v1011
      %v1013 = vrot.slane %v1012, 1
      %v1014 = vmax.f32 %v1012, %v1013
      %v1015 = vrot.slane %v888, 4
      %v1016 = vmax.f32 %v888, %v1015
      %v1017 = vrot.slane %v1016, 2
      %v1018 = vmax.f32 %v1016, %v1017
      %v1019 = vrot.slane %v1018, 1
      %v1020 = vmax.f32 %v1018, %v1019
      %v1021 = vrot.slane %v889, 4
      %v1022 = vmax.f32 %v889, %v1021
      %v1023 = vrot.slane %v1022, 2
      %v1024 = vmax.f32 %v1022, %v1023
      %v1025 = vrot.slane %v1024, 1
      %v1026 = vmax.f32 %v1024, %v1025
      %v1027 = vrot.slane %v890, 4
      %v1028 = vmax.f32 %v890, %v1027
      %v1029 = vrot.slane %v1028, 2
      %v1030 = vmax.f32 %v1028, %v1029
      %v1031 = vrot.slane %v1030, 1
      %v1032 = vmax.f32 %v1030, %v1031
      %v1033 = vrot.slane %v891, 4
      %v1034 = vmax.f32 %v891, %v1033
      %v1035 = vrot.slane %v1034, 2
      %v1036 = vmax.f32 %v1034, %v1035
      %v1037 = vrot.slane %v1036, 1
      %v1038 = vmax.f32 %v1036, %v1037
      %v1039 = vrot.slane %v892, 4
      %v1040 = vmax.f32 %v892, %v1039
      %v1041 = vrot.slane %v1040, 2
      %v1042 = vmax.f32 %v1040, %v1041
      %v1043 = vrot.slane %v1042, 1
      %v1044 = vmax.f32 %v1042, %v1043
      %v1045 = vrot.slane %v893, 4
      %v1046 = vmax.f32 %v893, %v1045
      %v1047 = vrot.slane %v1046, 2
      %v1048 = vmax.f32 %v1046, %v1047
      %v1049 = vrot.slane %v1048, 1
      %v1050 = vmax.f32 %v1048, %v1049
      %v1051 = vrot.slane %v894, 4
      %v1052 = vmax.f32 %v894, %v1051
      %v1053 = vrot.slane %v1052, 2
      %v1054 = vmax.f32 %v1052, %v1053
      %v1055 = vrot.slane %v1054, 1
      %v1056 = vmax.f32 %v1054, %v1055
      %v1057 = vrot.slane %v895, 4
      %v1058 = vmax.f32 %v895, %v1057
      %v1059 = vrot.slane %v1058, 2
      %v1060 = vmax.f32 %v1058, %v1059
      %v1061 = vrot.slane %v1060, 1
      %v1062 = vmax.f32 %v1060, %v1061
      %v1063 = vrot.slane %v896, 4
      %v1064 = vmax.f32 %v896, %v1063
      %v1065 = vrot.slane %v1064, 2
      %v1066 = vmax.f32 %v1064, %v1065
      %v1067 = vrot.slane %v1066, 1
      %v1068 = vmax.f32 %v1066, %v1067
      %v1069 = vrot.slane %v897, 4
      %v1070 = vmax.f32 %v897, %v1069
      %v1071 = vrot.slane %v1070, 2
      %v1072 = vmax.f32 %v1070, %v1071
      %v1073 = vrot.slane %v1072, 1
      %v1074 = vmax.f32 %v1072, %v1073
      %v1075 = vrot.slane %v898, 4
      %v1076 = vmax.f32 %v898, %v1075
      %v1077 = vrot.slane %v1076, 2
      %v1078 = vmax.f32 %v1076, %v1077
      %v1079 = vrot.slane %v1078, 1
      %v1080 = vmax.f32 %v1078, %v1079
      %v1081 = vrot.slane %v899, 4
      %v1082 = vmax.f32 %v899, %v1081
      %v1083 = vrot.slane %v1082, 2
      %v1084 = vmax.f32 %v1082, %v1083
      %v1085 = vrot.slane %v1084, 1
      %v1086 = vmax.f32 %v1084, %v1085
      %v1087 = vrot.slane %v900, 4
      %v1088 = vmax.f32 %v900, %v1087
      %v1089 = vrot.slane %v1088, 2
      %v1090 = vmax.f32 %v1088, %v1089
      %v1091 = vrot.slane %v1090, 1
      %v1092 = vmax.f32 %v1090, %v1091
      %vm1125 = vcmask 1041409
      %v1126 = vsel %vm1125, %v912, %v906
      %vm1127 = vcmask 1042434
      %v1128 = vsel %vm1127, %v918, %v1126
      %vm1129 = vcmask 1043459
      %v1130 = vsel %vm1129, %v924, %v1128
      %vm1131 = vcmask 1044484
      %v1132 = vsel %vm1131, %v930, %v1130
      %vm1133 = vcmask 1045509
      %v1134 = vsel %vm1133, %v936, %v1132
      %vm1135 = vcmask 1046534
      %v1136 = vsel %vm1135, %v942, %v1134
      %vm1137 = vcmask 1047559
      %v1138 = vsel %vm1137, %v948, %v1136
      %v1139 = vsel %vm1125, %v960, %v954
      %v1140 = vsel %vm1127, %v966, %v1139
      %v1141 = vsel %vm1129, %v972, %v1140
      %v1142 = vsel %vm1131, %v978, %v1141
      %v1143 = vsel %vm1133, %v984, %v1142
      %v1144 = vsel %vm1135, %v990, %v1143
      %v1145 = vsel %vm1137, %v996, %v1144
      %v1146 = vsel %vm1125, %v1008, %v1002
      %v1147 = vsel %vm1127, %v1014, %v1146
      %v1148 = vsel %vm1129, %v1020, %v1147
      %v1149 = vsel %vm1131, %v1026, %v1148
      %v1150 = vsel %vm1133, %v1032, %v1149
      %v1151 = vsel %vm1135, %v1038, %v1150
      %v1152 = vsel %vm1137, %v1044, %v1151
      %v1153 = vsel %vm1125, %v1056, %v1050
      %v1154 = vsel %vm1127, %v1062, %v1153
      %v1155 = vsel %vm1129, %v1068, %v1154
      %v1156 = vsel %vm1131, %v1074, %v1155
      %v1157 = vsel %vm1133, %v1080, %v1156
      %v1158 = vsel %vm1135, %v1086, %v1157
      %v1159 = vsel %vm1137, %v1092, %v1158
      %1164 = vst [vmem:[%s226] sm:$0xff] %v1138
      %1165 = vst [vmem:[%s226 + $0x8] sm:$0xff] %v1145
      %1166 = vst [vmem:[%s226 + $0x10] sm:$0xff] %v1152
      %1167 = vst [vmem:[%s226 + $0x18] sm:$0xff] %v1159
      %s1168 = smul.u32 4, %s16
      %p1169 = scmp.lt.s32.totalorder %s1168, 7
      %s1170 = scalar_select %p1169, %s1168, 7
      %s1171 = smul.addr %s1170, 8
      %s1172 = scalar_lea.vmem %s5, %s1171
      // Predicated region
      $region41: #{pointnet2_backbone_forward.6} parent=39 // pred_check
        %p1173 = pneg %p144
      $region42: #{pointnet2_backbone_forward.6} parent=39 // pred_check_branch
        %1175 = sbr.rel (%p1173) target = $region44
      $region43: #{pointnet2_backbone_forward.6} parent=39 // pred_region
        %s1176 = smul.u32 4, %s16
      $region44: #{pointnet2_backbone_forward.6} parent=39 // pred_fallthru
        _
    $region40: #{pointnet2_backbone_forward.6} parent=5 // pred_fallthru
      _
    %p1177 = scmp.le.s32.totalorder 2, %s11
    // Predicated region
    $region45: #{pointnet2_backbone_forward.6} parent=5 // pred_check
      %p1178 = pneg %p1177
    $region46: #{pointnet2_backbone_forward.6} parent=5 // pred_check_branch
      %1180 = sbr.rel (%p1178) target = $region48
    $region47: #{pointnet2_backbone_forward.6} parent=5 // pred_region
      %s1181 = ssub.s32 %s11, 2
      // Predicated region
      $region49: #{pointnet2_backbone_forward.6} parent=47 // pred_check
        %p1182 = pneg %p150
      $region50: #{pointnet2_backbone_forward.6} parent=47 // pred_check_branch
        %1184 = sbr.rel (%p1182) target = $region52
      $region51: #{pointnet2_backbone_forward.6} parent=47 // pred_region
        %s1185 = smul.u32 4, %s17
        %p1186 = scmp.lt.s32.totalorder %s1185, 7
        %s1187 = scalar_select %p1186, %s1185, 7
        %s1188 = smul.addr %s1187, 8
        %s1189 = scalar_lea.vmem %s5, %s1188
      $region52: #{pointnet2_backbone_forward.6} parent=47 // pred_fallthru
        _
    $region48: #{pointnet2_backbone_forward.6} parent=5 // pred_fallthru
      _
  $region6: #{pointnet2_backbone_forward.6} parent=0 // loop_footer
    %s15 = sadd.s32 1, %s11
  $region7: #{pointnet2_backbone_forward.6} parent=0 // loop_footer_branch
    %10 = sbr.rel target = $region3
  $region8: #{pointnet2_backbone_forward.6} parent=0 // loop_exit
    _

// kernel: pointnet2_backbone_forward.7
$region0: #{pointnet2_backbone_forward.7}
  #allocation0 [shape = 'u32[]', space=smem, size = 0x4, offset = 0x4, fixed_abs, tag = 'smem constant byte address 0x4 - core index']
  #allocation1 [shape = 'u32[144,128]{1,0:T(1,128)}', space=vmem, size = 0x12000, scoped, tag = 'internal scratch']
  %s0 = inlined_call_operand.vmem [shape: bf16[1024,128], index: 0, kind: input, shape index: {}]
  %s1 = inlined_call_operand.vmem [shape: bf16[128,128], index: 1, kind: input, shape index: {}]
  %s2 = inlined_call_operand.vmem [shape: f32[1,128], index: 2, kind: input, shape index: {}]
  %s3 = inlined_call_operand.vmem [shape: bf16[128,128], index: 3, kind: input, shape index: {}]
  %s4 = inlined_call_operand.vmem [shape: f32[1,128], index: 4, kind: input, shape index: {}]
  %s5 = inlined_call_operand.vmem [shape: f32[64,128], index: 5, kind: output, shape index: {}]
  %s6 = sld [smem:[#allocation0]]
  $region53: #{pointnet2_backbone_forward.7} parent=0
    _
  %s8 = ssub.s32 1, %s6
  %s9 = scalar_select 0, %s8, %s6
  loop: start=0, step=1, limit=4
  $region2: #{pointnet2_backbone_forward.7} parent=0 // loop_pre_header
    _
  $region3: #{pointnet2_backbone_forward.7} parent=0 // loop_header
    %s11 = sphi 0, %s15
    %p12 = scmp.ge.s32.totalorder %s11, 4
    %s21 = sphi 0, %s23
    %s24 = sphi 0, %s21
    %s25 = sphi 0, %s24
    %s41 = sphi 0, %s25
    %s45 = sphi 0, %s45
    %s47 = sphi 0, %s45
    %s48 = sphi 0, %s47
    %s62 = sphi 0, %s48
    %s66 = sphi 0, %s66
    %s68 = sphi 0, %s66
    %s69 = sphi 0, %s68
    %s83 = sphi 0, %s69
    %s87 = sphi 0, %s87
    %s89 = sphi 0, %s87
    %s90 = sphi 0, %s89
    %s104 = sphi 0, %s90
    %s108 = sphi 0, %s108
    %s110 = sphi 0, %s108
    %s111 = sphi 0, %s110
    %s125 = sphi 0, %s111
    %s131 = sphi 0, %s133
    %s134 = sphi 0, %s131
    %s135 = sphi 0, %s134
    %s151 = sphi 0, %s135
  $region4: #{pointnet2_backbone_forward.7} parent=0 // loop_header_branch
    %14 = sbr.rel (%p12) target = $region8
  $region5: #{pointnet2_backbone_forward.7} parent=0 // loop_body
    %s16 = ssub.s32 %s11, 1
    %s17 = ssub.s32 %s11, 2
    %s18 = sadd.s32 %s11, 1
    %s19 = ssub.s32 %s11, %s18
    %p20 = scmp.eq.s32.totalorder %s19, 0
    %s22 = sadd.s32 %s21, 1
    %s23 = scalar_select %p20, %s21, %s22
    %p26 = pneg %p20
    %p27 = scmp.eq.s32.totalorder %s11, 1
    %p28 = por %p26, %p27
    %p29 = scmp.ne.s32.totalorder %s21, %s24
    %p30 = scmp.eq.s32.totalorder %s11, 0
    %p31 = por %p29, %p30
    %p32 = scmp.ne.s32.totalorder %s21, %s24
    %p33 = scmp.eq.s32.totalorder %s16, 1
    %p34 = por %p32, %p33
    %p35 = scmp.ne.s32.totalorder %s24, %s25
    %p36 = scmp.eq.s32.totalorder %s16, 0
    %p37 = por %p35, %p36
    %p38 = scmp.ne.s32.totalorder %s24, %s25
    %p39 = scmp.eq.s32.totalorder %s17, 1
    %p40 = por %p38, %p39
    %p42 = scmp.ne.s32.totalorder %s25, %s41
    %p43 = scmp.eq.s32.totalorder %s17, 0
    %p44 = por %p42, %p43
    %s46 = sadd.s32 %s45, 1
    %p49 = scmp.eq.s32.totalorder %s11, 1
    %p50 = scmp.ne.s32.totalorder %s45, %s47
    %p51 = scmp.eq.s32.totalorder %s11, 0
    %p52 = por %p50, %p51
    %p53 = scmp.ne.s32.totalorder %s45, %s47
    %p54 = scmp.eq.s32.totalorder %s16, 1
    %p55 = por %p53, %p54
    %p56 = scmp.ne.s32.totalorder %s47, %s48
    %p57 = scmp.eq.s32.totalorder %s16, 0
    %p58 = por %p56, %p57
    %p59 = scmp.ne.s32.totalorder %s47, %s48
    %p60 = scmp.eq.s32.totalorder %s17, 1
    %p61 = por %p59, %p60
    %p63 = scmp.ne.s32.totalorder %s48, %s62
    %p64 = scmp.eq.s32.totalorder %s17, 0
    %p65 = por %p63, %p64
    %s67 = sadd.s32 %s66, 1
    %p70 = scmp.eq.s32.totalorder %s11, 1
    %p71 = scmp.ne.s32.totalorder %s66, %s68
    %p72 = scmp.eq.s32.totalorder %s11, 0
    %p73 = por %p71, %p72
    %p74 = scmp.ne.s32.totalorder %s66, %s68
    %p75 = scmp.eq.s32.totalorder %s16, 1
    %p76 = por %p74, %p75
    %p77 = scmp.ne.s32.totalorder %s68, %s69
    %p78 = scmp.eq.s32.totalorder %s16, 0
    %p79 = por %p77, %p78
    %p80 = scmp.ne.s32.totalorder %s68, %s69
    %p81 = scmp.eq.s32.totalorder %s17, 1
    %p82 = por %p80, %p81
    %p84 = scmp.ne.s32.totalorder %s69, %s83
    %p85 = scmp.eq.s32.totalorder %s17, 0
    %p86 = por %p84, %p85
    %s88 = sadd.s32 %s87, 1
    %p91 = scmp.eq.s32.totalorder %s11, 1
    %p92 = scmp.ne.s32.totalorder %s87, %s89
    %p93 = scmp.eq.s32.totalorder %s11, 0
    %p94 = por %p92, %p93
    %p95 = scmp.ne.s32.totalorder %s87, %s89
    %p96 = scmp.eq.s32.totalorder %s16, 1
    %p97 = por %p95, %p96
    %p98 = scmp.ne.s32.totalorder %s89, %s90
    %p99 = scmp.eq.s32.totalorder %s16, 0
    %p100 = por %p98, %p99
    %p101 = scmp.ne.s32.totalorder %s89, %s90
    %p102 = scmp.eq.s32.totalorder %s17, 1
    %p103 = por %p101, %p102
    %p105 = scmp.ne.s32.totalorder %s90, %s104
    %p106 = scmp.eq.s32.totalorder %s17, 0
    %p107 = por %p105, %p106
    %s109 = sadd.s32 %s108, 1
    %p112 = scmp.eq.s32.totalorder %s11, 1
    %p113 = scmp.ne.s32.totalorder %s108, %s110
    %p114 = scmp.eq.s32.totalorder %s11, 0
    %p115 = por %p113, %p114
    %p116 = scmp.ne.s32.totalorder %s108, %s110
    %p117 = scmp.eq.s32.totalorder %s16, 1
    %p118 = por %p116, %p117
    %p119 = scmp.ne.s32.totalorder %s110, %s111
    %p120 = scmp.eq.s32.totalorder %s16, 0
    %p121 = por %p119, %p120
    %p122 = scmp.ne.s32.totalorder %s110, %s111
    %p123 = scmp.eq.s32.totalorder %s17, 1
    %p124 = por %p122, %p123
    %p126 = scmp.ne.s32.totalorder %s111, %s125
    %p127 = scmp.eq.s32.totalorder %s17, 0
    %p128 = por %p126, %p127
    %s129 = ssub.s32 %s11, %s18
    %p130 = scmp.eq.s32.totalorder %s129, 0
    %s132 = sadd.s32 %s131, 1
    %s133 = scalar_select %p130, %s131, %s132
    %p136 = pneg %p130
    %p137 = scmp.eq.s32.totalorder %s11, 1
    %p138 = por %p136, %p137
    %p139 = scmp.ne.s32.totalorder %s131, %s134
    %p140 = scmp.eq.s32.totalorder %s11, 0
    %p141 = por %p139, %p140
    %p142 = scmp.ne.s32.totalorder %s131, %s134
    %p143 = scmp.eq.s32.totalorder %s16, 1
    %p144 = por %p142, %p143
    %p145 = scmp.ne.s32.totalorder %s134, %s135
    %p146 = scmp.eq.s32.totalorder %s16, 0
    %p147 = por %p145, %p146
    %p148 = scmp.ne.s32.totalorder %s134, %s135
    %p149 = scmp.eq.s32.totalorder %s17, 1
    %p150 = por %p148, %p149
    %p152 = scmp.ne.s32.totalorder %s135, %s151
    %p153 = scmp.eq.s32.totalorder %s17, 0
    %p154 = por %p152, %p153
    %p155 = scmp.le.s32.totalorder 1, %s11
    %p156 = scmp.lt.s32.totalorder %s11, 3
    %p157 = pnand %p155, %p156
    %p158 = pneg %p157
    // Predicated region
    $region9: #{pointnet2_backbone_forward.7} parent=5 // pred_check
      _
    $region10: #{pointnet2_backbone_forward.7} parent=5 // pred_check_branch
      %160 = sbr.rel (%p157) target = $region12
    $region11: #{pointnet2_backbone_forward.7} parent=5 // pred_region
      %s161 = ssub.s32 %s11, 1
      // Predicated region
      $region13: #{pointnet2_backbone_forward.7} parent=11 // pred_check
        %p162 = pneg %p58
      $region14: #{pointnet2_backbone_forward.7} parent=11 // pred_check_branch
        %164 = sbr.rel (%p162) target = $region16
      $region15: #{pointnet2_backbone_forward.7} parent=11 // pred_region
        _
      $region16: #{pointnet2_backbone_forward.7} parent=11 // pred_fallthru
        _
      // Predicated region
      $region17: #{pointnet2_backbone_forward.7} parent=11 // pred_check
        %p165 = pneg %p79
      $region18: #{pointnet2_backbone_forward.7} parent=11 // pred_check_branch
        %167 = sbr.rel (%p165) target = $region20
      $region19: #{pointnet2_backbone_forward.7} parent=11 // pred_region
        _
      $region20: #{pointnet2_backbone_forward.7} parent=11 // pred_fallthru
        _
      // Predicated region
      $region21: #{pointnet2_backbone_forward.7} parent=11 // pred_check
        %p168 = pneg %p100
      $region22: #{pointnet2_backbone_forward.7} parent=11 // pred_check_branch
        %170 = sbr.rel (%p168) target = $region24
      $region23: #{pointnet2_backbone_forward.7} parent=11 // pred_region
        _
      $region24: #{pointnet2_backbone_forward.7} parent=11 // pred_fallthru
        _
      // Predicated region
      $region25: #{pointnet2_backbone_forward.7} parent=11 // pred_check
        %p171 = pneg %p121
      $region26: #{pointnet2_backbone_forward.7} parent=11 // pred_check_branch
        %173 = sbr.rel (%p171) target = $region28
      $region27: #{pointnet2_backbone_forward.7} parent=11 // pred_region
        _
      $region28: #{pointnet2_backbone_forward.7} parent=11 // pred_fallthru
        _
    $region12: #{pointnet2_backbone_forward.7} parent=5 // pred_fallthru
      _
    %p174 = scmp.lt.s32.totalorder %s11, 2
    // Predicated region
    $region29: #{pointnet2_backbone_forward.7} parent=5 // pred_check
      %p175 = pneg %p174
    $region30: #{pointnet2_backbone_forward.7} parent=5 // pred_check_branch
      %177 = sbr.rel (%p175) target = $region32
    $region31: #{pointnet2_backbone_forward.7} parent=5 // pred_region
      // Predicated region
      $region33: #{pointnet2_backbone_forward.7} parent=31 // pred_check
        %p178 = pneg %p31
      $region34: #{pointnet2_backbone_forward.7} parent=31 // pred_check_branch
        %180 = sbr.rel (%p178) target = $region36
      $region35: #{pointnet2_backbone_forward.7} parent=31 // pred_region
        %s181 = smul.u32 64, %s11
        %p182 = scmp.lt.s32.totalorder %s181, 127
        %s183 = scalar_select %p182, %s181, 127
        %s184 = smul.addr %s183, 4
        %s185 = scalar_lea.vmem %s0, %s184
        %s186 = smul.u32 64, %s11
      $region36: #{pointnet2_backbone_forward.7} parent=31 // pred_fallthru
        _
    $region32: #{pointnet2_backbone_forward.7} parent=5 // pred_fallthru
      _
    %p187 = scmp.le.s32.totalorder 1, %s11
    %p188 = scmp.lt.s32.totalorder %s11, 3
    %p189 = pnand %p187, %p188
    %p190 = pneg %p189
    // Predicated region
    $region37: #{pointnet2_backbone_forward.7} parent=5 // pred_check
      _
    $region38: #{pointnet2_backbone_forward.7} parent=5 // pred_check_branch
      %192 = sbr.rel (%p189) target = $region40
    $region39: #{pointnet2_backbone_forward.7} parent=5 // pred_region
      %s193 = ssub.s32 %s11, 1
      %s194 = smul.u32 64, %s16
      %p195 = scmp.lt.s32.totalorder %s194, 127
      %s196 = scalar_select %p195, %s194, 127
      %s197 = smul.addr %s196, 4
      %s198 = scalar_lea.vmem %s0, %s197
      %p199 = pneg %p37
      %p200 = pneg %p34
      %p201 = pneg %p58
      %p202 = pneg %p55
      %p203 = pneg %p79
      %p204 = pneg %p76
      %p205 = pneg %p100
      %p206 = pneg %p97
      %p207 = pneg %p121
      %p208 = pneg %p118
      %p209 = pneg %p147
      %p210 = pneg %p144
      %s211 = smul.u32 4, %s16
      %p212 = scmp.lt.s32.totalorder %s211, 7
      %s213 = scalar_select %p212, %s211, 7
      %s214 = smul.addr %s213, 8
      %s215 = scalar_lea.vmem %s5, %s214
      %s216 = smul.u32 64, %s16
      %p217 = scmp.lt.s32.totalorder %s216, 127
      %s218 = scalar_select %p217, %s216, 127
      %s219 = smul.addr %s218, 4
      %s220 = scalar_lea.vmem %s0, %s219
      %s221 = smul.u32 64, %s16
      %s222 = smul.u32 4, %s16
      %p223 = scmp.lt.s32.totalorder %s222, 7
      %s224 = scalar_select %p223, %s222, 7
      %s225 = smul.addr %s224, 8
      %s226 = scalar_lea.vmem %s5, %s225
      %s227 = smul.u32 4, %s16
      %v229 = vld [vmem:[%s220] sm:$0xf]
      %v230 = vld [vmem:[%s220 + $0x4] sm:$0xf]
      %v231 = vld [vmem:[%s220 + $0x8] sm:$0xf]
      %v232 = vld [vmem:[%s220 + $0xc] sm:$0xf]
      %v233 = vld [vmem:[%s220 + $0x10] sm:$0xf]
      %v234 = vld [vmem:[%s220 + $0x14] sm:$0xf]
      %v235 = vld [vmem:[%s220 + $0x18] sm:$0xf]
      %v236 = vld [vmem:[%s220 + $0x1c] sm:$0xf]
      %v237 = vld [vmem:[%s220 + $0x20] sm:$0xf]
      %v238 = vld [vmem:[%s220 + $0x24] sm:$0xf]
      %v239 = vld [vmem:[%s220 + $0x28] sm:$0xf]
      %v240 = vld [vmem:[%s220 + $0x2c] sm:$0xf]
      %v241 = vld [vmem:[%s220 + $0x30] sm:$0xf]
      %v242 = vld [vmem:[%s220 + $0x34] sm:$0xf]
      %v243 = vld [vmem:[%s220 + $0x38] sm:$0xf]
      %v244 = vld [vmem:[%s220 + $0x3c] sm:$0xf]
      %v245 = vld [vmem:[%s220 + $0x40] sm:$0xf]
      %v246 = vld [vmem:[%s220 + $0x44] sm:$0xf]
      %v247 = vld [vmem:[%s220 + $0x48] sm:$0xf]
      %v248 = vld [vmem:[%s220 + $0x4c] sm:$0xf]
      %v249 = vld [vmem:[%s220 + $0x50] sm:$0xf]
      %v250 = vld [vmem:[%s220 + $0x54] sm:$0xf]
      %v251 = vld [vmem:[%s220 + $0x58] sm:$0xf]
      %v252 = vld [vmem:[%s220 + $0x5c] sm:$0xf]
      %v253 = vld [vmem:[%s220 + $0x60] sm:$0xf]
      %v254 = vld [vmem:[%s220 + $0x64] sm:$0xf]
      %v255 = vld [vmem:[%s220 + $0x68] sm:$0xf]
      %v256 = vld [vmem:[%s220 + $0x6c] sm:$0xf]
      %v257 = vld [vmem:[%s220 + $0x70] sm:$0xf]
      %v258 = vld [vmem:[%s220 + $0x74] sm:$0xf]
      %v259 = vld [vmem:[%s220 + $0x78] sm:$0xf]
      %v260 = vld [vmem:[%s220 + $0x7c] sm:$0xf]
      %v261 = vld [vmem:[%s220 + $0x80] sm:$0xf]
      %v262 = vld [vmem:[%s220 + $0x84] sm:$0xf]
      %v263 = vld [vmem:[%s220 + $0x88] sm:$0xf]
      %v264 = vld [vmem:[%s220 + $0x8c] sm:$0xf]
      %v265 = vld [vmem:[%s220 + $0x90] sm:$0xf]
      %v266 = vld [vmem:[%s220 + $0x94] sm:$0xf]
      %v267 = vld [vmem:[%s220 + $0x98] sm:$0xf]
      %v268 = vld [vmem:[%s220 + $0x9c] sm:$0xf]
      %v269 = vld [vmem:[%s220 + $0xa0] sm:$0xf]
      %v270 = vld [vmem:[%s220 + $0xa4] sm:$0xf]
      %v271 = vld [vmem:[%s220 + $0xa8] sm:$0xf]
      %v272 = vld [vmem:[%s220 + $0xac] sm:$0xf]
      %v273 = vld [vmem:[%s220 + $0xb0] sm:$0xf]
      %v274 = vld [vmem:[%s220 + $0xb4] sm:$0xf]
      %v275 = vld [vmem:[%s220 + $0xb8] sm:$0xf]
      %v276 = vld [vmem:[%s220 + $0xbc] sm:$0xf]
      %v277 = vld [vmem:[%s220 + $0xc0] sm:$0xf]
      %v278 = vld [vmem:[%s220 + $0xc4] sm:$0xf]
      %v279 = vld [vmem:[%s220 + $0xc8] sm:$0xf]
      %v280 = vld [vmem:[%s220 + $0xcc] sm:$0xf]
      %v281 = vld [vmem:[%s220 + $0xd0] sm:$0xf]
      %v282 = vld [vmem:[%s220 + $0xd4] sm:$0xf]
      %v283 = vld [vmem:[%s220 + $0xd8] sm:$0xf]
      %v284 = vld [vmem:[%s220 + $0xdc] sm:$0xf]
      %v285 = vld [vmem:[%s220 + $0xe0] sm:$0xf]
      %v286 = vld [vmem:[%s220 + $0xe4] sm:$0xf]
      %v287 = vld [vmem:[%s220 + $0xe8] sm:$0xf]
      %v288 = vld [vmem:[%s220 + $0xec] sm:$0xf]
      %v289 = vld [vmem:[%s220 + $0xf0] sm:$0xf]
      %v290 = vld [vmem:[%s220 + $0xf4] sm:$0xf]
      %v291 = vld [vmem:[%s220 + $0xf8] sm:$0xf]
      %v292 = vld [vmem:[%s220 + $0xfc] sm:$0xf]
      %v293 = vld [vmem:[%s1] sm:$0xf]
      %v294 = vld [vmem:[%s1 + $0x4] sm:$0xf]
      %v295 = vld [vmem:[%s1 + $0x8] sm:$0xf]
      %v296 = vld [vmem:[%s1 + $0xc] sm:$0xf]
      %v297 = vld [vmem:[%s1 + $0x10] sm:$0xf]
      %v298 = vld [vmem:[%s1 + $0x14] sm:$0xf]
      %v299 = vld [vmem:[%s1 + $0x18] sm:$0xf]
      %v300 = vld [vmem:[%s1 + $0x1c] sm:$0xf]
      %v301 = vld [vmem:[%s1 + $0x20] sm:$0xf]
      %v302 = vld [vmem:[%s1 + $0x24] sm:$0xf]
      %v303 = vld [vmem:[%s1 + $0x28] sm:$0xf]
      %v304 = vld [vmem:[%s1 + $0x2c] sm:$0xf]
      %v305 = vld [vmem:[%s1 + $0x30] sm:$0xf]
      %v306 = vld [vmem:[%s1 + $0x34] sm:$0xf]
      %v307 = vld [vmem:[%s1 + $0x38] sm:$0xf]
      %v308 = vld [vmem:[%s1 + $0x3c] sm:$0xf]
      %v309 = vld [vmem:[%s2] sm:$0x1]
      %v311 = vlaneseq
      %v312 = vshrl.u32 %v311, 7
      %v313 = vsub.s32 0, %v312
      %v314 = vrot.slane %v309, %v313
      %v380 = vunpack.c.l.b16 %v229
      %v381 = vunpack.c.l.b16 %v230
      %v382 = vunpack.c.l.b16 %v231
      %v383 = vunpack.c.l.b16 %v232
      %v384 = vunpack.c.l.b16 %v233
      %v385 = vunpack.c.l.b16 %v234
      %v386 = vunpack.c.l.b16 %v235
      %v387 = vunpack.c.l.b16 %v236
      %v388 = vunpack.c.l.b16 %v237
      %v389 = vunpack.c.l.b16 %v238
      %v390 = vunpack.c.l.b16 %v239
      %v391 = vunpack.c.l.b16 %v240
      %v392 = vunpack.c.l.b16 %v241
      %v393 = vunpack.c.l.b16 %v242
      %v394 = vunpack.c.l.b16 %v243
      %v395 = vunpack.c.l.b16 %v244
      %v396 = vunpack.c.l.b16 %v245
      %v397 = vunpack.c.l.b16 %v246
      %v398 = vunpack.c.l.b16 %v247
      %v399 = vunpack.c.l.b16 %v248
      %v400 = vunpack.c.l.b16 %v249
      %v401 = vunpack.c.l.b16 %v250
      %v402 = vunpack.c.l.b16 %v251
      %v403 = vunpack.c.l.b16 %v252
      %v404 = vunpack.c.l.b16 %v253
      %v405 = vunpack.c.l.b16 %v254
      %v406 = vunpack.c.l.b16 %v255
      %v407 = vunpack.c.l.b16 %v256
      %v408 = vunpack.c.l.b16 %v257
      %v409 = vunpack.c.l.b16 %v258
      %v410 = vunpack.c.l.b16 %v259
      %v411 = vunpack.c.l.b16 %v260
      %v412 = vunpack.c.l.b16 %v261
      %v413 = vunpack.c.l.b16 %v262
      %v414 = vunpack.c.l.b16 %v263
      %v415 = vunpack.c.l.b16 %v264
      %v416 = vunpack.c.l.b16 %v265
      %v417 = vunpack.c.l.b16 %v266
      %v418 = vunpack.c.l.b16 %v267
      %v419 = vunpack.c.l.b16 %v268
      %v420 = vunpack.c.l.b16 %v269
      %v421 = vunpack.c.l.b16 %v270
      %v422 = vunpack.c.l.b16 %v271
      %v423 = vunpack.c.l.b16 %v272
      %v424 = vunpack.c.l.b16 %v273
      %v425 = vunpack.c.l.b16 %v274
      %v426 = vunpack.c.l.b16 %v275
      %v427 = vunpack.c.l.b16 %v276
      %v428 = vunpack.c.l.b16 %v277
      %v429 = vunpack.c.l.b16 %v278
      %v430 = vunpack.c.l.b16 %v279
      %v431 = vunpack.c.l.b16 %v280
      %v432 = vunpack.c.l.b16 %v281
      %v433 = vunpack.c.l.b16 %v282
      %v434 = vunpack.c.l.b16 %v283
      %v435 = vunpack.c.l.b16 %v284
      %v436 = vunpack.c.l.b16 %v285
      %v437 = vunpack.c.l.b16 %v286
      %v438 = vunpack.c.l.b16 %v287
      %v439 = vunpack.c.l.b16 %v288
      %v440 = vunpack.c.l.b16 %v289
      %v441 = vunpack.c.l.b16 %v290
      %v442 = vunpack.c.l.b16 %v291
      %v443 = vunpack.c.l.b16 %v292
      %v444 = vpack.c.b16 %v381, %v380
      %v445 = vpack.c.b16 %v383, %v382
      %v446 = vpack.c.b16 %v385, %v384
      %v447 = vpack.c.b16 %v387, %v386
      %v448 = vpack.c.b16 %v389, %v388
      %v449 = vpack.c.b16 %v391, %v390
      %v450 = vpack.c.b16 %v393, %v392
      %v451 = vpack.c.b16 %v395, %v394
      %v452 = vpack.c.b16 %v397, %v396
      %v453 = vpack.c.b16 %v399, %v398
      %v454 = vpack.c.b16 %v401, %v400
      %v455 = vpack.c.b16 %v403, %v402
      %v456 = vpack.c.b16 %v405, %v404
      %v457 = vpack.c.b16 %v407, %v406
      %v458 = vpack.c.b16 %v409, %v408
      %v459 = vpack.c.b16 %v411, %v410
      %v460 = vpack.c.b16 %v413, %v412
      %v461 = vpack.c.b16 %v415, %v414
      %v462 = vpack.c.b16 %v417, %v416
      %v463 = vpack.c.b16 %v419, %v418
      %v464 = vpack.c.b16 %v421, %v420
      %v465 = vpack.c.b16 %v423, %v422
      %v466 = vpack.c.b16 %v425, %v424
      %v467 = vpack.c.b16 %v427, %v426
      %v468 = vpack.c.b16 %v429, %v428
      %v469 = vpack.c.b16 %v431, %v430
      %v470 = vpack.c.b16 %v433, %v432
      %v471 = vpack.c.b16 %v435, %v434
      %v472 = vpack.c.b16 %v437, %v436
      %v473 = vpack.c.b16 %v439, %v438
      %v474 = vpack.c.b16 %v441, %v440
      %v475 = vpack.c.b16 %v443, %v442
      %v524 = vunpack.c.l.b16 %v293
      %v525 = vunpack.c.l.b16 %v294
      %v526 = vunpack.c.l.b16 %v295
      %v527 = vunpack.c.l.b16 %v296
      %v528 = vunpack.c.l.b16 %v297
      %v529 = vunpack.c.l.b16 %v298
      %v530 = vunpack.c.l.b16 %v299
      %v531 = vunpack.c.l.b16 %v300
      %v532 = vunpack.c.l.b16 %v301
      %v533 = vunpack.c.l.b16 %v302
      %v534 = vunpack.c.l.b16 %v303
      %v535 = vunpack.c.l.b16 %v304
      %v536 = vunpack.c.l.b16 %v305
      %v537 = vunpack.c.l.b16 %v306
      %v538 = vunpack.c.l.b16 %v307
      %v539 = vunpack.c.l.b16 %v308
      %v540 = vpack.c.b16 %v525, %v524
      %v541 = vpack.c.b16 %v527, %v526
      %v542 = vpack.c.b16 %v529, %v528
      %v543 = vpack.c.b16 %v531, %v530
      %v544 = vpack.c.b16 %v533, %v532
      %v545 = vpack.c.b16 %v535, %v534
      %v546 = vpack.c.b16 %v537, %v536
      %v547 = vpack.c.b16 %v539, %v538
      %556 = vmatprep.subr.bf16.mxu0 0
      %557 = vmatpush1.bf16.msra.mxu0 %v540
      %558 = vmatprep.subr.bf16.mxu0 0
      %559 = vmatpush1.bf16.msra.mxu0 %v541
      %560 = vmatprep.subr.bf16.mxu0 0
      %561 = vmatpush1.bf16.msra.mxu0 %v542
      %562 = vmatprep.subr.bf16.mxu0 0
      %563 = vmatpush1.bf16.msra.mxu0 %v543
      %564 = vmatprep.subr.bf16.mxu0 0
      %565 = vmatpush1.bf16.msra.mxu0 %v544
      %566 = vmatprep.subr.bf16.mxu0 0
      %567 = vmatpush1.bf16.msra.mxu0 %v545
      %568 = vmatprep.subr.bf16.mxu0 0
      %569 = vmatpush1.bf16.msra.mxu0 %v546
      %570 = vmatprep.subr.bf16.mxu0 0
      %571 = vmatpush1.bf16.msra.mxu0 %v547
      %572 = vmatprep.subr.bf16.mxu0 0
      %573 = vmatpush1.bf16.msra.mxu0 0
      %574 = vmatprep.subr.bf16.mxu0 0
      %575 = vmatpush1.bf16.msra.mxu0 0
      %576 = vmatprep.subr.bf16.mxu0 0
      %577 = vmatpush1.bf16.msra.mxu0 0
      %578 = vmatprep.subr.bf16.mxu0 0
      %579 = vmatpush1.bf16.msra.mxu0 0
      %580 = vmatprep.subr.bf16.mxu0 0
      %581 = vmatpush1.bf16.msra.mxu0 0
      %582 = vmatprep.subr.bf16.mxu0 0
      %583 = vmatpush1.bf16.msra.mxu0 0
      %584 = vmatprep.subr.bf16.mxu0 0
      %585 = vmatpush1.bf16.msra.mxu0 0
      %586 = vmatprep.subr.bf16.mxu0 0
      %587 = vmatpush1.bf16.msra.mxu0 0
      %588 = vmatprep.mubr.bf16.mxu0 0
      %589 = vmatmul.mubr.bf16.gmra.mrb[0].mxu0 %v444
      %v590 = vpop.f32.mrb[0].mxu0
      %v591 = vadd.f32 %v314, %v590
      %v592 = vpop.f32.mrb[0].mxu0
      %v593 = vpop.f32.mrb[0].mxu0
      %v594 = vadd.f32 %v314, %v593
      %v595 = vpop.f32.mrb[0].mxu0
      %596 = vmatprep.mubr.bf16.mxu0 0
      %597 = vmatmul.mubr.bf16.gmra.mrb[0].mxu0 %v445
      %v598 = vpop.f32.mrb[0].mxu0
      %v599 = vadd.f32 %v314, %v598
      %v600 = vpop.f32.mrb[0].mxu0
      %v601 = vpop.f32.mrb[0].mxu0
      %v602 = vadd.f32 %v314, %v601
      %v603 = vpop.f32.mrb[0].mxu0
      %604 = vmatprep.mubr.bf16.mxu0 0
      %605 = vmatmul.mubr.bf16.gmra.mrb[0].mxu0 %v446
      %v606 = vpop.f32.mrb[0].mxu0
      %v607 = vadd.f32 %v314, %v606
      %v608 = vpop.f32.mrb[0].mxu0
      %v609 = vpop.f32.mrb[0].mxu0
      %v610 = vadd.f32 %v314, %v609
      %v611 = vpop.f32.mrb[0].mxu0
      %612 = vmatprep.mubr.bf16.mxu0 0
      %613 = vmatmul.mubr.bf16.gmra.mrb[0].mxu0 %v447
      %v614 = vpop.f32.mrb[0].mxu0
      %v615 = vadd.f32 %v314, %v614
      %v616 = vpop.f32.mrb[0].mxu0
      %v617 = vpop.f32.mrb[0].mxu0
      %v618 = vadd.f32 %v314, %v617
      %v619 = vpop.f32.mrb[0].mxu0
      %620 = vmatprep.mubr.bf16.mxu0 0
      %621 = vmatmul.mubr.bf16.gmra.mrb[0].mxu0 %v448
      %v622 = vpop.f32.mrb[0].mxu0
      %v623 = vadd.f32 %v314, %v622
      %v624 = vpop.f32.mrb[0].mxu0
      %v625 = vpop.f32.mrb[0].mxu0
      %v626 = vadd.f32 %v314, %v625
      %v627 = vpop.f32.mrb[0].mxu0
      %628 = vmatprep.mubr.bf16.mxu0 0
      %629 = vmatmul.mubr.bf16.gmra.mrb[0].mxu0 %v449
      %v630 = vpop.f32.mrb[0].mxu0
      %v631 = vadd.f32 %v314, %v630
      %v632 = vpop.f32.mrb[0].mxu0
      %v633 = vpop.f32.mrb[0].mxu0
      %v634 = vadd.f32 %v314, %v633
      %v635 = vpop.f32.mrb[0].mxu0
      %636 = vmatprep.mubr.bf16.mxu0 0
      %637 = vmatmul.mubr.bf16.gmra.mrb[0].mxu0 %v450
      %v638 = vpop.f32.mrb[0].mxu0
      %v639 = vadd.f32 %v314, %v638
      %v640 = vpop.f32.mrb[0].mxu0
      %v641 = vpop.f32.mrb[0].mxu0
      %v642 = vadd.f32 %v314, %v641
      %v643 = vpop.f32.mrb[0].mxu0
      %644 = vmatprep.mubr.bf16.mxu0 0
      %645 = vmatmul.mubr.bf16.gmra.mrb[0].mxu0 %v451
      %v646 = vpop.f32.mrb[0].mxu0
      %v647 = vadd.f32 %v314, %v646
      %v648 = vpop.f32.mrb[0].mxu0
      %v649 = vpop.f32.mrb[0].mxu0
      %v650 = vadd.f32 %v314, %v649
      %v651 = vpop.f32.mrb[0].mxu0
      %652 = vmatprep.mubr.bf16.mxu0 0
      %653 = vmatmul.mubr.bf16.gmra.mrb[0].mxu0 %v452
      %v654 = vpop.f32.mrb[0].mxu0
      %v655 = vadd.f32 %v314, %v654
      %v656 = vpop.f32.mrb[0].mxu0
      %v657 = vpop.f32.mrb[0].mxu0
      %v658 = vadd.f32 %v314, %v657
      %v659 = vpop.f32.mrb[0].mxu0
      %660 = vmatprep.mubr.bf16.mxu0 0
      %661 = vmatmul.mubr.bf16.gmra.mrb[0].mxu0 %v453
      %v662 = vpop.f32.mrb[0].mxu0
      %v663 = vadd.f32 %v314, %v662
      %v664 = vpop.f32.mrb[0].mxu0
      %v665 = vpop.f32.mrb[0].mxu0
      %v666 = vadd.f32 %v314, %v665
      %v667 = vpop.f32.mrb[0].mxu0
      %668 = vmatprep.mubr.bf16.mxu0 0
      %669 = vmatmul.mubr.bf16.gmra.mrb[0].mxu0 %v454
      %v670 = vpop.f32.mrb[0].mxu0
      %v671 = vadd.f32 %v314, %v670
      %v672 = vpop.f32.mrb[0].mxu0
      %v673 = vpop.f32.mrb[0].mxu0
      %v674 = vadd.f32 %v314, %v673
      %v675 = vpop.f32.mrb[0].mxu0
      %676 = vmatprep.mubr.bf16.mxu0 0
      %677 = vmatmul.mubr.bf16.gmra.mrb[0].mxu0 %v455
      %v678 = vpop.f32.mrb[0].mxu0
      %v679 = vadd.f32 %v314, %v678
      %v680 = vpop.f32.mrb[0].mxu0
      %v681 = vpop.f32.mrb[0].mxu0
      %v682 = vadd.f32 %v314, %v681
      %v683 = vpop.f32.mrb[0].mxu0
      %684 = vmatprep.mubr.bf16.mxu0 0
      %685 = vmatmul.mubr.bf16.gmra.mrb[0].mxu0 %v456
      %v686 = vpop.f32.mrb[0].mxu0
      %v687 = vadd.f32 %v314, %v686
      %v688 = vpop.f32.mrb[0].mxu0
      %v689 = vpop.f32.mrb[0].mxu0
      %v690 = vadd.f32 %v314, %v689
      %v691 = vpop.f32.mrb[0].mxu0
      %692 = vmatprep.mubr.bf16.mxu0 0
      %693 = vmatmul.mubr.bf16.gmra.mrb[0].mxu0 %v457
      %v694 = vpop.f32.mrb[0].mxu0
      %v695 = vadd.f32 %v314, %v694
      %v696 = vpop.f32.mrb[0].mxu0
      %v697 = vpop.f32.mrb[0].mxu0
      %v698 = vadd.f32 %v314, %v697
      %v699 = vpop.f32.mrb[0].mxu0
      %700 = vmatprep.mubr.bf16.mxu0 0
      %701 = vmatmul.mubr.bf16.gmra.mrb[0].mxu0 %v458
      %v702 = vpop.f32.mrb[0].mxu0
      %v703 = vadd.f32 %v314, %v702
      %v704 = vpop.f32.mrb[0].mxu0
      %v705 = vpop.f32.mrb[0].mxu0
      %v706 = vadd.f32 %v314, %v705
      %v707 = vpop.f32.mrb[0].mxu0
      %708 = vmatprep.mubr.bf16.mxu0 0
      %709 = vmatmul.mubr.bf16.gmra.mrb[0].mxu0 %v459
      %v710 = vpop.f32.mrb[0].mxu0
      %v711 = vadd.f32 %v314, %v710
      %v712 = vpop.f32.mrb[0].mxu0
      %v713 = vpop.f32.mrb[0].mxu0
      %v714 = vadd.f32 %v314, %v713
      %v715 = vpop.f32.mrb[0].mxu0
      %716 = vmatprep.mubr.bf16.mxu0 0
      %717 = vmatmul.mubr.bf16.gmra.mrb[0].mxu0 %v460
      %v718 = vpop.f32.mrb[0].mxu0
      %v719 = vadd.f32 %v314, %v718
      %v720 = vpop.f32.mrb[0].mxu0
      %v721 = vpop.f32.mrb[0].mxu0
      %v722 = vadd.f32 %v314, %v721
      %v723 = vpop.f32.mrb[0].mxu0
      %724 = vmatprep.mubr.bf16.mxu0 0
      %725 = vmatmul.mubr.bf16.gmra.mrb[0].mxu0 %v461
      %v726 = vpop.f32.mrb[0].mxu0
      %v727 = vadd.f32 %v314, %v726
      %v728 = vpop.f32.mrb[0].mxu0
      %v729 = vpop.f32.mrb[0].mxu0
      %v730 = vadd.f32 %v314, %v729
      %v731 = vpop.f32.mrb[0].mxu0
      %732 = vmatprep.mubr.bf16.mxu0 0
      %733 = vmatmul.mubr.bf16.gmra.mrb[0].mxu0 %v462
      %v734 = vpop.f32.mrb[0].mxu0
      %v735 = vadd.f32 %v314, %v734
      %v736 = vpop.f32.mrb[0].mxu0
      %v737 = vpop.f32.mrb[0].mxu0
      %v738 = vadd.f32 %v314, %v737
      %v739 = vpop.f32.mrb[0].mxu0
      %740 = vmatprep.mubr.bf16.mxu0 0
      %741 = vmatmul.mubr.bf16.gmra.mrb[0].mxu0 %v463
      %v742 = vpop.f32.mrb[0].mxu0
      %v743 = vadd.f32 %v314, %v742
      %v744 = vpop.f32.mrb[0].mxu0
      %v745 = vpop.f32.mrb[0].mxu0
      %v746 = vadd.f32 %v314, %v745
      %v747 = vpop.f32.mrb[0].mxu0
      %748 = vmatprep.mubr.bf16.mxu0 0
      %749 = vmatmul.mubr.bf16.gmra.mrb[0].mxu0 %v464
      %v750 = vpop.f32.mrb[0].mxu0
      %v751 = vadd.f32 %v314, %v750
      %v752 = vpop.f32.mrb[0].mxu0
      %v753 = vpop.f32.mrb[0].mxu0
      %v754 = vadd.f32 %v314, %v753
      %v755 = vpop.f32.mrb[0].mxu0
      %756 = vmatprep.mubr.bf16.mxu0 0
      %757 = vmatmul.mubr.bf16.gmra.mrb[0].mxu0 %v465
      %v758 = vpop.f32.mrb[0].mxu0
      %v759 = vadd.f32 %v314, %v758
      %v760 = vpop.f32.mrb[0].mxu0
      %v761 = vpop.f32.mrb[0].mxu0
      %v762 = vadd.f32 %v314, %v761
      %v763 = vpop.f32.mrb[0].mxu0
      %764 = vmatprep.mubr.bf16.mxu0 0
      %765 = vmatmul.mubr.bf16.gmra.mrb[0].mxu0 %v466
      %v766 = vpop.f32.mrb[0].mxu0
      %v767 = vadd.f32 %v314, %v766
      %v768 = vpop.f32.mrb[0].mxu0
      %v769 = vpop.f32.mrb[0].mxu0
      %v770 = vadd.f32 %v314, %v769
      %v771 = vpop.f32.mrb[0].mxu0
      %772 = vmatprep.mubr.bf16.mxu0 0
      %773 = vmatmul.mubr.bf16.gmra.mrb[0].mxu0 %v467
      %v774 = vpop.f32.mrb[0].mxu0
      %v775 = vadd.f32 %v314, %v774
      %v776 = vpop.f32.mrb[0].mxu0
      %v777 = vpop.f32.mrb[0].mxu0
      %v778 = vadd.f32 %v314, %v777
      %v779 = vpop.f32.mrb[0].mxu0
      %780 = vmatprep.mubr.bf16.mxu0 0
      %781 = vmatmul.mubr.bf16.gmra.mrb[0].mxu0 %v468
      %v782 = vpop.f32.mrb[0].mxu0
      %v783 = vadd.f32 %v314, %v782
      %v784 = vpop.f32.mrb[0].mxu0
      %v785 = vpop.f32.mrb[0].mxu0
      %v786 = vadd.f32 %v314, %v785
      %v787 = vpop.f32.mrb[0].mxu0
      %788 = vmatprep.mubr.bf16.mxu0 0
      %789 = vmatmul.mubr.bf16.gmra.mrb[0].mxu0 %v469
      %v790 = vpop.f32.mrb[0].mxu0
      %v791 = vadd.f32 %v314, %v790
      %v792 = vpop.f32.mrb[0].mxu0
      %v793 = vpop.f32.mrb[0].mxu0
      %v794 = vadd.f32 %v314, %v793
      %v795 = vpop.f32.mrb[0].mxu0
      %796 = vmatprep.mubr.bf16.mxu0 0
      %797 = vmatmul.mubr.bf16.gmra.mrb[0].mxu0 %v470
      %v798 = vpop.f32.mrb[0].mxu0
      %v799 = vadd.f32 %v314, %v798
      %v800 = vpop.f32.mrb[0].mxu0
      %v801 = vpop.f32.mrb[0].mxu0
      %v802 = vadd.f32 %v314, %v801
      %v803 = vpop.f32.mrb[0].mxu0
      %804 = vmatprep.mubr.bf16.mxu0 0
      %805 = vmatmul.mubr.bf16.gmra.mrb[0].mxu0 %v471
      %v806 = vpop.f32.mrb[0].mxu0
      %v807 = vadd.f32 %v314, %v806
      %v808 = vpop.f32.mrb[0].mxu0
      %v809 = vpop.f32.mrb[0].mxu0
      %v810 = vadd.f32 %v314, %v809
      %v811 = vpop.f32.mrb[0].mxu0
      %812 = vmatprep.mubr.bf16.mxu0 0
      %813 = vmatmul.mubr.bf16.gmra.mrb[0].mxu0 %v472
      %v814 = vpop.f32.mrb[0].mxu0
      %v815 = vadd.f32 %v314, %v814
      %v816 = vpop.f32.mrb[0].mxu0
      %v817 = vpop.f32.mrb[0].mxu0
      %v818 = vadd.f32 %v314, %v817
      %v819 = vpop.f32.mrb[0].mxu0
      %820 = vmatprep.mubr.bf16.mxu0 0
      %821 = vmatmul.mubr.bf16.gmra.mrb[0].mxu0 %v473
      %v822 = vpop.f32.mrb[0].mxu0
      %v823 = vadd.f32 %v314, %v822
      %v824 = vpop.f32.mrb[0].mxu0
      %v825 = vpop.f32.mrb[0].mxu0
      %v826 = vadd.f32 %v314, %v825
      %v827 = vpop.f32.mrb[0].mxu0
      %828 = vmatprep.mubr.bf16.mxu0 0
      %829 = vmatmul.mubr.bf16.gmra.mrb[0].mxu0 %v474
      %v830 = vpop.f32.mrb[0].mxu0
      %v831 = vadd.f32 %v314, %v830
      %v832 = vpop.f32.mrb[0].mxu0
      %v833 = vpop.f32.mrb[0].mxu0
      %v834 = vadd.f32 %v314, %v833
      %v835 = vpop.f32.mrb[0].mxu0
      %836 = vmatprep.mubr.bf16.mxu0 0
      %837 = vmatmul.mubr.bf16.gmra.mrb[0].mxu0 %v475
      %v838 = vpop.f32.mrb[0].mxu0
      %v839 = vadd.f32 %v314, %v838
      %v840 = vpop.f32.mrb[0].mxu0
      %v841 = vpop.f32.mrb[0].mxu0
      %v842 = vadd.f32 %v314, %v841
      %v843 = vpop.f32.mrb[0].mxu0
      %844 = vdwg.mxu0
      %v845 = vmax.f32 %v591, 0.0
      %v846 = vmax.f32 %v594, 0.0
      %v847 = vmax.f32 %v599, 0.0
      %v848 = vmax.f32 %v602, 0.0
      %v849 = vmax.f32 %v607, 0.0
      %v850 = vmax.f32 %v610, 0.0
      %v851 = vmax.f32 %v615, 0.0
      %v852 = vmax.f32 %v618, 0.0
      %v853 = vmax.f32 %v623, 0.0
      %v854 = vmax.f32 %v626, 0.0
      %v855 = vmax.f32 %v631, 0.0
      %v856 = vmax.f32 %v634, 0.0
      %v857 = vmax.f32 %v639, 0.0
      %v858 = vmax.f32 %v642, 0.0
      %v859 = vmax.f32 %v647, 0.0
      %v860 = vmax.f32 %v650, 0.0
      %v861 = vmax.f32 %v655, 0.0
      %v862 = vmax.f32 %v658, 0.0
      %v863 = vmax.f32 %v663, 0.0
      %v864 = vmax.f32 %v666, 0.0
      %v865 = vmax.f32 %v671, 0.0
      %v866 = vmax.f32 %v674, 0.0
      %v867 = vmax.f32 %v679, 0.0
      %v868 = vmax.f32 %v682, 0.0
      %v869 = vmax.f32 %v687, 0.0
      %v870 = vmax.f32 %v690, 0.0
      %v871 = vmax.f32 %v695, 0.0
      %v872 = vmax.f32 %v698, 0.0
      %v873 = vmax.f32 %v703, 0.0
      %v874 = vmax.f32 %v706, 0.0
      %v875 = vmax.f32 %v711, 0.0
      %v876 = vmax.f32 %v714, 0.0
      %v877 = vmax.f32 %v719, 0.0
      %v878 = vmax.f32 %v722, 0.0
      %v879 = vmax.f32 %v727, 0.0
      %v880 = vmax.f32 %v730, 0.0
      %v881 = vmax.f32 %v735, 0.0
      %v882 = vmax.f32 %v738, 0.0
      %v883 = vmax.f32 %v743, 0.0
      %v884 = vmax.f32 %v746, 0.0
      %v885 = vmax.f32 %v751, 0.0
      %v886 = vmax.f32 %v754, 0.0
      %v887 = vmax.f32 %v759, 0.0
      %v888 = vmax.f32 %v762, 0.0
      %v889 = vmax.f32 %v767, 0.0
      %v890 = vmax.f32 %v770, 0.0
      %v891 = vmax.f32 %v775, 0.0
      %v892 = vmax.f32 %v778, 0.0
      %v893 = vmax.f32 %v783, 0.0
      %v894 = vmax.f32 %v786, 0.0
      %v895 = vmax.f32 %v791, 0.0
      %v896 = vmax.f32 %v794, 0.0
      %v897 = vmax.f32 %v799, 0.0
      %v898 = vmax.f32 %v802, 0.0
      %v899 = vmax.f32 %v807, 0.0
      %v900 = vmax.f32 %v810, 0.0
      %v901 = vmax.f32 %v815, 0.0
      %v902 = vmax.f32 %v818, 0.0
      %v903 = vmax.f32 %v823, 0.0
      %v904 = vmax.f32 %v826, 0.0
      %v905 = vmax.f32 %v831, 0.0
      %v906 = vmax.f32 %v834, 0.0
      %v907 = vmax.f32 %v839, 0.0
      %v908 = vmax.f32 %v842, 0.0
      %v909 = vpack.c.bf16 %v846, %v845
      %v910 = vpack.c.bf16 %v848, %v847
      %v911 = vpack.c.bf16 %v850, %v849
      %v912 = vpack.c.bf16 %v852, %v851
      %v913 = vpack.c.bf16 %v854, %v853
      %v914 = vpack.c.bf16 %v856, %v855
      %v915 = vpack.c.bf16 %v858, %v857
      %v916 = vpack.c.bf16 %v860, %v859
      %v917 = vpack.c.bf16 %v862, %v861
      %v918 = vpack.c.bf16 %v864, %v863
      %v919 = vpack.c.bf16 %v866, %v865
      %v920 = vpack.c.bf16 %v868, %v867
      %v921 = vpack.c.bf16 %v870, %v869
      %v922 = vpack.c.bf16 %v872, %v871
      %v923 = vpack.c.bf16 %v874, %v873
      %v924 = vpack.c.bf16 %v876, %v875
      %v925 = vpack.c.bf16 %v878, %v877
      %v926 = vpack.c.bf16 %v880, %v879
      %v927 = vpack.c.bf16 %v882, %v881
      %v928 = vpack.c.bf16 %v884, %v883
      %v929 = vpack.c.bf16 %v886, %v885
      %v930 = vpack.c.bf16 %v888, %v887
      %v931 = vpack.c.bf16 %v890, %v889
      %v932 = vpack.c.bf16 %v892, %v891
      %v933 = vpack.c.bf16 %v894, %v893
      %v934 = vpack.c.bf16 %v896, %v895
      %v935 = vpack.c.bf16 %v898, %v897
      %v936 = vpack.c.bf16 %v900, %v899
      %v937 = vpack.c.bf16 %v902, %v901
      %v938 = vpack.c.bf16 %v904, %v903
      %v939 = vpack.c.bf16 %v906, %v905
      %v940 = vpack.c.bf16 %v908, %v907
      %v941 = vld [vmem:[%s3] sm:$0xf]
      %v942 = vld [vmem:[%s3 + $0x4] sm:$0xf]
      %v943 = vld [vmem:[%s3 + $0x8] sm:$0xf]
      %v944 = vld [vmem:[%s3 + $0xc] sm:$0xf]
      %v945 = vld [vmem:[%s3 + $0x10] sm:$0xf]
      %v946 = vld [vmem:[%s3 + $0x14] sm:$0xf]
      %v947 = vld [vmem:[%s3 + $0x18] sm:$0xf]
      %v948 = vld [vmem:[%s3 + $0x1c] sm:$0xf]
      %v949 = vld [vmem:[%s3 + $0x20] sm:$0xf]
      %v950 = vld [vmem:[%s3 + $0x24] sm:$0xf]
      %v951 = vld [vmem:[%s3 + $0x28] sm:$0xf]
      %v952 = vld [vmem:[%s3 + $0x2c] sm:$0xf]
      %v953 = vld [vmem:[%s3 + $0x30] sm:$0xf]
      %v954 = vld [vmem:[%s3 + $0x34] sm:$0xf]
      %v955 = vld [vmem:[%s3 + $0x38] sm:$0xf]
      %v956 = vld [vmem:[%s3 + $0x3c] sm:$0xf]
      %v957 = vld [vmem:[%s4] sm:$0x1]
      %v959 = vlaneseq
      %v960 = vshrl.u32 %v959, 7
      %v961 = vsub.s32 0, %v960
      %v962 = vrot.slane %v957, %v961
      %v980 = vunpack.c.l.b16 %v941
      %v981 = vunpack.c.l.b16 %v942
      %v982 = vunpack.c.l.b16 %v943
      %v983 = vunpack.c.l.b16 %v944
      %v984 = vunpack.c.l.b16 %v945
      %v985 = vunpack.c.l.b16 %v946
      %v986 = vunpack.c.l.b16 %v947
      %v987 = vunpack.c.l.b16 %v948
      %v988 = vunpack.c.l.b16 %v949
      %v989 = vunpack.c.l.b16 %v950
      %v990 = vunpack.c.l.b16 %v951
      %v991 = vunpack.c.l.b16 %v952
      %v992 = vunpack.c.l.b16 %v953
      %v993 = vunpack.c.l.b16 %v954
      %v994 = vunpack.c.l.b16 %v955
      %v995 = vunpack.c.l.b16 %v956
      %v996 = vpack.c.b16 %v981, %v980
      %v997 = vpack.c.b16 %v983, %v982
      %v998 = vpack.c.b16 %v985, %v984
      %v999 = vpack.c.b16 %v987, %v986
      %v1000 = vpack.c.b16 %v989, %v988
      %v1001 = vpack.c.b16 %v991, %v990
      %v1002 = vpack.c.b16 %v993, %v992
      %v1003 = vpack.c.b16 %v995, %v994
      %1012 = vmatprep.subr.bf16.mxu0 0
      %1013 = vmatpush1.bf16.msra.mxu0 %v996
      %1014 = vmatprep.subr.bf16.mxu0 0
      %1015 = vmatpush1.bf16.msra.mxu0 %v997
      %1016 = vmatprep.subr.bf16.mxu0 0
      %1017 = vmatpush1.bf16.msra.mxu0 %v998
      %1018 = vmatprep.subr.bf16.mxu0 0
      %1019 = vmatpush1.bf16.msra.mxu0 %v999
      %1020 = vmatprep.subr.bf16.mxu0 0
      %1021 = vmatpush1.bf16.msra.mxu0 %v1000
      %1022 = vmatprep.subr.bf16.mxu0 0
      %1023 = vmatpush1.bf16.msra.mxu0 %v1001
      %1024 = vmatprep.subr.bf16.mxu0 0
      %1025 = vmatpush1.bf16.msra.mxu0 %v1002
      %1026 = vmatprep.subr.bf16.mxu0 0
      %1027 = vmatpush1.bf16.msra.mxu0 %v1003
      %1028 = vmatprep.subr.bf16.mxu0 0
      %1029 = vmatpush1.bf16.msra.mxu0 0
      %1030 = vmatprep.subr.bf16.mxu0 0
      %1031 = vmatpush1.bf16.msra.mxu0 0
      %1032 = vmatprep.subr.bf16.mxu0 0
      %1033 = vmatpush1.bf16.msra.mxu0 0
      %1034 = vmatprep.subr.bf16.mxu0 0
      %1035 = vmatpush1.bf16.msra.mxu0 0
      %1036 = vmatprep.subr.bf16.mxu0 0
      %1037 = vmatpush1.bf16.msra.mxu0 0
      %1038 = vmatprep.subr.bf16.mxu0 0
      %1039 = vmatpush1.bf16.msra.mxu0 0
      %1040 = vmatprep.subr.bf16.mxu0 0
      %1041 = vmatpush1.bf16.msra.mxu0 0
      %1042 = vmatprep.subr.bf16.mxu0 0
      %1043 = vmatpush1.bf16.msra.mxu0 0
      %1044 = vmatprep.mubr.bf16.mxu0 0
      %1045 = vmatmul.mubr.bf16.gmra.mrb[0].mxu0 %v909
      %v1046 = vpop.f32.mrb[0].mxu0
      %v1047 = vadd.f32 %v962, %v1046
      %v1048 = vpop.f32.mrb[0].mxu0
      %v1049 = vpop.f32.mrb[0].mxu0
      %v1050 = vadd.f32 %v962, %v1049
      %v1051 = vpop.f32.mrb[0].mxu0
      %1052 = vmatprep.mubr.bf16.mxu0 0
      %1053 = vmatmul.mubr.bf16.gmra.mrb[0].mxu0 %v910
      %v1054 = vpop.f32.mrb[0].mxu0
      %v1055 = vadd.f32 %v962, %v1054
      %v1056 = vpop.f32.mrb[0].mxu0
      %v1057 = vpop.f32.mrb[0].mxu0
      %v1058 = vadd.f32 %v962, %v1057
      %v1059 = vpop.f32.mrb[0].mxu0
      %1060 = vmatprep.mubr.bf16.mxu0 0
      %1061 = vmatmul.mubr.bf16.gmra.mrb[0].mxu0 %v911
      %v1062 = vpop.f32.mrb[0].mxu0
      %v1063 = vadd.f32 %v962, %v1062
      %v1064 = vpop.f32.mrb[0].mxu0
      %v1065 = vpop.f32.mrb[0].mxu0
      %v1066 = vadd.f32 %v962, %v1065
      %v1067 = vpop.f32.mrb[0].mxu0
      %1068 = vmatprep.mubr.bf16.mxu0 0
      %1069 = vmatmul.mubr.bf16.gmra.mrb[0].mxu0 %v912
      %v1070 = vpop.f32.mrb[0].mxu0
      %v1071 = vadd.f32 %v962, %v1070
      %v1072 = vpop.f32.mrb[0].mxu0
      %v1073 = vpop.f32.mrb[0].mxu0
      %v1074 = vadd.f32 %v962, %v1073
      %v1075 = vpop.f32.mrb[0].mxu0
      %1076 = vmatprep.mubr.bf16.mxu0 0
      %1077 = vmatmul.mubr.bf16.gmra.mrb[0].mxu0 %v913
      %v1078 = vpop.f32.mrb[0].mxu0
      %v1079 = vadd.f32 %v962, %v1078
      %v1080 = vpop.f32.mrb[0].mxu0
      %v1081 = vpop.f32.mrb[0].mxu0
      %v1082 = vadd.f32 %v962, %v1081
      %v1083 = vpop.f32.mrb[0].mxu0
      %1084 = vmatprep.mubr.bf16.mxu0 0
      %1085 = vmatmul.mubr.bf16.gmra.mrb[0].mxu0 %v914
      %v1086 = vpop.f32.mrb[0].mxu0
      %v1087 = vadd.f32 %v962, %v1086
      %v1088 = vpop.f32.mrb[0].mxu0
      %v1089 = vpop.f32.mrb[0].mxu0
      %v1090 = vadd.f32 %v962, %v1089
      %v1091 = vpop.f32.mrb[0].mxu0
      %1092 = vmatprep.mubr.bf16.mxu0 0
      %1093 = vmatmul.mubr.bf16.gmra.mrb[0].mxu0 %v915
      %v1094 = vpop.f32.mrb[0].mxu0
      %v1095 = vadd.f32 %v962, %v1094
      %v1096 = vpop.f32.mrb[0].mxu0
      %v1097 = vpop.f32.mrb[0].mxu0
      %v1098 = vadd.f32 %v962, %v1097
      %v1099 = vpop.f32.mrb[0].mxu0
      %1100 = vmatprep.mubr.bf16.mxu0 0
      %1101 = vmatmul.mubr.bf16.gmra.mrb[0].mxu0 %v916
      %v1102 = vpop.f32.mrb[0].mxu0
      %v1103 = vadd.f32 %v962, %v1102
      %v1104 = vpop.f32.mrb[0].mxu0
      %v1105 = vpop.f32.mrb[0].mxu0
      %v1106 = vadd.f32 %v962, %v1105
      %v1107 = vpop.f32.mrb[0].mxu0
      %1108 = vmatprep.mubr.bf16.mxu0 0
      %1109 = vmatmul.mubr.bf16.gmra.mrb[0].mxu0 %v917
      %v1110 = vpop.f32.mrb[0].mxu0
      %v1111 = vadd.f32 %v962, %v1110
      %v1112 = vpop.f32.mrb[0].mxu0
      %v1113 = vpop.f32.mrb[0].mxu0
      %v1114 = vadd.f32 %v962, %v1113
      %v1115 = vpop.f32.mrb[0].mxu0
      %1116 = vmatprep.mubr.bf16.mxu0 0
      %1117 = vmatmul.mubr.bf16.gmra.mrb[0].mxu0 %v918
      %v1118 = vpop.f32.mrb[0].mxu0
      %v1119 = vadd.f32 %v962, %v1118
      %v1120 = vpop.f32.mrb[0].mxu0
      %v1121 = vpop.f32.mrb[0].mxu0
      %v1122 = vadd.f32 %v962, %v1121
      %v1123 = vpop.f32.mrb[0].mxu0
      %1124 = vmatprep.mubr.bf16.mxu0 0
      %1125 = vmatmul.mubr.bf16.gmra.mrb[0].mxu0 %v919
      %v1126 = vpop.f32.mrb[0].mxu0
      %v1127 = vadd.f32 %v962, %v1126
      %v1128 = vpop.f32.mrb[0].mxu0
      %v1129 = vpop.f32.mrb[0].mxu0
      %v1130 = vadd.f32 %v962, %v1129
      %v1131 = vpop.f32.mrb[0].mxu0
      %1132 = vmatprep.mubr.bf16.mxu0 0
      %1133 = vmatmul.mubr.bf16.gmra.mrb[0].mxu0 %v920
      %v1134 = vpop.f32.mrb[0].mxu0
      %v1135 = vadd.f32 %v962, %v1134
      %v1136 = vpop.f32.mrb[0].mxu0
      %v1137 = vpop.f32.mrb[0].mxu0
      %v1138 = vadd.f32 %v962, %v1137
      %v1139 = vpop.f32.mrb[0].mxu0
      %1140 = vmatprep.mubr.bf16.mxu0 0
      %1141 = vmatmul.mubr.bf16.gmra.mrb[0].mxu0 %v921
      %v1142 = vpop.f32.mrb[0].mxu0
      %v1143 = vadd.f32 %v962, %v1142
      %v1144 = vpop.f32.mrb[0].mxu0
      %v1145 = vpop.f32.mrb[0].mxu0
      %v1146 = vadd.f32 %v962, %v1145
      %v1147 = vpop.f32.mrb[0].mxu0
      %1148 = vmatprep.mubr.bf16.mxu0 0
      %1149 = vmatmul.mubr.bf16.gmra.mrb[0].mxu0 %v922
      %v1150 = vpop.f32.mrb[0].mxu0
      %v1151 = vadd.f32 %v962, %v1150
      %v1152 = vpop.f32.mrb[0].mxu0
      %v1153 = vpop.f32.mrb[0].mxu0
      %v1154 = vadd.f32 %v962, %v1153
      %v1155 = vpop.f32.mrb[0].mxu0
      %1156 = vmatprep.mubr.bf16.mxu0 0
      %1157 = vmatmul.mubr.bf16.gmra.mrb[0].mxu0 %v923
      %v1158 = vpop.f32.mrb[0].mxu0
      %v1159 = vadd.f32 %v962, %v1158
      %v1160 = vpop.f32.mrb[0].mxu0
      %v1161 = vpop.f32.mrb[0].mxu0
      %v1162 = vadd.f32 %v962, %v1161
      %v1163 = vpop.f32.mrb[0].mxu0
      %1164 = vmatprep.mubr.bf16.mxu0 0
      %1165 = vmatmul.mubr.bf16.gmra.mrb[0].mxu0 %v924
      %v1166 = vpop.f32.mrb[0].mxu0
      %v1167 = vadd.f32 %v962, %v1166
      %v1168 = vpop.f32.mrb[0].mxu0
      %v1169 = vpop.f32.mrb[0].mxu0
      %v1170 = vadd.f32 %v962, %v1169
      %v1171 = vpop.f32.mrb[0].mxu0
      %1172 = vmatprep.mubr.bf16.mxu0 0
      %1173 = vmatmul.mubr.bf16.gmra.mrb[0].mxu0 %v925
      %v1174 = vpop.f32.mrb[0].mxu0
      %v1175 = vadd.f32 %v962, %v1174
      %v1176 = vpop.f32.mrb[0].mxu0
      %v1177 = vpop.f32.mrb[0].mxu0
      %v1178 = vadd.f32 %v962, %v1177
      %v1179 = vpop.f32.mrb[0].mxu0
      %1180 = vmatprep.mubr.bf16.mxu0 0
      %1181 = vmatmul.mubr.bf16.gmra.mrb[0].mxu0 %v926
      %v1182 = vpop.f32.mrb[0].mxu0
      %v1183 = vadd.f32 %v962, %v1182
      %v1184 = vpop.f32.mrb[0].mxu0
      %v1185 = vpop.f32.mrb[0].mxu0
      %v1186 = vadd.f32 %v962, %v1185
      %v1187 = vpop.f32.mrb[0].mxu0
      %1188 = vmatprep.mubr.bf16.mxu0 0
      %1189 = vmatmul.mubr.bf16.gmra.mrb[0].mxu0 %v927
      %v1190 = vpop.f32.mrb[0].mxu0
      %v1191 = vadd.f32 %v962, %v1190
      %v1192 = vpop.f32.mrb[0].mxu0
      %v1193 = vpop.f32.mrb[0].mxu0
      %v1194 = vadd.f32 %v962, %v1193
      %v1195 = vpop.f32.mrb[0].mxu0
      %1196 = vmatprep.mubr.bf16.mxu0 0
      %1197 = vmatmul.mubr.bf16.gmra.mrb[0].mxu0 %v928
      %v1198 = vpop.f32.mrb[0].mxu0
      %v1199 = vadd.f32 %v962, %v1198
      %v1200 = vpop.f32.mrb[0].mxu0
      %v1201 = vpop.f32.mrb[0].mxu0
      %v1202 = vadd.f32 %v962, %v1201
      %v1203 = vpop.f32.mrb[0].mxu0
      %1204 = vmatprep.mubr.bf16.mxu0 0
      %1205 = vmatmul.mubr.bf16.gmra.mrb[0].mxu0 %v929
      %v1206 = vpop.f32.mrb[0].mxu0
      %v1207 = vadd.f32 %v962, %v1206
      %v1208 = vpop.f32.mrb[0].mxu0
      %v1209 = vpop.f32.mrb[0].mxu0
      %v1210 = vadd.f32 %v962, %v1209
      %v1211 = vpop.f32.mrb[0].mxu0
      %1212 = vmatprep.mubr.bf16.mxu0 0
      %1213 = vmatmul.mubr.bf16.gmra.mrb[0].mxu0 %v930
      %v1214 = vpop.f32.mrb[0].mxu0
      %v1215 = vadd.f32 %v962, %v1214
      %v1216 = vpop.f32.mrb[0].mxu0
      %v1217 = vpop.f32.mrb[0].mxu0
      %v1218 = vadd.f32 %v962, %v1217
      %v1219 = vpop.f32.mrb[0].mxu0
      %1220 = vmatprep.mubr.bf16.mxu0 0
      %1221 = vmatmul.mubr.bf16.gmra.mrb[0].mxu0 %v931
      %v1222 = vpop.f32.mrb[0].mxu0
      %v1223 = vadd.f32 %v962, %v1222
      %v1224 = vpop.f32.mrb[0].mxu0
      %v1225 = vpop.f32.mrb[0].mxu0
      %v1226 = vadd.f32 %v962, %v1225
      %v1227 = vpop.f32.mrb[0].mxu0
      %1228 = vmatprep.mubr.bf16.mxu0 0
      %1229 = vmatmul.mubr.bf16.gmra.mrb[0].mxu0 %v932
      %v1230 = vpop.f32.mrb[0].mxu0
      %v1231 = vadd.f32 %v962, %v1230
      %v1232 = vpop.f32.mrb[0].mxu0
      %v1233 = vpop.f32.mrb[0].mxu0
      %v1234 = vadd.f32 %v962, %v1233
      %v1235 = vpop.f32.mrb[0].mxu0
      %1236 = vmatprep.mubr.bf16.mxu0 0
      %1237 = vmatmul.mubr.bf16.gmra.mrb[0].mxu0 %v933
      %v1238 = vpop.f32.mrb[0].mxu0
      %v1239 = vadd.f32 %v962, %v1238
      %v1240 = vpop.f32.mrb[0].mxu0
      %v1241 = vpop.f32.mrb[0].mxu0
      %v1242 = vadd.f32 %v962, %v1241
      %v1243 = vpop.f32.mrb[0].mxu0
      %1244 = vmatprep.mubr.bf16.mxu0 0
      %1245 = vmatmul.mubr.bf16.gmra.mrb[0].mxu0 %v934
      %v1246 = vpop.f32.mrb[0].mxu0
      %v1247 = vadd.f32 %v962, %v1246
      %v1248 = vpop.f32.mrb[0].mxu0
      %v1249 = vpop.f32.mrb[0].mxu0
      %v1250 = vadd.f32 %v962, %v1249
      %v1251 = vpop.f32.mrb[0].mxu0
      %1252 = vmatprep.mubr.bf16.mxu0 0
      %1253 = vmatmul.mubr.bf16.gmra.mrb[0].mxu0 %v935
      %v1254 = vpop.f32.mrb[0].mxu0
      %v1255 = vadd.f32 %v962, %v1254
      %v1256 = vpop.f32.mrb[0].mxu0
      %v1257 = vpop.f32.mrb[0].mxu0
      %v1258 = vadd.f32 %v962, %v1257
      %v1259 = vpop.f32.mrb[0].mxu0
      %1260 = vmatprep.mubr.bf16.mxu0 0
      %1261 = vmatmul.mubr.bf16.gmra.mrb[0].mxu0 %v936
      %v1262 = vpop.f32.mrb[0].mxu0
      %v1263 = vadd.f32 %v962, %v1262
      %v1264 = vpop.f32.mrb[0].mxu0
      %v1265 = vpop.f32.mrb[0].mxu0
      %v1266 = vadd.f32 %v962, %v1265
      %v1267 = vpop.f32.mrb[0].mxu0
      %1268 = vmatprep.mubr.bf16.mxu0 0
      %1269 = vmatmul.mubr.bf16.gmra.mrb[0].mxu0 %v937
      %v1270 = vpop.f32.mrb[0].mxu0
      %v1271 = vadd.f32 %v962, %v1270
      %v1272 = vpop.f32.mrb[0].mxu0
      %v1273 = vpop.f32.mrb[0].mxu0
      %v1274 = vadd.f32 %v962, %v1273
      %v1275 = vpop.f32.mrb[0].mxu0
      %1276 = vmatprep.mubr.bf16.mxu0 0
      %1277 = vmatmul.mubr.bf16.gmra.mrb[0].mxu0 %v938
      %v1278 = vpop.f32.mrb[0].mxu0
      %v1279 = vadd.f32 %v962, %v1278
      %v1280 = vpop.f32.mrb[0].mxu0
      %v1281 = vpop.f32.mrb[0].mxu0
      %v1282 = vadd.f32 %v962, %v1281
      %v1283 = vpop.f32.mrb[0].mxu0
      %1284 = vmatprep.mubr.bf16.mxu0 0
      %1285 = vmatmul.mubr.bf16.gmra.mrb[0].mxu0 %v939
      %v1286 = vpop.f32.mrb[0].mxu0
      %v1287 = vadd.f32 %v962, %v1286
      %v1288 = vpop.f32.mrb[0].mxu0
      %v1289 = vpop.f32.mrb[0].mxu0
      %v1290 = vadd.f32 %v962, %v1289
      %v1291 = vpop.f32.mrb[0].mxu0
      %1292 = vmatprep.mubr.bf16.mxu0 0
      %1293 = vmatmul.mubr.bf16.gmra.mrb[0].mxu0 %v940
      %v1294 = vpop.f32.mrb[0].mxu0
      %v1295 = vadd.f32 %v962, %v1294
      %v1296 = vpop.f32.mrb[0].mxu0
      %v1297 = vpop.f32.mrb[0].mxu0
      %v1298 = vadd.f32 %v962, %v1297
      %v1299 = vpop.f32.mrb[0].mxu0
      %1300 = vdwg.mxu0
      %v1301 = vmax.f32 %v1047, 0.0
      %v1302 = vmax.f32 %v1050, 0.0
      %v1303 = vmax.f32 %v1055, 0.0
      %v1304 = vmax.f32 %v1058, 0.0
      %v1305 = vmax.f32 %v1063, 0.0
      %v1306 = vmax.f32 %v1066, 0.0
      %v1307 = vmax.f32 %v1071, 0.0
      %v1308 = vmax.f32 %v1074, 0.0
      %v1309 = vmax.f32 %v1079, 0.0
      %v1310 = vmax.f32 %v1082, 0.0
      %v1311 = vmax.f32 %v1087, 0.0
      %v1312 = vmax.f32 %v1090, 0.0
      %v1313 = vmax.f32 %v1095, 0.0
      %v1314 = vmax.f32 %v1098, 0.0
      %v1315 = vmax.f32 %v1103, 0.0
      %v1316 = vmax.f32 %v1106, 0.0
      %v1317 = vmax.f32 %v1111, 0.0
      %v1318 = vmax.f32 %v1114, 0.0
      %v1319 = vmax.f32 %v1119, 0.0
      %v1320 = vmax.f32 %v1122, 0.0
      %v1321 = vmax.f32 %v1127, 0.0
      %v1322 = vmax.f32 %v1130, 0.0
      %v1323 = vmax.f32 %v1135, 0.0
      %v1324 = vmax.f32 %v1138, 0.0
      %v1325 = vmax.f32 %v1143, 0.0
      %v1326 = vmax.f32 %v1146, 0.0
      %v1327 = vmax.f32 %v1151, 0.0
      %v1328 = vmax.f32 %v1154, 0.0
      %v1329 = vmax.f32 %v1159, 0.0
      %v1330 = vmax.f32 %v1162, 0.0
      %v1331 = vmax.f32 %v1167, 0.0
      %v1332 = vmax.f32 %v1170, 0.0
      %v1333 = vmax.f32 %v1175, 0.0
      %v1334 = vmax.f32 %v1178, 0.0
      %v1335 = vmax.f32 %v1183, 0.0
      %v1336 = vmax.f32 %v1186, 0.0
      %v1337 = vmax.f32 %v1191, 0.0
      %v1338 = vmax.f32 %v1194, 0.0
      %v1339 = vmax.f32 %v1199, 0.0
      %v1340 = vmax.f32 %v1202, 0.0
      %v1341 = vmax.f32 %v1207, 0.0
      %v1342 = vmax.f32 %v1210, 0.0
      %v1343 = vmax.f32 %v1215, 0.0
      %v1344 = vmax.f32 %v1218, 0.0
      %v1345 = vmax.f32 %v1223, 0.0
      %v1346 = vmax.f32 %v1226, 0.0
      %v1347 = vmax.f32 %v1231, 0.0
      %v1348 = vmax.f32 %v1234, 0.0
      %v1349 = vmax.f32 %v1239, 0.0
      %v1350 = vmax.f32 %v1242, 0.0
      %v1351 = vmax.f32 %v1247, 0.0
      %v1352 = vmax.f32 %v1250, 0.0
      %v1353 = vmax.f32 %v1255, 0.0
      %v1354 = vmax.f32 %v1258, 0.0
      %v1355 = vmax.f32 %v1263, 0.0
      %v1356 = vmax.f32 %v1266, 0.0
      %v1357 = vmax.f32 %v1271, 0.0
      %v1358 = vmax.f32 %v1274, 0.0
      %v1359 = vmax.f32 %v1279, 0.0
      %v1360 = vmax.f32 %v1282, 0.0
      %v1361 = vmax.f32 %v1287, 0.0
      %v1362 = vmax.f32 %v1290, 0.0
      %v1363 = vmax.f32 %v1295, 0.0
      %v1364 = vmax.f32 %v1298, 0.0
      %v1365 = vmax.f32 %v1301, %v1302
      %v1366 = vrot.slane %v1365, 4
      %v1367 = vmax.f32 %v1365, %v1366
      %v1368 = vrot.slane %v1367, 2
      %v1369 = vmax.f32 %v1367, %v1368
      %v1370 = vrot.slane %v1369, 1
      %v1371 = vmax.f32 %v1369, %v1370
      %v1372 = vmax.f32 %v1303, %v1304
      %v1373 = vrot.slane %v1372, 4
      %v1374 = vmax.f32 %v1372, %v1373
      %v1375 = vrot.slane %v1374, 2
      %v1376 = vmax.f32 %v1374, %v1375
      %v1377 = vrot.slane %v1376, 1
      %v1378 = vmax.f32 %v1376, %v1377
      %v1379 = vmax.f32 %v1305, %v1306
      %v1380 = vrot.slane %v1379, 4
      %v1381 = vmax.f32 %v1379, %v1380
      %v1382 = vrot.slane %v1381, 2
      %v1383 = vmax.f32 %v1381, %v1382
      %v1384 = vrot.slane %v1383, 1
      %v1385 = vmax.f32 %v1383, %v1384
      %v1386 = vmax.f32 %v1307, %v1308
      %v1387 = vrot.slane %v1386, 4
      %v1388 = vmax.f32 %v1386, %v1387
      %v1389 = vrot.slane %v1388, 2
      %v1390 = vmax.f32 %v1388, %v1389
      %v1391 = vrot.slane %v1390, 1
      %v1392 = vmax.f32 %v1390, %v1391
      %v1393 = vmax.f32 %v1309, %v1310
      %v1394 = vrot.slane %v1393, 4
      %v1395 = vmax.f32 %v1393, %v1394
      %v1396 = vrot.slane %v1395, 2
      %v1397 = vmax.f32 %v1395, %v1396
      %v1398 = vrot.slane %v1397, 1
      %v1399 = vmax.f32 %v1397, %v1398
      %v1400 = vmax.f32 %v1311, %v1312
      %v1401 = vrot.slane %v1400, 4
      %v1402 = vmax.f32 %v1400, %v1401
      %v1403 = vrot.slane %v1402, 2
      %v1404 = vmax.f32 %v1402, %v1403
      %v1405 = vrot.slane %v1404, 1
      %v1406 = vmax.f32 %v1404, %v1405
      %v1407 = vmax.f32 %v1313, %v1314
      %v1408 = vrot.slane %v1407, 4
      %v1409 = vmax.f32 %v1407, %v1408
      %v1410 = vrot.slane %v1409, 2
      %v1411 = vmax.f32 %v1409, %v1410
      %v1412 = vrot.slane %v1411, 1
      %v1413 = vmax.f32 %v1411, %v1412
      %v1414 = vmax.f32 %v1315, %v1316
      %v1415 = vrot.slane %v1414, 4
      %v1416 = vmax.f32 %v1414, %v1415
      %v1417 = vrot.slane %v1416, 2
      %v1418 = vmax.f32 %v1416, %v1417
      %v1419 = vrot.slane %v1418, 1
      %v1420 = vmax.f32 %v1418, %v1419
      %v1421 = vmax.f32 %v1317, %v1318
      %v1422 = vrot.slane %v1421, 4
      %v1423 = vmax.f32 %v1421, %v1422
      %v1424 = vrot.slane %v1423, 2
      %v1425 = vmax.f32 %v1423, %v1424
      %v1426 = vrot.slane %v1425, 1
      %v1427 = vmax.f32 %v1425, %v1426
      %v1428 = vmax.f32 %v1319, %v1320
      %v1429 = vrot.slane %v1428, 4
      %v1430 = vmax.f32 %v1428, %v1429
      %v1431 = vrot.slane %v1430, 2
      %v1432 = vmax.f32 %v1430, %v1431
      %v1433 = vrot.slane %v1432, 1
      %v1434 = vmax.f32 %v1432, %v1433
      %v1435 = vmax.f32 %v1321, %v1322
      %v1436 = vrot.slane %v1435, 4
      %v1437 = vmax.f32 %v1435, %v1436
      %v1438 = vrot.slane %v1437, 2
      %v1439 = vmax.f32 %v1437, %v1438
      %v1440 = vrot.slane %v1439, 1
      %v1441 = vmax.f32 %v1439, %v1440
      %v1442 = vmax.f32 %v1323, %v1324
      %v1443 = vrot.slane %v1442, 4
      %v1444 = vmax.f32 %v1442, %v1443
      %v1445 = vrot.slane %v1444, 2
      %v1446 = vmax.f32 %v1444, %v1445
      %v1447 = vrot.slane %v1446, 1
      %v1448 = vmax.f32 %v1446, %v1447
      %v1449 = vmax.f32 %v1325, %v1326
      %v1450 = vrot.slane %v1449, 4
      %v1451 = vmax.f32 %v1449, %v1450
      %v1452 = vrot.slane %v1451, 2
      %v1453 = vmax.f32 %v1451, %v1452
      %v1454 = vrot.slane %v1453, 1
      %v1455 = vmax.f32 %v1453, %v1454
      %v1456 = vmax.f32 %v1327, %v1328
      %v1457 = vrot.slane %v1456, 4
      %v1458 = vmax.f32 %v1456, %v1457
      %v1459 = vrot.slane %v1458, 2
      %v1460 = vmax.f32 %v1458, %v1459
      %v1461 = vrot.slane %v1460, 1
      %v1462 = vmax.f32 %v1460, %v1461
      %v1463 = vmax.f32 %v1329, %v1330
      %v1464 = vrot.slane %v1463, 4
      %v1465 = vmax.f32 %v1463, %v1464
      %v1466 = vrot.slane %v1465, 2
      %v1467 = vmax.f32 %v1465, %v1466
      %v1468 = vrot.slane %v1467, 1
      %v1469 = vmax.f32 %v1467, %v1468
      %v1470 = vmax.f32 %v1331, %v1332
      %v1471 = vrot.slane %v1470, 4
      %v1472 = vmax.f32 %v1470, %v1471
      %v1473 = vrot.slane %v1472, 2
      %v1474 = vmax.f32 %v1472, %v1473
      %v1475 = vrot.slane %v1474, 1
      %v1476 = vmax.f32 %v1474, %v1475
      %v1477 = vmax.f32 %v1333, %v1334
      %v1478 = vrot.slane %v1477, 4
      %v1479 = vmax.f32 %v1477, %v1478
      %v1480 = vrot.slane %v1479, 2
      %v1481 = vmax.f32 %v1479, %v1480
      %v1482 = vrot.slane %v1481, 1
      %v1483 = vmax.f32 %v1481, %v1482
      %v1484 = vmax.f32 %v1335, %v1336
      %v1485 = vrot.slane %v1484, 4
      %v1486 = vmax.f32 %v1484, %v1485
      %v1487 = vrot.slane %v1486, 2
      %v1488 = vmax.f32 %v1486, %v1487
      %v1489 = vrot.slane %v1488, 1
      %v1490 = vmax.f32 %v1488, %v1489
      %v1491 = vmax.f32 %v1337, %v1338
      %v1492 = vrot.slane %v1491, 4
      %v1493 = vmax.f32 %v1491, %v1492
      %v1494 = vrot.slane %v1493, 2
      %v1495 = vmax.f32 %v1493, %v1494
      %v1496 = vrot.slane %v1495, 1
      %v1497 = vmax.f32 %v1495, %v1496
      %v1498 = vmax.f32 %v1339, %v1340
      %v1499 = vrot.slane %v1498, 4
      %v1500 = vmax.f32 %v1498, %v1499
      %v1501 = vrot.slane %v1500, 2
      %v1502 = vmax.f32 %v1500, %v1501
      %v1503 = vrot.slane %v1502, 1
      %v1504 = vmax.f32 %v1502, %v1503
      %v1505 = vmax.f32 %v1341, %v1342
      %v1506 = vrot.slane %v1505, 4
      %v1507 = vmax.f32 %v1505, %v1506
      %v1508 = vrot.slane %v1507, 2
      %v1509 = vmax.f32 %v1507, %v1508
      %v1510 = vrot.slane %v1509, 1
      %v1511 = vmax.f32 %v1509, %v1510
      %v1512 = vmax.f32 %v1343, %v1344
      %v1513 = vrot.slane %v1512, 4
      %v1514 = vmax.f32 %v1512, %v1513
      %v1515 = vrot.slane %v1514, 2
      %v1516 = vmax.f32 %v1514, %v1515
      %v1517 = vrot.slane %v1516, 1
      %v1518 = vmax.f32 %v1516, %v1517
      %v1519 = vmax.f32 %v1345, %v1346
      %v1520 = vrot.slane %v1519, 4
      %v1521 = vmax.f32 %v1519, %v1520
      %v1522 = vrot.slane %v1521, 2
      %v1523 = vmax.f32 %v1521, %v1522
      %v1524 = vrot.slane %v1523, 1
      %v1525 = vmax.f32 %v1523, %v1524
      %v1526 = vmax.f32 %v1347, %v1348
      %v1527 = vrot.slane %v1526, 4
      %v1528 = vmax.f32 %v1526, %v1527
      %v1529 = vrot.slane %v1528, 2
      %v1530 = vmax.f32 %v1528, %v1529
      %v1531 = vrot.slane %v1530, 1
      %v1532 = vmax.f32 %v1530, %v1531
      %v1533 = vmax.f32 %v1349, %v1350
      %v1534 = vrot.slane %v1533, 4
      %v1535 = vmax.f32 %v1533, %v1534
      %v1536 = vrot.slane %v1535, 2
      %v1537 = vmax.f32 %v1535, %v1536
      %v1538 = vrot.slane %v1537, 1
      %v1539 = vmax.f32 %v1537, %v1538
      %v1540 = vmax.f32 %v1351, %v1352
      %v1541 = vrot.slane %v1540, 4
      %v1542 = vmax.f32 %v1540, %v1541
      %v1543 = vrot.slane %v1542, 2
      %v1544 = vmax.f32 %v1542, %v1543
      %v1545 = vrot.slane %v1544, 1
      %v1546 = vmax.f32 %v1544, %v1545
      %v1547 = vmax.f32 %v1353, %v1354
      %v1548 = vrot.slane %v1547, 4
      %v1549 = vmax.f32 %v1547, %v1548
      %v1550 = vrot.slane %v1549, 2
      %v1551 = vmax.f32 %v1549, %v1550
      %v1552 = vrot.slane %v1551, 1
      %v1553 = vmax.f32 %v1551, %v1552
      %v1554 = vmax.f32 %v1355, %v1356
      %v1555 = vrot.slane %v1554, 4
      %v1556 = vmax.f32 %v1554, %v1555
      %v1557 = vrot.slane %v1556, 2
      %v1558 = vmax.f32 %v1556, %v1557
      %v1559 = vrot.slane %v1558, 1
      %v1560 = vmax.f32 %v1558, %v1559
      %v1561 = vmax.f32 %v1357, %v1358
      %v1562 = vrot.slane %v1561, 4
      %v1563 = vmax.f32 %v1561, %v1562
      %v1564 = vrot.slane %v1563, 2
      %v1565 = vmax.f32 %v1563, %v1564
      %v1566 = vrot.slane %v1565, 1
      %v1567 = vmax.f32 %v1565, %v1566
      %v1568 = vmax.f32 %v1359, %v1360
      %v1569 = vrot.slane %v1568, 4
      %v1570 = vmax.f32 %v1568, %v1569
      %v1571 = vrot.slane %v1570, 2
      %v1572 = vmax.f32 %v1570, %v1571
      %v1573 = vrot.slane %v1572, 1
      %v1574 = vmax.f32 %v1572, %v1573
      %v1575 = vmax.f32 %v1361, %v1362
      %v1576 = vrot.slane %v1575, 4
      %v1577 = vmax.f32 %v1575, %v1576
      %v1578 = vrot.slane %v1577, 2
      %v1579 = vmax.f32 %v1577, %v1578
      %v1580 = vrot.slane %v1579, 1
      %v1581 = vmax.f32 %v1579, %v1580
      %v1582 = vmax.f32 %v1363, %v1364
      %v1583 = vrot.slane %v1582, 4
      %v1584 = vmax.f32 %v1582, %v1583
      %v1585 = vrot.slane %v1584, 2
      %v1586 = vmax.f32 %v1584, %v1585
      %v1587 = vrot.slane %v1586, 1
      %v1588 = vmax.f32 %v1586, %v1587
      %vm1621 = vcmask 1041409
      %v1622 = vsel %vm1621, %v1378, %v1371
      %vm1623 = vcmask 1042434
      %v1624 = vsel %vm1623, %v1385, %v1622
      %vm1625 = vcmask 1043459
      %v1626 = vsel %vm1625, %v1392, %v1624
      %vm1627 = vcmask 1044484
      %v1628 = vsel %vm1627, %v1399, %v1626
      %vm1629 = vcmask 1045509
      %v1630 = vsel %vm1629, %v1406, %v1628
      %vm1631 = vcmask 1046534
      %v1632 = vsel %vm1631, %v1413, %v1630
      %vm1633 = vcmask 1047559
      %v1634 = vsel %vm1633, %v1420, %v1632
      %v1635 = vsel %vm1621, %v1434, %v1427
      %v1636 = vsel %vm1623, %v1441, %v1635
      %v1637 = vsel %vm1625, %v1448, %v1636
      %v1638 = vsel %vm1627, %v1455, %v1637
      %v1639 = vsel %vm1629, %v1462, %v1638
      %v1640 = vsel %vm1631, %v1469, %v1639
      %v1641 = vsel %vm1633, %v1476, %v1640
      %v1642 = vsel %vm1621, %v1490, %v1483
      %v1643 = vsel %vm1623, %v1497, %v1642
      %v1644 = vsel %vm1625, %v1504, %v1643
      %v1645 = vsel %vm1627, %v1511, %v1644
      %v1646 = vsel %vm1629, %v1518, %v1645
      %v1647 = vsel %vm1631, %v1525, %v1646
      %v1648 = vsel %vm1633, %v1532, %v1647
      %v1649 = vsel %vm1621, %v1546, %v1539
      %v1650 = vsel %vm1623, %v1553, %v1649
      %v1651 = vsel %vm1625, %v1560, %v1650
      %v1652 = vsel %vm1627, %v1567, %v1651
      %v1653 = vsel %vm1629, %v1574, %v1652
      %v1654 = vsel %vm1631, %v1581, %v1653
      %v1655 = vsel %vm1633, %v1588, %v1654
      %1660 = vst [vmem:[%s226] sm:$0xff] %v1634
      %1661 = vst [vmem:[%s226 + $0x8] sm:$0xff] %v1641
      %1662 = vst [vmem:[%s226 + $0x10] sm:$0xff] %v1648
      %1663 = vst [vmem:[%s226 + $0x18] sm:$0xff] %v1655
      %s1664 = smul.u32 4, %s16
      %p1665 = scmp.lt.s32.totalorder %s1664, 7
      %s1666 = scalar_select %p1665, %s1664, 7
      %s1667 = smul.addr %s1666, 8
      %s1668 = scalar_lea.vmem %s5, %s1667
      // Predicated region
      $region41: #{pointnet2_backbone_forward.7} parent=39 // pred_check
        %p1669 = pneg %p144
      $region42: #{pointnet2_backbone_forward.7} parent=39 // pred_check_branch
        %1671 = sbr.rel (%p1669) target = $region44
      $region43: #{pointnet2_backbone_forward.7} parent=39 // pred_region
        %s1672 = smul.u32 4, %s16
      $region44: #{pointnet2_backbone_forward.7} parent=39 // pred_fallthru
        _
    $region40: #{pointnet2_backbone_forward.7} parent=5 // pred_fallthru
      _
    %p1673 = scmp.le.s32.totalorder 2, %s11
    // Predicated region
    $region45: #{pointnet2_backbone_forward.7} parent=5 // pred_check
      %p1674 = pneg %p1673
    $region46: #{pointnet2_backbone_forward.7} parent=5 // pred_check_branch
      %1676 = sbr.rel (%p1674) target = $region48
    $region47: #{pointnet2_backbone_forward.7} parent=5 // pred_region
      %s1677 = ssub.s32 %s11, 2
      // Predicated region
      $region49: #{pointnet2_backbone_forward.7} parent=47 // pred_check
        %p1678 = pneg %p150
      $region50: #{pointnet2_backbone_forward.7} parent=47 // pred_check_branch
        %1680 = sbr.rel (%p1678) target = $region52
      $region51: #{pointnet2_backbone_forward.7} parent=47 // pred_region
        %s1681 = smul.u32 4, %s17
        %p1682 = scmp.lt.s32.totalorder %s1681, 7
        %s1683 = scalar_select %p1682, %s1681, 7
        %s1684 = smul.addr %s1683, 8
        %s1685 = scalar_lea.vmem %s5, %s1684
      $region52: #{pointnet2_backbone_forward.7} parent=47 // pred_fallthru
        _
    $region48: #{pointnet2_backbone_forward.7} parent=5 // pred_fallthru
      _
  $region6: #{pointnet2_backbone_forward.7} parent=0 // loop_footer
    %s15 = sadd.s32 1, %s11
  $region7: #{pointnet2_backbone_forward.7} parent=0 // loop_footer_branch
    %10 = sbr.rel target = $region3
  $region8: #{pointnet2_backbone_forward.7} parent=0 // loop_exit
    _

// kernel: pointnet2_backbone_forward.8
$region0: #{pointnet2_backbone_forward.8}
  #allocation0 [shape = 'u32[]', space=smem, size = 0x4, offset = 0x4, fixed_abs, tag = 'smem constant byte address 0x4 - core index']
  #allocation1 [shape = 'u32[144,128]{1,0:T(1,128)}', space=vmem, size = 0x12000, scoped, tag = 'internal scratch']
  %s0 = inlined_call_operand.vmem [shape: bf16[256,128], index: 0, kind: input, shape index: {}]
  %s1 = inlined_call_operand.vmem [shape: bf16[128,128], index: 1, kind: input, shape index: {}]
  %s2 = inlined_call_operand.vmem [shape: f32[1,128], index: 2, kind: input, shape index: {}]
  %s3 = inlined_call_operand.vmem [shape: bf16[128,128], index: 3, kind: input, shape index: {}]
  %s4 = inlined_call_operand.vmem [shape: f32[1,128], index: 4, kind: input, shape index: {}]
  %s5 = inlined_call_operand.vmem [shape: f32[32,128], index: 5, kind: output, shape index: {}]
  %s6 = sld [smem:[#allocation0]]
  $region53: #{pointnet2_backbone_forward.8} parent=0
    _
  %s8 = ssub.s32 1, %s6
  %s9 = scalar_select 0, %s8, %s6
  loop: start=0, step=1, limit=4
  $region2: #{pointnet2_backbone_forward.8} parent=0 // loop_pre_header
    _
  $region3: #{pointnet2_backbone_forward.8} parent=0 // loop_header
    %s11 = sphi 0, %s15
    %p12 = scmp.ge.s32.totalorder %s11, 4
    %s21 = sphi 0, %s23
    %s24 = sphi 0, %s21
    %s25 = sphi 0, %s24
    %s41 = sphi 0, %s25
    %s45 = sphi 0, %s45
    %s47 = sphi 0, %s45
    %s48 = sphi 0, %s47
    %s62 = sphi 0, %s48
    %s66 = sphi 0, %s66
    %s68 = sphi 0, %s66
    %s69 = sphi 0, %s68
    %s83 = sphi 0, %s69
    %s87 = sphi 0, %s87
    %s89 = sphi 0, %s87
    %s90 = sphi 0, %s89
    %s104 = sphi 0, %s90
    %s108 = sphi 0, %s108
    %s110 = sphi 0, %s108
    %s111 = sphi 0, %s110
    %s125 = sphi 0, %s111
    %s131 = sphi 0, %s133
    %s134 = sphi 0, %s131
    %s135 = sphi 0, %s134
    %s151 = sphi 0, %s135
  $region4: #{pointnet2_backbone_forward.8} parent=0 // loop_header_branch
    %14 = sbr.rel (%p12) target = $region8
  $region5: #{pointnet2_backbone_forward.8} parent=0 // loop_body
    %s16 = ssub.s32 %s11, 1
    %s17 = ssub.s32 %s11, 2
    %s18 = sadd.s32 %s11, 1
    %s19 = ssub.s32 %s11, %s18
    %p20 = scmp.eq.s32.totalorder %s19, 0
    %s22 = sadd.s32 %s21, 1
    %s23 = scalar_select %p20, %s21, %s22
    %p26 = pneg %p20
    %p27 = scmp.eq.s32.totalorder %s11, 1
    %p28 = por %p26, %p27
    %p29 = scmp.ne.s32.totalorder %s21, %s24
    %p30 = scmp.eq.s32.totalorder %s11, 0
    %p31 = por %p29, %p30
    %p32 = scmp.ne.s32.totalorder %s21, %s24
    %p33 = scmp.eq.s32.totalorder %s16, 1
    %p34 = por %p32, %p33
    %p35 = scmp.ne.s32.totalorder %s24, %s25
    %p36 = scmp.eq.s32.totalorder %s16, 0
    %p37 = por %p35, %p36
    %p38 = scmp.ne.s32.totalorder %s24, %s25
    %p39 = scmp.eq.s32.totalorder %s17, 1
    %p40 = por %p38, %p39
    %p42 = scmp.ne.s32.totalorder %s25, %s41
    %p43 = scmp.eq.s32.totalorder %s17, 0
    %p44 = por %p42, %p43
    %s46 = sadd.s32 %s45, 1
    %p49 = scmp.eq.s32.totalorder %s11, 1
    %p50 = scmp.ne.s32.totalorder %s45, %s47
    %p51 = scmp.eq.s32.totalorder %s11, 0
    %p52 = por %p50, %p51
    %p53 = scmp.ne.s32.totalorder %s45, %s47
    %p54 = scmp.eq.s32.totalorder %s16, 1
    %p55 = por %p53, %p54
    %p56 = scmp.ne.s32.totalorder %s47, %s48
    %p57 = scmp.eq.s32.totalorder %s16, 0
    %p58 = por %p56, %p57
    %p59 = scmp.ne.s32.totalorder %s47, %s48
    %p60 = scmp.eq.s32.totalorder %s17, 1
    %p61 = por %p59, %p60
    %p63 = scmp.ne.s32.totalorder %s48, %s62
    %p64 = scmp.eq.s32.totalorder %s17, 0
    %p65 = por %p63, %p64
    %s67 = sadd.s32 %s66, 1
    %p70 = scmp.eq.s32.totalorder %s11, 1
    %p71 = scmp.ne.s32.totalorder %s66, %s68
    %p72 = scmp.eq.s32.totalorder %s11, 0
    %p73 = por %p71, %p72
    %p74 = scmp.ne.s32.totalorder %s66, %s68
    %p75 = scmp.eq.s32.totalorder %s16, 1
    %p76 = por %p74, %p75
    %p77 = scmp.ne.s32.totalorder %s68, %s69
    %p78 = scmp.eq.s32.totalorder %s16, 0
    %p79 = por %p77, %p78
    %p80 = scmp.ne.s32.totalorder %s68, %s69
    %p81 = scmp.eq.s32.totalorder %s17, 1
    %p82 = por %p80, %p81
    %p84 = scmp.ne.s32.totalorder %s69, %s83
    %p85 = scmp.eq.s32.totalorder %s17, 0
    %p86 = por %p84, %p85
    %s88 = sadd.s32 %s87, 1
    %p91 = scmp.eq.s32.totalorder %s11, 1
    %p92 = scmp.ne.s32.totalorder %s87, %s89
    %p93 = scmp.eq.s32.totalorder %s11, 0
    %p94 = por %p92, %p93
    %p95 = scmp.ne.s32.totalorder %s87, %s89
    %p96 = scmp.eq.s32.totalorder %s16, 1
    %p97 = por %p95, %p96
    %p98 = scmp.ne.s32.totalorder %s89, %s90
    %p99 = scmp.eq.s32.totalorder %s16, 0
    %p100 = por %p98, %p99
    %p101 = scmp.ne.s32.totalorder %s89, %s90
    %p102 = scmp.eq.s32.totalorder %s17, 1
    %p103 = por %p101, %p102
    %p105 = scmp.ne.s32.totalorder %s90, %s104
    %p106 = scmp.eq.s32.totalorder %s17, 0
    %p107 = por %p105, %p106
    %s109 = sadd.s32 %s108, 1
    %p112 = scmp.eq.s32.totalorder %s11, 1
    %p113 = scmp.ne.s32.totalorder %s108, %s110
    %p114 = scmp.eq.s32.totalorder %s11, 0
    %p115 = por %p113, %p114
    %p116 = scmp.ne.s32.totalorder %s108, %s110
    %p117 = scmp.eq.s32.totalorder %s16, 1
    %p118 = por %p116, %p117
    %p119 = scmp.ne.s32.totalorder %s110, %s111
    %p120 = scmp.eq.s32.totalorder %s16, 0
    %p121 = por %p119, %p120
    %p122 = scmp.ne.s32.totalorder %s110, %s111
    %p123 = scmp.eq.s32.totalorder %s17, 1
    %p124 = por %p122, %p123
    %p126 = scmp.ne.s32.totalorder %s111, %s125
    %p127 = scmp.eq.s32.totalorder %s17, 0
    %p128 = por %p126, %p127
    %s129 = ssub.s32 %s11, %s18
    %p130 = scmp.eq.s32.totalorder %s129, 0
    %s132 = sadd.s32 %s131, 1
    %s133 = scalar_select %p130, %s131, %s132
    %p136 = pneg %p130
    %p137 = scmp.eq.s32.totalorder %s11, 1
    %p138 = por %p136, %p137
    %p139 = scmp.ne.s32.totalorder %s131, %s134
    %p140 = scmp.eq.s32.totalorder %s11, 0
    %p141 = por %p139, %p140
    %p142 = scmp.ne.s32.totalorder %s131, %s134
    %p143 = scmp.eq.s32.totalorder %s16, 1
    %p144 = por %p142, %p143
    %p145 = scmp.ne.s32.totalorder %s134, %s135
    %p146 = scmp.eq.s32.totalorder %s16, 0
    %p147 = por %p145, %p146
    %p148 = scmp.ne.s32.totalorder %s134, %s135
    %p149 = scmp.eq.s32.totalorder %s17, 1
    %p150 = por %p148, %p149
    %p152 = scmp.ne.s32.totalorder %s135, %s151
    %p153 = scmp.eq.s32.totalorder %s17, 0
    %p154 = por %p152, %p153
    %p155 = scmp.le.s32.totalorder 1, %s11
    %p156 = scmp.lt.s32.totalorder %s11, 3
    %p157 = pnand %p155, %p156
    %p158 = pneg %p157
    // Predicated region
    $region9: #{pointnet2_backbone_forward.8} parent=5 // pred_check
      _
    $region10: #{pointnet2_backbone_forward.8} parent=5 // pred_check_branch
      %160 = sbr.rel (%p157) target = $region12
    $region11: #{pointnet2_backbone_forward.8} parent=5 // pred_region
      %s161 = ssub.s32 %s11, 1
      // Predicated region
      $region13: #{pointnet2_backbone_forward.8} parent=11 // pred_check
        %p162 = pneg %p58
      $region14: #{pointnet2_backbone_forward.8} parent=11 // pred_check_branch
        %164 = sbr.rel (%p162) target = $region16
      $region15: #{pointnet2_backbone_forward.8} parent=11 // pred_region
        _
      $region16: #{pointnet2_backbone_forward.8} parent=11 // pred_fallthru
        _
      // Predicated region
      $region17: #{pointnet2_backbone_forward.8} parent=11 // pred_check
        %p165 = pneg %p79
      $region18: #{pointnet2_backbone_forward.8} parent=11 // pred_check_branch
        %167 = sbr.rel (%p165) target = $region20
      $region19: #{pointnet2_backbone_forward.8} parent=11 // pred_region
        _
      $region20: #{pointnet2_backbone_forward.8} parent=11 // pred_fallthru
        _
      // Predicated region
      $region21: #{pointnet2_backbone_forward.8} parent=11 // pred_check
        %p168 = pneg %p100
      $region22: #{pointnet2_backbone_forward.8} parent=11 // pred_check_branch
        %170 = sbr.rel (%p168) target = $region24
      $region23: #{pointnet2_backbone_forward.8} parent=11 // pred_region
        _
      $region24: #{pointnet2_backbone_forward.8} parent=11 // pred_fallthru
        _
      // Predicated region
      $region25: #{pointnet2_backbone_forward.8} parent=11 // pred_check
        %p171 = pneg %p121
      $region26: #{pointnet2_backbone_forward.8} parent=11 // pred_check_branch
        %173 = sbr.rel (%p171) target = $region28
      $region27: #{pointnet2_backbone_forward.8} parent=11 // pred_region
        _
      $region28: #{pointnet2_backbone_forward.8} parent=11 // pred_fallthru
        _
    $region12: #{pointnet2_backbone_forward.8} parent=5 // pred_fallthru
      _
    %p174 = scmp.lt.s32.totalorder %s11, 2
    // Predicated region
    $region29: #{pointnet2_backbone_forward.8} parent=5 // pred_check
      %p175 = pneg %p174
    $region30: #{pointnet2_backbone_forward.8} parent=5 // pred_check_branch
      %177 = sbr.rel (%p175) target = $region32
    $region31: #{pointnet2_backbone_forward.8} parent=5 // pred_region
      // Predicated region
      $region33: #{pointnet2_backbone_forward.8} parent=31 // pred_check
        %p178 = pneg %p31
      $region34: #{pointnet2_backbone_forward.8} parent=31 // pred_check_branch
        %180 = sbr.rel (%p178) target = $region36
      $region35: #{pointnet2_backbone_forward.8} parent=31 // pred_region
        %s181 = smul.u32 16, %s11
        %p182 = scmp.lt.s32.totalorder %s181, 31
        %s183 = scalar_select %p182, %s181, 31
        %s184 = smul.addr %s183, 4
        %s185 = scalar_lea.vmem %s0, %s184
        %s186 = smul.u32 16, %s11
      $region36: #{pointnet2_backbone_forward.8} parent=31 // pred_fallthru
        _
    $region32: #{pointnet2_backbone_forward.8} parent=5 // pred_fallthru
      _
    %p187 = scmp.le.s32.totalorder 1, %s11
    %p188 = scmp.lt.s32.totalorder %s11, 3
    %p189 = pnand %p187, %p188
    %p190 = pneg %p189
    // Predicated region
    $region37: #{pointnet2_backbone_forward.8} parent=5 // pred_check
      _
    $region38: #{pointnet2_backbone_forward.8} parent=5 // pred_check_branch
      %192 = sbr.rel (%p189) target = $region40
    $region39: #{pointnet2_backbone_forward.8} parent=5 // pred_region
      %s193 = ssub.s32 %s11, 1
      %s194 = smul.u32 16, %s16
      %p195 = scmp.lt.s32.totalorder %s194, 31
      %s196 = scalar_select %p195, %s194, 31
      %s197 = smul.addr %s196, 4
      %s198 = scalar_lea.vmem %s0, %s197
      %p199 = pneg %p37
      %p200 = pneg %p34
      %p201 = pneg %p58
      %p202 = pneg %p55
      %p203 = pneg %p79
      %p204 = pneg %p76
      %p205 = pneg %p100
      %p206 = pneg %p97
      %p207 = pneg %p121
      %p208 = pneg %p118
      %p209 = pneg %p147
      %p210 = pneg %p144
      %s211 = smul.u32 2, %s16
      %p212 = scmp.lt.s32.totalorder %s211, 3
      %s213 = scalar_select %p212, %s211, 3
      %s214 = smul.addr %s213, 8
      %s215 = scalar_lea.vmem %s5, %s214
      %s216 = smul.u32 16, %s16
      %p217 = scmp.lt.s32.totalorder %s216, 31
      %s218 = scalar_select %p217, %s216, 31
      %s219 = smul.addr %s218, 4
      %s220 = scalar_lea.vmem %s0, %s219
      %s221 = smul.u32 16, %s16
      %s222 = smul.u32 2, %s16
      %p223 = scmp.lt.s32.totalorder %s222, 3
      %s224 = scalar_select %p223, %s222, 3
      %s225 = smul.addr %s224, 8
      %s226 = scalar_lea.vmem %s5, %s225
      %s227 = smul.u32 2, %s16
      %v229 = vld [vmem:[%s220] sm:$0xf]
      %v230 = vld [vmem:[%s220 + $0x4] sm:$0xf]
      %v231 = vld [vmem:[%s220 + $0x8] sm:$0xf]
      %v232 = vld [vmem:[%s220 + $0xc] sm:$0xf]
      %v233 = vld [vmem:[%s220 + $0x10] sm:$0xf]
      %v234 = vld [vmem:[%s220 + $0x14] sm:$0xf]
      %v235 = vld [vmem:[%s220 + $0x18] sm:$0xf]
      %v236 = vld [vmem:[%s220 + $0x1c] sm:$0xf]
      %v237 = vld [vmem:[%s220 + $0x20] sm:$0xf]
      %v238 = vld [vmem:[%s220 + $0x24] sm:$0xf]
      %v239 = vld [vmem:[%s220 + $0x28] sm:$0xf]
      %v240 = vld [vmem:[%s220 + $0x2c] sm:$0xf]
      %v241 = vld [vmem:[%s220 + $0x30] sm:$0xf]
      %v242 = vld [vmem:[%s220 + $0x34] sm:$0xf]
      %v243 = vld [vmem:[%s220 + $0x38] sm:$0xf]
      %v244 = vld [vmem:[%s220 + $0x3c] sm:$0xf]
      %v245 = vld [vmem:[%s1] sm:$0xf]
      %v246 = vld [vmem:[%s1 + $0x4] sm:$0xf]
      %v247 = vld [vmem:[%s1 + $0x8] sm:$0xf]
      %v248 = vld [vmem:[%s1 + $0xc] sm:$0xf]
      %v249 = vld [vmem:[%s1 + $0x10] sm:$0xf]
      %v250 = vld [vmem:[%s1 + $0x14] sm:$0xf]
      %v251 = vld [vmem:[%s1 + $0x18] sm:$0xf]
      %v252 = vld [vmem:[%s1 + $0x1c] sm:$0xf]
      %v253 = vld [vmem:[%s1 + $0x20] sm:$0xf]
      %v254 = vld [vmem:[%s1 + $0x24] sm:$0xf]
      %v255 = vld [vmem:[%s1 + $0x28] sm:$0xf]
      %v256 = vld [vmem:[%s1 + $0x2c] sm:$0xf]
      %v257 = vld [vmem:[%s1 + $0x30] sm:$0xf]
      %v258 = vld [vmem:[%s1 + $0x34] sm:$0xf]
      %v259 = vld [vmem:[%s1 + $0x38] sm:$0xf]
      %v260 = vld [vmem:[%s1 + $0x3c] sm:$0xf]
      %v261 = vld [vmem:[%s2] sm:$0x1]
      %v263 = vlaneseq
      %v264 = vshrl.u32 %v263, 7
      %v265 = vsub.s32 0, %v264
      %v266 = vrot.slane %v261, %v265
      %v284 = vunpack.c.l.b16 %v229
      %v285 = vunpack.c.l.b16 %v230
      %v286 = vunpack.c.l.b16 %v231
      %v287 = vunpack.c.l.b16 %v232
      %v288 = vunpack.c.l.b16 %v233
      %v289 = vunpack.c.l.b16 %v234
      %v290 = vunpack.c.l.b16 %v235
      %v291 = vunpack.c.l.b16 %v236
      %v292 = vunpack.c.l.b16 %v237
      %v293 = vunpack.c.l.b16 %v238
      %v294 = vunpack.c.l.b16 %v239
      %v295 = vunpack.c.l.b16 %v240
      %v296 = vunpack.c.l.b16 %v241
      %v297 = vunpack.c.l.b16 %v242
      %v298 = vunpack.c.l.b16 %v243
      %v299 = vunpack.c.l.b16 %v244
      %v300 = vpack.c.b16 %v285, %v284
      %v301 = vpack.c.b16 %v287, %v286
      %v302 = vpack.c.b16 %v289, %v288
      %v303 = vpack.c.b16 %v291, %v290
      %v304 = vpack.c.b16 %v293, %v292
      %v305 = vpack.c.b16 %v295, %v294
      %v306 = vpack.c.b16 %v297, %v296
      %v307 = vpack.c.b16 %v299, %v298
      %v332 = vunpack.c.l.b16 %v245
      %v333 = vunpack.c.l.b16 %v246
      %v334 = vunpack.c.l.b16 %v247
      %v335 = vunpack.c.l.b16 %v248
      %v336 = vunpack.c.l.b16 %v249
      %v337 = vunpack.c.l.b16 %v250
      %v338 = vunpack.c.l.b16 %v251
      %v339 = vunpack.c.l.b16 %v252
      %v340 = vunpack.c.l.b16 %v253
      %v341 = vunpack.c.l.b16 %v254
      %v342 = vunpack.c.l.b16 %v255
      %v343 = vunpack.c.l.b16 %v256
      %v344 = vunpack.c.l.b16 %v257
      %v345 = vunpack.c.l.b16 %v258
      %v346 = vunpack.c.l.b16 %v259
      %v347 = vunpack.c.l.b16 %v260
      %v348 = vpack.c.b16 %v333, %v332
      %v349 = vpack.c.b16 %v335, %v334
      %v350 = vpack.c.b16 %v337, %v336
      %v351 = vpack.c.b16 %v339, %v338
      %v352 = vpack.c.b16 %v341, %v340
      %v353 = vpack.c.b16 %v343, %v342
      %v354 = vpack.c.b16 %v345, %v344
      %v355 = vpack.c.b16 %v347, %v346
      %364 = vmatprep.subr.bf16.mxu0 0
      %365 = vmatpush1.bf16.msra.mxu0 %v348
      %366 = vmatprep.subr.bf16.mxu0 0
      %367 = vmatpush1.bf16.msra.mxu0 %v349
      %368 = vmatprep.subr.bf16.mxu0 0
      %369 = vmatpush1.bf16.msra.mxu0 %v350
      %370 = vmatprep.subr.bf16.mxu0 0
      %371 = vmatpush1.bf16.msra.mxu0 %v351
      %372 = vmatprep.subr.bf16.mxu0 0
      %373 = vmatpush1.bf16.msra.mxu0 %v352
      %374 = vmatprep.subr.bf16.mxu0 0
      %375 = vmatpush1.bf16.msra.mxu0 %v353
      %376 = vmatprep.subr.bf16.mxu0 0
      %377 = vmatpush1.bf16.msra.mxu0 %v354
      %378 = vmatprep.subr.bf16.mxu0 0
      %379 = vmatpush1.bf16.msra.mxu0 %v355
      %380 = vmatprep.subr.bf16.mxu0 0
      %381 = vmatpush1.bf16.msra.mxu0 0
      %382 = vmatprep.subr.bf16.mxu0 0
      %383 = vmatpush1.bf16.msra.mxu0 0
      %384 = vmatprep.subr.bf16.mxu0 0
      %385 = vmatpush1.bf16.msra.mxu0 0
      %386 = vmatprep.subr.bf16.mxu0 0
      %387 = vmatpush1.bf16.msra.mxu0 0
      %388 = vmatprep.subr.bf16.mxu0 0
      %389 = vmatpush1.bf16.msra.mxu0 0
      %390 = vmatprep.subr.bf16.mxu0 0
      %391 = vmatpush1.bf16.msra.mxu0 0
      %392 = vmatprep.subr.bf16.mxu0 0
      %393 = vmatpush1.bf16.msra.mxu0 0
      %394 = vmatprep.subr.bf16.mxu0 0
      %395 = vmatpush1.bf16.msra.mxu0 0
      %396 = vmatprep.mubr.bf16.mxu0 0
      %397 = vmatmul.mubr.bf16.gmra.mrb[0].mxu0 %v300
      %v398 = vpop.f32.mrb[0].mxu0
      %v399 = vadd.f32 %v266, %v398
      %v400 = vpop.f32.mrb[0].mxu0
      %v401 = vpop.f32.mrb[0].mxu0
      %v402 = vadd.f32 %v266, %v401
      %v403 = vpop.f32.mrb[0].mxu0
      %404 = vmatprep.mubr.bf16.mxu0 0
      %405 = vmatmul.mubr.bf16.gmra.mrb[0].mxu0 %v301
      %v406 = vpop.f32.mrb[0].mxu0
      %v407 = vadd.f32 %v266, %v406
      %v408 = vpop.f32.mrb[0].mxu0
      %v409 = vpop.f32.mrb[0].mxu0
      %v410 = vadd.f32 %v266, %v409
      %v411 = vpop.f32.mrb[0].mxu0
      %412 = vmatprep.mubr.bf16.mxu0 0
      %413 = vmatmul.mubr.bf16.gmra.mrb[0].mxu0 %v302
      %v414 = vpop.f32.mrb[0].mxu0
      %v415 = vadd.f32 %v266, %v414
      %v416 = vpop.f32.mrb[0].mxu0
      %v417 = vpop.f32.mrb[0].mxu0
      %v418 = vadd.f32 %v266, %v417
      %v419 = vpop.f32.mrb[0].mxu0
      %420 = vmatprep.mubr.bf16.mxu0 0
      %421 = vmatmul.mubr.bf16.gmra.mrb[0].mxu0 %v303
      %v422 = vpop.f32.mrb[0].mxu0
      %v423 = vadd.f32 %v266, %v422
      %v424 = vpop.f32.mrb[0].mxu0
      %v425 = vpop.f32.mrb[0].mxu0
      %v426 = vadd.f32 %v266, %v425
      %v427 = vpop.f32.mrb[0].mxu0
      %428 = vmatprep.mubr.bf16.mxu0 0
      %429 = vmatmul.mubr.bf16.gmra.mrb[0].mxu0 %v304
      %v430 = vpop.f32.mrb[0].mxu0
      %v431 = vadd.f32 %v266, %v430
      %v432 = vpop.f32.mrb[0].mxu0
      %v433 = vpop.f32.mrb[0].mxu0
      %v434 = vadd.f32 %v266, %v433
      %v435 = vpop.f32.mrb[0].mxu0
      %436 = vmatprep.mubr.bf16.mxu0 0
      %437 = vmatmul.mubr.bf16.gmra.mrb[0].mxu0 %v305
      %v438 = vpop.f32.mrb[0].mxu0
      %v439 = vadd.f32 %v266, %v438
      %v440 = vpop.f32.mrb[0].mxu0
      %v441 = vpop.f32.mrb[0].mxu0
      %v442 = vadd.f32 %v266, %v441
      %v443 = vpop.f32.mrb[0].mxu0
      %444 = vmatprep.mubr.bf16.mxu0 0
      %445 = vmatmul.mubr.bf16.gmra.mrb[0].mxu0 %v306
      %v446 = vpop.f32.mrb[0].mxu0
      %v447 = vadd.f32 %v266, %v446
      %v448 = vpop.f32.mrb[0].mxu0
      %v449 = vpop.f32.mrb[0].mxu0
      %v450 = vadd.f32 %v266, %v449
      %v451 = vpop.f32.mrb[0].mxu0
      %452 = vmatprep.mubr.bf16.mxu0 0
      %453 = vmatmul.mubr.bf16.gmra.mrb[0].mxu0 %v307
      %v454 = vpop.f32.mrb[0].mxu0
      %v455 = vadd.f32 %v266, %v454
      %v456 = vpop.f32.mrb[0].mxu0
      %v457 = vpop.f32.mrb[0].mxu0
      %v458 = vadd.f32 %v266, %v457
      %v459 = vpop.f32.mrb[0].mxu0
      %460 = vdwg.mxu0
      %v461 = vmax.f32 %v399, 0.0
      %v462 = vmax.f32 %v402, 0.0
      %v463 = vmax.f32 %v407, 0.0
      %v464 = vmax.f32 %v410, 0.0
      %v465 = vmax.f32 %v415, 0.0
      %v466 = vmax.f32 %v418, 0.0
      %v467 = vmax.f32 %v423, 0.0
      %v468 = vmax.f32 %v426, 0.0
      %v469 = vmax.f32 %v431, 0.0
      %v470 = vmax.f32 %v434, 0.0
      %v471 = vmax.f32 %v439, 0.0
      %v472 = vmax.f32 %v442, 0.0
      %v473 = vmax.f32 %v447, 0.0
      %v474 = vmax.f32 %v450, 0.0
      %v475 = vmax.f32 %v455, 0.0
      %v476 = vmax.f32 %v458, 0.0
      %v477 = vpack.c.bf16 %v462, %v461
      %v478 = vpack.c.bf16 %v464, %v463
      %v479 = vpack.c.bf16 %v466, %v465
      %v480 = vpack.c.bf16 %v468, %v467
      %v481 = vpack.c.bf16 %v470, %v469
      %v482 = vpack.c.bf16 %v472, %v471
      %v483 = vpack.c.bf16 %v474, %v473
      %v484 = vpack.c.bf16 %v476, %v475
      %v485 = vld [vmem:[%s3] sm:$0xf]
      %v486 = vld [vmem:[%s3 + $0x4] sm:$0xf]
      %v487 = vld [vmem:[%s3 + $0x8] sm:$0xf]
      %v488 = vld [vmem:[%s3 + $0xc] sm:$0xf]
      %v489 = vld [vmem:[%s3 + $0x10] sm:$0xf]
      %v490 = vld [vmem:[%s3 + $0x14] sm:$0xf]
      %v491 = vld [vmem:[%s3 + $0x18] sm:$0xf]
      %v492 = vld [vmem:[%s3 + $0x1c] sm:$0xf]
      %v493 = vld [vmem:[%s3 + $0x20] sm:$0xf]
      %v494 = vld [vmem:[%s3 + $0x24] sm:$0xf]
      %v495 = vld [vmem:[%s3 + $0x28] sm:$0xf]
      %v496 = vld [vmem:[%s3 + $0x2c] sm:$0xf]
      %v497 = vld [vmem:[%s3 + $0x30] sm:$0xf]
      %v498 = vld [vmem:[%s3 + $0x34] sm:$0xf]
      %v499 = vld [vmem:[%s3 + $0x38] sm:$0xf]
      %v500 = vld [vmem:[%s3 + $0x3c] sm:$0xf]
      %v501 = vld [vmem:[%s4] sm:$0x1]
      %v503 = vlaneseq
      %v504 = vshrl.u32 %v503, 7
      %v505 = vsub.s32 0, %v504
      %v506 = vrot.slane %v501, %v505
      %v524 = vunpack.c.l.b16 %v485
      %v525 = vunpack.c.l.b16 %v486
      %v526 = vunpack.c.l.b16 %v487
      %v527 = vunpack.c.l.b16 %v488
      %v528 = vunpack.c.l.b16 %v489
      %v529 = vunpack.c.l.b16 %v490
      %v530 = vunpack.c.l.b16 %v491
      %v531 = vunpack.c.l.b16 %v492
      %v532 = vunpack.c.l.b16 %v493
      %v533 = vunpack.c.l.b16 %v494
      %v534 = vunpack.c.l.b16 %v495
      %v535 = vunpack.c.l.b16 %v496
      %v536 = vunpack.c.l.b16 %v497
      %v537 = vunpack.c.l.b16 %v498
      %v538 = vunpack.c.l.b16 %v499
      %v539 = vunpack.c.l.b16 %v500
      %v540 = vpack.c.b16 %v525, %v524
      %v541 = vpack.c.b16 %v527, %v526
      %v542 = vpack.c.b16 %v529, %v528
      %v543 = vpack.c.b16 %v531, %v530
      %v544 = vpack.c.b16 %v533, %v532
      %v545 = vpack.c.b16 %v535, %v534
      %v546 = vpack.c.b16 %v537, %v536
      %v547 = vpack.c.b16 %v539, %v538
      %556 = vmatprep.subr.bf16.mxu0 0
      %557 = vmatpush1.bf16.msra.mxu0 %v540
      %558 = vmatprep.subr.bf16.mxu0 0
      %559 = vmatpush1.bf16.msra.mxu0 %v541
      %560 = vmatprep.subr.bf16.mxu0 0
      %561 = vmatpush1.bf16.msra.mxu0 %v542
      %562 = vmatprep.subr.bf16.mxu0 0
      %563 = vmatpush1.bf16.msra.mxu0 %v543
      %564 = vmatprep.subr.bf16.mxu0 0
      %565 = vmatpush1.bf16.msra.mxu0 %v544
      %566 = vmatprep.subr.bf16.mxu0 0
      %567 = vmatpush1.bf16.msra.mxu0 %v545
      %568 = vmatprep.subr.bf16.mxu0 0
      %569 = vmatpush1.bf16.msra.mxu0 %v546
      %570 = vmatprep.subr.bf16.mxu0 0
      %571 = vmatpush1.bf16.msra.mxu0 %v547
      %572 = vmatprep.subr.bf16.mxu0 0
      %573 = vmatpush1.bf16.msra.mxu0 0
      %574 = vmatprep.subr.bf16.mxu0 0
      %575 = vmatpush1.bf16.msra.mxu0 0
      %576 = vmatprep.subr.bf16.mxu0 0
      %577 = vmatpush1.bf16.msra.mxu0 0
      %578 = vmatprep.subr.bf16.mxu0 0
      %579 = vmatpush1.bf16.msra.mxu0 0
      %580 = vmatprep.subr.bf16.mxu0 0
      %581 = vmatpush1.bf16.msra.mxu0 0
      %582 = vmatprep.subr.bf16.mxu0 0
      %583 = vmatpush1.bf16.msra.mxu0 0
      %584 = vmatprep.subr.bf16.mxu0 0
      %585 = vmatpush1.bf16.msra.mxu0 0
      %586 = vmatprep.subr.bf16.mxu0 0
      %587 = vmatpush1.bf16.msra.mxu0 0
      %588 = vmatprep.mubr.bf16.mxu0 0
      %589 = vmatmul.mubr.bf16.gmra.mrb[0].mxu0 %v477
      %v590 = vpop.f32.mrb[0].mxu0
      %v591 = vadd.f32 %v506, %v590
      %v592 = vpop.f32.mrb[0].mxu0
      %v593 = vpop.f32.mrb[0].mxu0
      %v594 = vadd.f32 %v506, %v593
      %v595 = vpop.f32.mrb[0].mxu0
      %596 = vmatprep.mubr.bf16.mxu0 0
      %597 = vmatmul.mubr.bf16.gmra.mrb[0].mxu0 %v478
      %v598 = vpop.f32.mrb[0].mxu0
      %v599 = vadd.f32 %v506, %v598
      %v600 = vpop.f32.mrb[0].mxu0
      %v601 = vpop.f32.mrb[0].mxu0
      %v602 = vadd.f32 %v506, %v601
      %v603 = vpop.f32.mrb[0].mxu0
      %604 = vmatprep.mubr.bf16.mxu0 0
      %605 = vmatmul.mubr.bf16.gmra.mrb[0].mxu0 %v479
      %v606 = vpop.f32.mrb[0].mxu0
      %v607 = vadd.f32 %v506, %v606
      %v608 = vpop.f32.mrb[0].mxu0
      %v609 = vpop.f32.mrb[0].mxu0
      %v610 = vadd.f32 %v506, %v609
      %v611 = vpop.f32.mrb[0].mxu0
      %612 = vmatprep.mubr.bf16.mxu0 0
      %613 = vmatmul.mubr.bf16.gmra.mrb[0].mxu0 %v480
      %v614 = vpop.f32.mrb[0].mxu0
      %v615 = vadd.f32 %v506, %v614
      %v616 = vpop.f32.mrb[0].mxu0
      %v617 = vpop.f32.mrb[0].mxu0
      %v618 = vadd.f32 %v506, %v617
      %v619 = vpop.f32.mrb[0].mxu0
      %620 = vmatprep.mubr.bf16.mxu0 0
      %621 = vmatmul.mubr.bf16.gmra.mrb[0].mxu0 %v481
      %v622 = vpop.f32.mrb[0].mxu0
      %v623 = vadd.f32 %v506, %v622
      %v624 = vpop.f32.mrb[0].mxu0
      %v625 = vpop.f32.mrb[0].mxu0
      %v626 = vadd.f32 %v506, %v625
      %v627 = vpop.f32.mrb[0].mxu0
      %628 = vmatprep.mubr.bf16.mxu0 0
      %629 = vmatmul.mubr.bf16.gmra.mrb[0].mxu0 %v482
      %v630 = vpop.f32.mrb[0].mxu0
      %v631 = vadd.f32 %v506, %v630
      %v632 = vpop.f32.mrb[0].mxu0
      %v633 = vpop.f32.mrb[0].mxu0
      %v634 = vadd.f32 %v506, %v633
      %v635 = vpop.f32.mrb[0].mxu0
      %636 = vmatprep.mubr.bf16.mxu0 0
      %637 = vmatmul.mubr.bf16.gmra.mrb[0].mxu0 %v483
      %v638 = vpop.f32.mrb[0].mxu0
      %v639 = vadd.f32 %v506, %v638
      %v640 = vpop.f32.mrb[0].mxu0
      %v641 = vpop.f32.mrb[0].mxu0
      %v642 = vadd.f32 %v506, %v641
      %v643 = vpop.f32.mrb[0].mxu0
      %644 = vmatprep.mubr.bf16.mxu0 0
      %645 = vmatmul.mubr.bf16.gmra.mrb[0].mxu0 %v484
      %v646 = vpop.f32.mrb[0].mxu0
      %v647 = vadd.f32 %v506, %v646
      %v648 = vpop.f32.mrb[0].mxu0
      %v649 = vpop.f32.mrb[0].mxu0
      %v650 = vadd.f32 %v506, %v649
      %v651 = vpop.f32.mrb[0].mxu0
      %652 = vdwg.mxu0
      %v653 = vmax.f32 %v591, 0.0
      %v654 = vmax.f32 %v594, 0.0
      %v655 = vmax.f32 %v599, 0.0
      %v656 = vmax.f32 %v602, 0.0
      %v657 = vmax.f32 %v607, 0.0
      %v658 = vmax.f32 %v610, 0.0
      %v659 = vmax.f32 %v615, 0.0
      %v660 = vmax.f32 %v618, 0.0
      %v661 = vmax.f32 %v623, 0.0
      %v662 = vmax.f32 %v626, 0.0
      %v663 = vmax.f32 %v631, 0.0
      %v664 = vmax.f32 %v634, 0.0
      %v665 = vmax.f32 %v639, 0.0
      %v666 = vmax.f32 %v642, 0.0
      %v667 = vmax.f32 %v647, 0.0
      %v668 = vmax.f32 %v650, 0.0
      %v669 = vrot.slane %v653, 4
      %v670 = vmax.f32 %v653, %v669
      %v671 = vrot.slane %v670, 2
      %v672 = vmax.f32 %v670, %v671
      %v673 = vrot.slane %v672, 1
      %v674 = vmax.f32 %v672, %v673
      %v675 = vrot.slane %v654, 4
      %v676 = vmax.f32 %v654, %v675
      %v677 = vrot.slane %v676, 2
      %v678 = vmax.f32 %v676, %v677
      %v679 = vrot.slane %v678, 1
      %v680 = vmax.f32 %v678, %v679
      %v681 = vrot.slane %v655, 4
      %v682 = vmax.f32 %v655, %v681
      %v683 = vrot.slane %v682, 2
      %v684 = vmax.f32 %v682, %v683
      %v685 = vrot.slane %v684, 1
      %v686 = vmax.f32 %v684, %v685
      %v687 = vrot.slane %v656, 4
      %v688 = vmax.f32 %v656, %v687
      %v689 = vrot.slane %v688, 2
      %v690 = vmax.f32 %v688, %v689
      %v691 = vrot.slane %v690, 1
      %v692 = vmax.f32 %v690, %v691
      %v693 = vrot.slane %v657, 4
      %v694 = vmax.f32 %v657, %v693
      %v695 = vrot.slane %v694, 2
      %v696 = vmax.f32 %v694, %v695
      %v697 = vrot.slane %v696, 1
      %v698 = vmax.f32 %v696, %v697
      %v699 = vrot.slane %v658, 4
      %v700 = vmax.f32 %v658, %v699
      %v701 = vrot.slane %v700, 2
      %v702 = vmax.f32 %v700, %v701
      %v703 = vrot.slane %v702, 1
      %v704 = vmax.f32 %v702, %v703
      %v705 = vrot.slane %v659, 4
      %v706 = vmax.f32 %v659, %v705
      %v707 = vrot.slane %v706, 2
      %v708 = vmax.f32 %v706, %v707
      %v709 = vrot.slane %v708, 1
      %v710 = vmax.f32 %v708, %v709
      %v711 = vrot.slane %v660, 4
      %v712 = vmax.f32 %v660, %v711
      %v713 = vrot.slane %v712, 2
      %v714 = vmax.f32 %v712, %v713
      %v715 = vrot.slane %v714, 1
      %v716 = vmax.f32 %v714, %v715
      %v717 = vrot.slane %v661, 4
      %v718 = vmax.f32 %v661, %v717
      %v719 = vrot.slane %v718, 2
      %v720 = vmax.f32 %v718, %v719
      %v721 = vrot.slane %v720, 1
      %v722 = vmax.f32 %v720, %v721
      %v723 = vrot.slane %v662, 4
      %v724 = vmax.f32 %v662, %v723
      %v725 = vrot.slane %v724, 2
      %v726 = vmax.f32 %v724, %v725
      %v727 = vrot.slane %v726, 1
      %v728 = vmax.f32 %v726, %v727
      %v729 = vrot.slane %v663, 4
      %v730 = vmax.f32 %v663, %v729
      %v731 = vrot.slane %v730, 2
      %v732 = vmax.f32 %v730, %v731
      %v733 = vrot.slane %v732, 1
      %v734 = vmax.f32 %v732, %v733
      %v735 = vrot.slane %v664, 4
      %v736 = vmax.f32 %v664, %v735
      %v737 = vrot.slane %v736, 2
      %v738 = vmax.f32 %v736, %v737
      %v739 = vrot.slane %v738, 1
      %v740 = vmax.f32 %v738, %v739
      %v741 = vrot.slane %v665, 4
      %v742 = vmax.f32 %v665, %v741
      %v743 = vrot.slane %v742, 2
      %v744 = vmax.f32 %v742, %v743
      %v745 = vrot.slane %v744, 1
      %v746 = vmax.f32 %v744, %v745
      %v747 = vrot.slane %v666, 4
      %v748 = vmax.f32 %v666, %v747
      %v749 = vrot.slane %v748, 2
      %v750 = vmax.f32 %v748, %v749
      %v751 = vrot.slane %v750, 1
      %v752 = vmax.f32 %v750, %v751
      %v753 = vrot.slane %v667, 4
      %v754 = vmax.f32 %v667, %v753
      %v755 = vrot.slane %v754, 2
      %v756 = vmax.f32 %v754, %v755
      %v757 = vrot.slane %v756, 1
      %v758 = vmax.f32 %v756, %v757
      %v759 = vrot.slane %v668, 4
      %v760 = vmax.f32 %v668, %v759
      %v761 = vrot.slane %v760, 2
      %v762 = vmax.f32 %v760, %v761
      %v763 = vrot.slane %v762, 1
      %v764 = vmax.f32 %v762, %v763
      %vm781 = vcmask 1041409
      %v782 = vsel %vm781, %v680, %v674
      %vm783 = vcmask 1042434
      %v784 = vsel %vm783, %v686, %v782
      %vm785 = vcmask 1043459
      %v786 = vsel %vm785, %v692, %v784
      %vm787 = vcmask 1044484
      %v788 = vsel %vm787, %v698, %v786
      %vm789 = vcmask 1045509
      %v790 = vsel %vm789, %v704, %v788
      %vm791 = vcmask 1046534
      %v792 = vsel %vm791, %v710, %v790
      %vm793 = vcmask 1047559
      %v794 = vsel %vm793, %v716, %v792
      %v795 = vsel %vm781, %v728, %v722
      %v796 = vsel %vm783, %v734, %v795
      %v797 = vsel %vm785, %v740, %v796
      %v798 = vsel %vm787, %v746, %v797
      %v799 = vsel %vm789, %v752, %v798
      %v800 = vsel %vm791, %v758, %v799
      %v801 = vsel %vm793, %v764, %v800
      %804 = vst [vmem:[%s226] sm:$0xff] %v794
      %805 = vst [vmem:[%s226 + $0x8] sm:$0xff] %v801
      %s806 = smul.u32 2, %s16
      %p807 = scmp.lt.s32.totalorder %s806, 3
      %s808 = scalar_select %p807, %s806, 3
      %s809 = smul.addr %s808, 8
      %s810 = scalar_lea.vmem %s5, %s809
      // Predicated region
      $region41: #{pointnet2_backbone_forward.8} parent=39 // pred_check
        %p811 = pneg %p144
      $region42: #{pointnet2_backbone_forward.8} parent=39 // pred_check_branch
        %813 = sbr.rel (%p811) target = $region44
      $region43: #{pointnet2_backbone_forward.8} parent=39 // pred_region
        %s814 = smul.u32 2, %s16
      $region44: #{pointnet2_backbone_forward.8} parent=39 // pred_fallthru
        _
    $region40: #{pointnet2_backbone_forward.8} parent=5 // pred_fallthru
      _
    %p815 = scmp.le.s32.totalorder 2, %s11
    // Predicated region
    $region45: #{pointnet2_backbone_forward.8} parent=5 // pred_check
      %p816 = pneg %p815
    $region46: #{pointnet2_backbone_forward.8} parent=5 // pred_check_branch
      %818 = sbr.rel (%p816) target = $region48
    $region47: #{pointnet2_backbone_forward.8} parent=5 // pred_region
      %s819 = ssub.s32 %s11, 2
      // Predicated region
      $region49: #{pointnet2_backbone_forward.8} parent=47 // pred_check
        %p820 = pneg %p150
      $region50: #{pointnet2_backbone_forward.8} parent=47 // pred_check_branch
        %822 = sbr.rel (%p820) target = $region52
      $region51: #{pointnet2_backbone_forward.8} parent=47 // pred_region
        %s823 = smul.u32 2, %s17
        %p824 = scmp.lt.s32.totalorder %s823, 3
        %s825 = scalar_select %p824, %s823, 3
        %s826 = smul.addr %s825, 8
        %s827 = scalar_lea.vmem %s5, %s826
      $region52: #{pointnet2_backbone_forward.8} parent=47 // pred_fallthru
        _
    $region48: #{pointnet2_backbone_forward.8} parent=5 // pred_fallthru
      _
  $region6: #{pointnet2_backbone_forward.8} parent=0 // loop_footer
    %s15 = sadd.s32 1, %s11
  $region7: #{pointnet2_backbone_forward.8} parent=0 // loop_footer_branch
    %10 = sbr.rel target = $region3
  $region8: #{pointnet2_backbone_forward.8} parent=0 // loop_exit
    _

// kernel: neg.12
$region0: #{neg.12}
  #allocation0 [shape = 's32[1]{0}', space=sflag, size = 0x4, scoped, tag = 'scoped memory for neg.12']
  %s0 = inlined_call_operand.vmem [shape: f32[2,32,16], index: 0, kind: input, shape index: {}]
  %s1 = inlined_call_operand.vmem [shape: f32[2,32,16], index: 1, kind: output, shape index: {}]
  %v2 = vld [vmem:[%s0] sm:$0xff]
  %3 = xla_tuple %v2
  %4 = xla_tuple %3
  %v5 = vxor.u32 %v2, 2147483648
  %6 = xla_tuple %v5
  %7 = vst [vmem:[%s1] sm:$0xff] %v5
  %s8 = scalar_lea.vmem %s0, 16
  %v9 = vld [vmem:[%s8] sm:$0xff]
  %10 = xla_tuple %v9
  %11 = xla_tuple %10
  %v12 = vxor.u32 %v9, 2147483648
  %13 = xla_tuple %v12
  %s14 = scalar_lea.vmem %s1, 16
  %15 = vst [vmem:[%s14] sm:$0xff] %v12
  %s16 = scalar_lea.vmem %s0, 8
  %v17 = vld [vmem:[%s16] sm:$0xff]
  %18 = xla_tuple %v17
  %19 = xla_tuple %18
  %v20 = vxor.u32 %v17, 2147483648
  %21 = xla_tuple %v20
  %s22 = scalar_lea.vmem %s1, 8
  %23 = vst [vmem:[%s22] sm:$0xff] %v20
  %s24 = scalar_lea.vmem %s0, 24
  %v25 = vld [vmem:[%s24] sm:$0xff]
  %26 = xla_tuple %v25
  %27 = xla_tuple %26
  %v28 = vxor.u32 %v25, 2147483648
  %29 = xla_tuple %v28
  %s30 = scalar_lea.vmem %s1, 24
  %31 = vst [vmem:[%s30] sm:$0xff] %v28

// kernel: pointnet2_backbone_forward.9
$region0: #{pointnet2_backbone_forward.9}
  #allocation0 [shape = 'u32[]', space=smem, size = 0x4, offset = 0x4, fixed_abs, tag = 'smem constant byte address 0x4 - core index']
  #allocation1 [shape = 'u32[144,128]{1,0:T(1,128)}', space=vmem, size = 0x12000, scoped, tag = 'internal scratch']
  %s0 = inlined_call_operand.vmem [shape: bf16[512,128], index: 0, kind: input, shape index: {}]
  %s1 = inlined_call_operand.vmem [shape: bf16[128,128], index: 1, kind: input, shape index: {}]
  %s2 = inlined_call_operand.vmem [shape: f32[1,128], index: 2, kind: input, shape index: {}]
  %s3 = inlined_call_operand.vmem [shape: bf16[128,128], index: 3, kind: input, shape index: {}]
  %s4 = inlined_call_operand.vmem [shape: f32[1,128], index: 4, kind: input, shape index: {}]
  %s5 = inlined_call_operand.vmem [shape: f32[32,128], index: 5, kind: output, shape index: {}]
  %s6 = sld [smem:[#allocation0]]
  $region53: #{pointnet2_backbone_forward.9} parent=0
    _
  %s8 = ssub.s32 1, %s6
  %s9 = scalar_select 0, %s8, %s6
  loop: start=0, step=1, limit=4
  $region2: #{pointnet2_backbone_forward.9} parent=0 // loop_pre_header
    _
  $region3: #{pointnet2_backbone_forward.9} parent=0 // loop_header
    %s11 = sphi 0, %s15
    %p12 = scmp.ge.s32.totalorder %s11, 4
    %s21 = sphi 0, %s23
    %s24 = sphi 0, %s21
    %s25 = sphi 0, %s24
    %s41 = sphi 0, %s25
    %s45 = sphi 0, %s45
    %s47 = sphi 0, %s45
    %s48 = sphi 0, %s47
    %s62 = sphi 0, %s48
    %s66 = sphi 0, %s66
    %s68 = sphi 0, %s66
    %s69 = sphi 0, %s68
    %s83 = sphi 0, %s69
    %s87 = sphi 0, %s87
    %s89 = sphi 0, %s87
    %s90 = sphi 0, %s89
    %s104 = sphi 0, %s90
    %s108 = sphi 0, %s108
    %s110 = sphi 0, %s108
    %s111 = sphi 0, %s110
    %s125 = sphi 0, %s111
    %s131 = sphi 0, %s133
    %s134 = sphi 0, %s131
    %s135 = sphi 0, %s134
    %s151 = sphi 0, %s135
  $region4: #{pointnet2_backbone_forward.9} parent=0 // loop_header_branch
    %14 = sbr.rel (%p12) target = $region8
  $region5: #{pointnet2_backbone_forward.9} parent=0 // loop_body
    %s16 = ssub.s32 %s11, 1
    %s17 = ssub.s32 %s11, 2
    %s18 = sadd.s32 %s11, 1
    %s19 = ssub.s32 %s11, %s18
    %p20 = scmp.eq.s32.totalorder %s19, 0
    %s22 = sadd.s32 %s21, 1
    %s23 = scalar_select %p20, %s21, %s22
    %p26 = pneg %p20
    %p27 = scmp.eq.s32.totalorder %s11, 1
    %p28 = por %p26, %p27
    %p29 = scmp.ne.s32.totalorder %s21, %s24
    %p30 = scmp.eq.s32.totalorder %s11, 0
    %p31 = por %p29, %p30
    %p32 = scmp.ne.s32.totalorder %s21, %s24
    %p33 = scmp.eq.s32.totalorder %s16, 1
    %p34 = por %p32, %p33
    %p35 = scmp.ne.s32.totalorder %s24, %s25
    %p36 = scmp.eq.s32.totalorder %s16, 0
    %p37 = por %p35, %p36
    %p38 = scmp.ne.s32.totalorder %s24, %s25
    %p39 = scmp.eq.s32.totalorder %s17, 1
    %p40 = por %p38, %p39
    %p42 = scmp.ne.s32.totalorder %s25, %s41
    %p43 = scmp.eq.s32.totalorder %s17, 0
    %p44 = por %p42, %p43
    %s46 = sadd.s32 %s45, 1
    %p49 = scmp.eq.s32.totalorder %s11, 1
    %p50 = scmp.ne.s32.totalorder %s45, %s47
    %p51 = scmp.eq.s32.totalorder %s11, 0
    %p52 = por %p50, %p51
    %p53 = scmp.ne.s32.totalorder %s45, %s47
    %p54 = scmp.eq.s32.totalorder %s16, 1
    %p55 = por %p53, %p54
    %p56 = scmp.ne.s32.totalorder %s47, %s48
    %p57 = scmp.eq.s32.totalorder %s16, 0
    %p58 = por %p56, %p57
    %p59 = scmp.ne.s32.totalorder %s47, %s48
    %p60 = scmp.eq.s32.totalorder %s17, 1
    %p61 = por %p59, %p60
    %p63 = scmp.ne.s32.totalorder %s48, %s62
    %p64 = scmp.eq.s32.totalorder %s17, 0
    %p65 = por %p63, %p64
    %s67 = sadd.s32 %s66, 1
    %p70 = scmp.eq.s32.totalorder %s11, 1
    %p71 = scmp.ne.s32.totalorder %s66, %s68
    %p72 = scmp.eq.s32.totalorder %s11, 0
    %p73 = por %p71, %p72
    %p74 = scmp.ne.s32.totalorder %s66, %s68
    %p75 = scmp.eq.s32.totalorder %s16, 1
    %p76 = por %p74, %p75
    %p77 = scmp.ne.s32.totalorder %s68, %s69
    %p78 = scmp.eq.s32.totalorder %s16, 0
    %p79 = por %p77, %p78
    %p80 = scmp.ne.s32.totalorder %s68, %s69
    %p81 = scmp.eq.s32.totalorder %s17, 1
    %p82 = por %p80, %p81
    %p84 = scmp.ne.s32.totalorder %s69, %s83
    %p85 = scmp.eq.s32.totalorder %s17, 0
    %p86 = por %p84, %p85
    %s88 = sadd.s32 %s87, 1
    %p91 = scmp.eq.s32.totalorder %s11, 1
    %p92 = scmp.ne.s32.totalorder %s87, %s89
    %p93 = scmp.eq.s32.totalorder %s11, 0
    %p94 = por %p92, %p93
    %p95 = scmp.ne.s32.totalorder %s87, %s89
    %p96 = scmp.eq.s32.totalorder %s16, 1
    %p97 = por %p95, %p96
    %p98 = scmp.ne.s32.totalorder %s89, %s90
    %p99 = scmp.eq.s32.totalorder %s16, 0
    %p100 = por %p98, %p99
    %p101 = scmp.ne.s32.totalorder %s89, %s90
    %p102 = scmp.eq.s32.totalorder %s17, 1
    %p103 = por %p101, %p102
    %p105 = scmp.ne.s32.totalorder %s90, %s104
    %p106 = scmp.eq.s32.totalorder %s17, 0
    %p107 = por %p105, %p106
    %s109 = sadd.s32 %s108, 1
    %p112 = scmp.eq.s32.totalorder %s11, 1
    %p113 = scmp.ne.s32.totalorder %s108, %s110
    %p114 = scmp.eq.s32.totalorder %s11, 0
    %p115 = por %p113, %p114
    %p116 = scmp.ne.s32.totalorder %s108, %s110
    %p117 = scmp.eq.s32.totalorder %s16, 1
    %p118 = por %p116, %p117
    %p119 = scmp.ne.s32.totalorder %s110, %s111
    %p120 = scmp.eq.s32.totalorder %s16, 0
    %p121 = por %p119, %p120
    %p122 = scmp.ne.s32.totalorder %s110, %s111
    %p123 = scmp.eq.s32.totalorder %s17, 1
    %p124 = por %p122, %p123
    %p126 = scmp.ne.s32.totalorder %s111, %s125
    %p127 = scmp.eq.s32.totalorder %s17, 0
    %p128 = por %p126, %p127
    %s129 = ssub.s32 %s11, %s18
    %p130 = scmp.eq.s32.totalorder %s129, 0
    %s132 = sadd.s32 %s131, 1
    %s133 = scalar_select %p130, %s131, %s132
    %p136 = pneg %p130
    %p137 = scmp.eq.s32.totalorder %s11, 1
    %p138 = por %p136, %p137
    %p139 = scmp.ne.s32.totalorder %s131, %s134
    %p140 = scmp.eq.s32.totalorder %s11, 0
    %p141 = por %p139, %p140
    %p142 = scmp.ne.s32.totalorder %s131, %s134
    %p143 = scmp.eq.s32.totalorder %s16, 1
    %p144 = por %p142, %p143
    %p145 = scmp.ne.s32.totalorder %s134, %s135
    %p146 = scmp.eq.s32.totalorder %s16, 0
    %p147 = por %p145, %p146
    %p148 = scmp.ne.s32.totalorder %s134, %s135
    %p149 = scmp.eq.s32.totalorder %s17, 1
    %p150 = por %p148, %p149
    %p152 = scmp.ne.s32.totalorder %s135, %s151
    %p153 = scmp.eq.s32.totalorder %s17, 0
    %p154 = por %p152, %p153
    %p155 = scmp.le.s32.totalorder 1, %s11
    %p156 = scmp.lt.s32.totalorder %s11, 3
    %p157 = pnand %p155, %p156
    %p158 = pneg %p157
    // Predicated region
    $region9: #{pointnet2_backbone_forward.9} parent=5 // pred_check
      _
    $region10: #{pointnet2_backbone_forward.9} parent=5 // pred_check_branch
      %160 = sbr.rel (%p157) target = $region12
    $region11: #{pointnet2_backbone_forward.9} parent=5 // pred_region
      %s161 = ssub.s32 %s11, 1
      // Predicated region
      $region13: #{pointnet2_backbone_forward.9} parent=11 // pred_check
        %p162 = pneg %p58
      $region14: #{pointnet2_backbone_forward.9} parent=11 // pred_check_branch
        %164 = sbr.rel (%p162) target = $region16
      $region15: #{pointnet2_backbone_forward.9} parent=11 // pred_region
        _
      $region16: #{pointnet2_backbone_forward.9} parent=11 // pred_fallthru
        _
      // Predicated region
      $region17: #{pointnet2_backbone_forward.9} parent=11 // pred_check
        %p165 = pneg %p79
      $region18: #{pointnet2_backbone_forward.9} parent=11 // pred_check_branch
        %167 = sbr.rel (%p165) target = $region20
      $region19: #{pointnet2_backbone_forward.9} parent=11 // pred_region
        _
      $region20: #{pointnet2_backbone_forward.9} parent=11 // pred_fallthru
        _
      // Predicated region
      $region21: #{pointnet2_backbone_forward.9} parent=11 // pred_check
        %p168 = pneg %p100
      $region22: #{pointnet2_backbone_forward.9} parent=11 // pred_check_branch
        %170 = sbr.rel (%p168) target = $region24
      $region23: #{pointnet2_backbone_forward.9} parent=11 // pred_region
        _
      $region24: #{pointnet2_backbone_forward.9} parent=11 // pred_fallthru
        _
      // Predicated region
      $region25: #{pointnet2_backbone_forward.9} parent=11 // pred_check
        %p171 = pneg %p121
      $region26: #{pointnet2_backbone_forward.9} parent=11 // pred_check_branch
        %173 = sbr.rel (%p171) target = $region28
      $region27: #{pointnet2_backbone_forward.9} parent=11 // pred_region
        _
      $region28: #{pointnet2_backbone_forward.9} parent=11 // pred_fallthru
        _
    $region12: #{pointnet2_backbone_forward.9} parent=5 // pred_fallthru
      _
    %p174 = scmp.lt.s32.totalorder %s11, 2
    // Predicated region
    $region29: #{pointnet2_backbone_forward.9} parent=5 // pred_check
      %p175 = pneg %p174
    $region30: #{pointnet2_backbone_forward.9} parent=5 // pred_check_branch
      %177 = sbr.rel (%p175) target = $region32
    $region31: #{pointnet2_backbone_forward.9} parent=5 // pred_region
      // Predicated region
      $region33: #{pointnet2_backbone_forward.9} parent=31 // pred_check
        %p178 = pneg %p31
      $region34: #{pointnet2_backbone_forward.9} parent=31 // pred_check_branch
        %180 = sbr.rel (%p178) target = $region36
      $region35: #{pointnet2_backbone_forward.9} parent=31 // pred_region
        %s181 = smul.u32 32, %s11
        %p182 = scmp.lt.s32.totalorder %s181, 63
        %s183 = scalar_select %p182, %s181, 63
        %s184 = smul.addr %s183, 4
        %s185 = scalar_lea.vmem %s0, %s184
        %s186 = smul.u32 32, %s11
      $region36: #{pointnet2_backbone_forward.9} parent=31 // pred_fallthru
        _
    $region32: #{pointnet2_backbone_forward.9} parent=5 // pred_fallthru
      _
    %p187 = scmp.le.s32.totalorder 1, %s11
    %p188 = scmp.lt.s32.totalorder %s11, 3
    %p189 = pnand %p187, %p188
    %p190 = pneg %p189
    // Predicated region
    $region37: #{pointnet2_backbone_forward.9} parent=5 // pred_check
      _
    $region38: #{pointnet2_backbone_forward.9} parent=5 // pred_check_branch
      %192 = sbr.rel (%p189) target = $region40
    $region39: #{pointnet2_backbone_forward.9} parent=5 // pred_region
      %s193 = ssub.s32 %s11, 1
      %s194 = smul.u32 32, %s16
      %p195 = scmp.lt.s32.totalorder %s194, 63
      %s196 = scalar_select %p195, %s194, 63
      %s197 = smul.addr %s196, 4
      %s198 = scalar_lea.vmem %s0, %s197
      %p199 = pneg %p37
      %p200 = pneg %p34
      %p201 = pneg %p58
      %p202 = pneg %p55
      %p203 = pneg %p79
      %p204 = pneg %p76
      %p205 = pneg %p100
      %p206 = pneg %p97
      %p207 = pneg %p121
      %p208 = pneg %p118
      %p209 = pneg %p147
      %p210 = pneg %p144
      %s211 = smul.u32 2, %s16
      %p212 = scmp.lt.s32.totalorder %s211, 3
      %s213 = scalar_select %p212, %s211, 3
      %s214 = smul.addr %s213, 8
      %s215 = scalar_lea.vmem %s5, %s214
      %s216 = smul.u32 32, %s16
      %p217 = scmp.lt.s32.totalorder %s216, 63
      %s218 = scalar_select %p217, %s216, 63
      %s219 = smul.addr %s218, 4
      %s220 = scalar_lea.vmem %s0, %s219
      %s221 = smul.u32 32, %s16
      %s222 = smul.u32 2, %s16
      %p223 = scmp.lt.s32.totalorder %s222, 3
      %s224 = scalar_select %p223, %s222, 3
      %s225 = smul.addr %s224, 8
      %s226 = scalar_lea.vmem %s5, %s225
      %s227 = smul.u32 2, %s16
      %v229 = vld [vmem:[%s220] sm:$0xf]
      %v230 = vld [vmem:[%s220 + $0x4] sm:$0xf]
      %v231 = vld [vmem:[%s220 + $0x8] sm:$0xf]
      %v232 = vld [vmem:[%s220 + $0xc] sm:$0xf]
      %v233 = vld [vmem:[%s220 + $0x10] sm:$0xf]
      %v234 = vld [vmem:[%s220 + $0x14] sm:$0xf]
      %v235 = vld [vmem:[%s220 + $0x18] sm:$0xf]
      %v236 = vld [vmem:[%s220 + $0x1c] sm:$0xf]
      %v237 = vld [vmem:[%s220 + $0x20] sm:$0xf]
      %v238 = vld [vmem:[%s220 + $0x24] sm:$0xf]
      %v239 = vld [vmem:[%s220 + $0x28] sm:$0xf]
      %v240 = vld [vmem:[%s220 + $0x2c] sm:$0xf]
      %v241 = vld [vmem:[%s220 + $0x30] sm:$0xf]
      %v242 = vld [vmem:[%s220 + $0x34] sm:$0xf]
      %v243 = vld [vmem:[%s220 + $0x38] sm:$0xf]
      %v244 = vld [vmem:[%s220 + $0x3c] sm:$0xf]
      %v245 = vld [vmem:[%s220 + $0x40] sm:$0xf]
      %v246 = vld [vmem:[%s220 + $0x44] sm:$0xf]
      %v247 = vld [vmem:[%s220 + $0x48] sm:$0xf]
      %v248 = vld [vmem:[%s220 + $0x4c] sm:$0xf]
      %v249 = vld [vmem:[%s220 + $0x50] sm:$0xf]
      %v250 = vld [vmem:[%s220 + $0x54] sm:$0xf]
      %v251 = vld [vmem:[%s220 + $0x58] sm:$0xf]
      %v252 = vld [vmem:[%s220 + $0x5c] sm:$0xf]
      %v253 = vld [vmem:[%s220 + $0x60] sm:$0xf]
      %v254 = vld [vmem:[%s220 + $0x64] sm:$0xf]
      %v255 = vld [vmem:[%s220 + $0x68] sm:$0xf]
      %v256 = vld [vmem:[%s220 + $0x6c] sm:$0xf]
      %v257 = vld [vmem:[%s220 + $0x70] sm:$0xf]
      %v258 = vld [vmem:[%s220 + $0x74] sm:$0xf]
      %v259 = vld [vmem:[%s220 + $0x78] sm:$0xf]
      %v260 = vld [vmem:[%s220 + $0x7c] sm:$0xf]
      %v261 = vld [vmem:[%s1] sm:$0xf]
      %v262 = vld [vmem:[%s1 + $0x4] sm:$0xf]
      %v263 = vld [vmem:[%s1 + $0x8] sm:$0xf]
      %v264 = vld [vmem:[%s1 + $0xc] sm:$0xf]
      %v265 = vld [vmem:[%s1 + $0x10] sm:$0xf]
      %v266 = vld [vmem:[%s1 + $0x14] sm:$0xf]
      %v267 = vld [vmem:[%s1 + $0x18] sm:$0xf]
      %v268 = vld [vmem:[%s1 + $0x1c] sm:$0xf]
      %v269 = vld [vmem:[%s1 + $0x20] sm:$0xf]
      %v270 = vld [vmem:[%s1 + $0x24] sm:$0xf]
      %v271 = vld [vmem:[%s1 + $0x28] sm:$0xf]
      %v272 = vld [vmem:[%s1 + $0x2c] sm:$0xf]
      %v273 = vld [vmem:[%s1 + $0x30] sm:$0xf]
      %v274 = vld [vmem:[%s1 + $0x34] sm:$0xf]
      %v275 = vld [vmem:[%s1 + $0x38] sm:$0xf]
      %v276 = vld [vmem:[%s1 + $0x3c] sm:$0xf]
      %v277 = vld [vmem:[%s2] sm:$0x1]
      %v279 = vlaneseq
      %v280 = vshrl.u32 %v279, 7
      %v281 = vsub.s32 0, %v280
      %v282 = vrot.slane %v277, %v281
      %v316 = vunpack.c.l.b16 %v229
      %v317 = vunpack.c.l.b16 %v230
      %v318 = vunpack.c.l.b16 %v231
      %v319 = vunpack.c.l.b16 %v232
      %v320 = vunpack.c.l.b16 %v233
      %v321 = vunpack.c.l.b16 %v234
      %v322 = vunpack.c.l.b16 %v235
      %v323 = vunpack.c.l.b16 %v236
      %v324 = vunpack.c.l.b16 %v237
      %v325 = vunpack.c.l.b16 %v238
      %v326 = vunpack.c.l.b16 %v239
      %v327 = vunpack.c.l.b16 %v240
      %v328 = vunpack.c.l.b16 %v241
      %v329 = vunpack.c.l.b16 %v242
      %v330 = vunpack.c.l.b16 %v243
      %v331 = vunpack.c.l.b16 %v244
      %v332 = vunpack.c.l.b16 %v245
      %v333 = vunpack.c.l.b16 %v246
      %v334 = vunpack.c.l.b16 %v247
      %v335 = vunpack.c.l.b16 %v248
      %v336 = vunpack.c.l.b16 %v249
      %v337 = vunpack.c.l.b16 %v250
      %v338 = vunpack.c.l.b16 %v251
      %v339 = vunpack.c.l.b16 %v252
      %v340 = vunpack.c.l.b16 %v253
      %v341 = vunpack.c.l.b16 %v254
      %v342 = vunpack.c.l.b16 %v255
      %v343 = vunpack.c.l.b16 %v256
      %v344 = vunpack.c.l.b16 %v257
      %v345 = vunpack.c.l.b16 %v258
      %v346 = vunpack.c.l.b16 %v259
      %v347 = vunpack.c.l.b16 %v260
      %v348 = vpack.c.b16 %v317, %v316
      %v349 = vpack.c.b16 %v319, %v318
      %v350 = vpack.c.b16 %v321, %v320
      %v351 = vpack.c.b16 %v323, %v322
      %v352 = vpack.c.b16 %v325, %v324
      %v353 = vpack.c.b16 %v327, %v326
      %v354 = vpack.c.b16 %v329, %v328
      %v355 = vpack.c.b16 %v331, %v330
      %v356 = vpack.c.b16 %v333, %v332
      %v357 = vpack.c.b16 %v335, %v334
      %v358 = vpack.c.b16 %v337, %v336
      %v359 = vpack.c.b16 %v339, %v338
      %v360 = vpack.c.b16 %v341, %v340
      %v361 = vpack.c.b16 %v343, %v342
      %v362 = vpack.c.b16 %v345, %v344
      %v363 = vpack.c.b16 %v347, %v346
      %v396 = vunpack.c.l.b16 %v261
      %v397 = vunpack.c.l.b16 %v262
      %v398 = vunpack.c.l.b16 %v263
      %v399 = vunpack.c.l.b16 %v264
      %v400 = vunpack.c.l.b16 %v265
      %v401 = vunpack.c.l.b16 %v266
      %v402 = vunpack.c.l.b16 %v267
      %v403 = vunpack.c.l.b16 %v268
      %v404 = vunpack.c.l.b16 %v269
      %v405 = vunpack.c.l.b16 %v270
      %v406 = vunpack.c.l.b16 %v271
      %v407 = vunpack.c.l.b16 %v272
      %v408 = vunpack.c.l.b16 %v273
      %v409 = vunpack.c.l.b16 %v274
      %v410 = vunpack.c.l.b16 %v275
      %v411 = vunpack.c.l.b16 %v276
      %v412 = vpack.c.b16 %v397, %v396
      %v413 = vpack.c.b16 %v399, %v398
      %v414 = vpack.c.b16 %v401, %v400
      %v415 = vpack.c.b16 %v403, %v402
      %v416 = vpack.c.b16 %v405, %v404
      %v417 = vpack.c.b16 %v407, %v406
      %v418 = vpack.c.b16 %v409, %v408
      %v419 = vpack.c.b16 %v411, %v410
      %428 = vmatprep.subr.bf16.mxu0 0
      %429 = vmatpush1.bf16.msra.mxu0 %v412
      %430 = vmatprep.subr.bf16.mxu0 0
      %431 = vmatpush1.bf16.msra.mxu0 %v413
      %432 = vmatprep.subr.bf16.mxu0 0
      %433 = vmatpush1.bf16.msra.mxu0 %v414
      %434 = vmatprep.subr.bf16.mxu0 0
      %435 = vmatpush1.bf16.msra.mxu0 %v415
      %436 = vmatprep.subr.bf16.mxu0 0
      %437 = vmatpush1.bf16.msra.mxu0 %v416
      %438 = vmatprep.subr.bf16.mxu0 0
      %439 = vmatpush1.bf16.msra.mxu0 %v417
      %440 = vmatprep.subr.bf16.mxu0 0
      %441 = vmatpush1.bf16.msra.mxu0 %v418
      %442 = vmatprep.subr.bf16.mxu0 0
      %443 = vmatpush1.bf16.msra.mxu0 %v419
      %444 = vmatprep.subr.bf16.mxu0 0
      %445 = vmatpush1.bf16.msra.mxu0 0
      %446 = vmatprep.subr.bf16.mxu0 0
      %447 = vmatpush1.bf16.msra.mxu0 0
      %448 = vmatprep.subr.bf16.mxu0 0
      %449 = vmatpush1.bf16.msra.mxu0 0
      %450 = vmatprep.subr.bf16.mxu0 0
      %451 = vmatpush1.bf16.msra.mxu0 0
      %452 = vmatprep.subr.bf16.mxu0 0
      %453 = vmatpush1.bf16.msra.mxu0 0
      %454 = vmatprep.subr.bf16.mxu0 0
      %455 = vmatpush1.bf16.msra.mxu0 0
      %456 = vmatprep.subr.bf16.mxu0 0
      %457 = vmatpush1.bf16.msra.mxu0 0
      %458 = vmatprep.subr.bf16.mxu0 0
      %459 = vmatpush1.bf16.msra.mxu0 0
      %460 = vmatprep.mubr.bf16.mxu0 0
      %461 = vmatmul.mubr.bf16.gmra.mrb[0].mxu0 %v348
      %v462 = vpop.f32.mrb[0].mxu0
      %v463 = vadd.f32 %v282, %v462
      %v464 = vpop.f32.mrb[0].mxu0
      %v465 = vpop.f32.mrb[0].mxu0
      %v466 = vadd.f32 %v282, %v465
      %v467 = vpop.f32.mrb[0].mxu0
      %468 = vmatprep.mubr.bf16.mxu0 0
      %469 = vmatmul.mubr.bf16.gmra.mrb[0].mxu0 %v349
      %v470 = vpop.f32.mrb[0].mxu0
      %v471 = vadd.f32 %v282, %v470
      %v472 = vpop.f32.mrb[0].mxu0
      %v473 = vpop.f32.mrb[0].mxu0
      %v474 = vadd.f32 %v282, %v473
      %v475 = vpop.f32.mrb[0].mxu0
      %476 = vmatprep.mubr.bf16.mxu0 0
      %477 = vmatmul.mubr.bf16.gmra.mrb[0].mxu0 %v350
      %v478 = vpop.f32.mrb[0].mxu0
      %v479 = vadd.f32 %v282, %v478
      %v480 = vpop.f32.mrb[0].mxu0
      %v481 = vpop.f32.mrb[0].mxu0
      %v482 = vadd.f32 %v282, %v481
      %v483 = vpop.f32.mrb[0].mxu0
      %484 = vmatprep.mubr.bf16.mxu0 0
      %485 = vmatmul.mubr.bf16.gmra.mrb[0].mxu0 %v351
      %v486 = vpop.f32.mrb[0].mxu0
      %v487 = vadd.f32 %v282, %v486
      %v488 = vpop.f32.mrb[0].mxu0
      %v489 = vpop.f32.mrb[0].mxu0
      %v490 = vadd.f32 %v282, %v489
      %v491 = vpop.f32.mrb[0].mxu0
      %492 = vmatprep.mubr.bf16.mxu0 0
      %493 = vmatmul.mubr.bf16.gmra.mrb[0].mxu0 %v352
      %v494 = vpop.f32.mrb[0].mxu0
      %v495 = vadd.f32 %v282, %v494
      %v496 = vpop.f32.mrb[0].mxu0
      %v497 = vpop.f32.mrb[0].mxu0
      %v498 = vadd.f32 %v282, %v497
      %v499 = vpop.f32.mrb[0].mxu0
      %500 = vmatprep.mubr.bf16.mxu0 0
      %501 = vmatmul.mubr.bf16.gmra.mrb[0].mxu0 %v353
      %v502 = vpop.f32.mrb[0].mxu0
      %v503 = vadd.f32 %v282, %v502
      %v504 = vpop.f32.mrb[0].mxu0
      %v505 = vpop.f32.mrb[0].mxu0
      %v506 = vadd.f32 %v282, %v505
      %v507 = vpop.f32.mrb[0].mxu0
      %508 = vmatprep.mubr.bf16.mxu0 0
      %509 = vmatmul.mubr.bf16.gmra.mrb[0].mxu0 %v354
      %v510 = vpop.f32.mrb[0].mxu0
      %v511 = vadd.f32 %v282, %v510
      %v512 = vpop.f32.mrb[0].mxu0
      %v513 = vpop.f32.mrb[0].mxu0
      %v514 = vadd.f32 %v282, %v513
      %v515 = vpop.f32.mrb[0].mxu0
      %516 = vmatprep.mubr.bf16.mxu0 0
      %517 = vmatmul.mubr.bf16.gmra.mrb[0].mxu0 %v355
      %v518 = vpop.f32.mrb[0].mxu0
      %v519 = vadd.f32 %v282, %v518
      %v520 = vpop.f32.mrb[0].mxu0
      %v521 = vpop.f32.mrb[0].mxu0
      %v522 = vadd.f32 %v282, %v521
      %v523 = vpop.f32.mrb[0].mxu0
      %524 = vmatprep.mubr.bf16.mxu0 0
      %525 = vmatmul.mubr.bf16.gmra.mrb[0].mxu0 %v356
      %v526 = vpop.f32.mrb[0].mxu0
      %v527 = vadd.f32 %v282, %v526
      %v528 = vpop.f32.mrb[0].mxu0
      %v529 = vpop.f32.mrb[0].mxu0
      %v530 = vadd.f32 %v282, %v529
      %v531 = vpop.f32.mrb[0].mxu0
      %532 = vmatprep.mubr.bf16.mxu0 0
      %533 = vmatmul.mubr.bf16.gmra.mrb[0].mxu0 %v357
      %v534 = vpop.f32.mrb[0].mxu0
      %v535 = vadd.f32 %v282, %v534
      %v536 = vpop.f32.mrb[0].mxu0
      %v537 = vpop.f32.mrb[0].mxu0
      %v538 = vadd.f32 %v282, %v537
      %v539 = vpop.f32.mrb[0].mxu0
      %540 = vmatprep.mubr.bf16.mxu0 0
      %541 = vmatmul.mubr.bf16.gmra.mrb[0].mxu0 %v358
      %v542 = vpop.f32.mrb[0].mxu0
      %v543 = vadd.f32 %v282, %v542
      %v544 = vpop.f32.mrb[0].mxu0
      %v545 = vpop.f32.mrb[0].mxu0
      %v546 = vadd.f32 %v282, %v545
      %v547 = vpop.f32.mrb[0].mxu0
      %548 = vmatprep.mubr.bf16.mxu0 0
      %549 = vmatmul.mubr.bf16.gmra.mrb[0].mxu0 %v359
      %v550 = vpop.f32.mrb[0].mxu0
      %v551 = vadd.f32 %v282, %v550
      %v552 = vpop.f32.mrb[0].mxu0
      %v553 = vpop.f32.mrb[0].mxu0
      %v554 = vadd.f32 %v282, %v553
      %v555 = vpop.f32.mrb[0].mxu0
      %556 = vmatprep.mubr.bf16.mxu0 0
      %557 = vmatmul.mubr.bf16.gmra.mrb[0].mxu0 %v360
      %v558 = vpop.f32.mrb[0].mxu0
      %v559 = vadd.f32 %v282, %v558
      %v560 = vpop.f32.mrb[0].mxu0
      %v561 = vpop.f32.mrb[0].mxu0
      %v562 = vadd.f32 %v282, %v561
      %v563 = vpop.f32.mrb[0].mxu0
      %564 = vmatprep.mubr.bf16.mxu0 0
      %565 = vmatmul.mubr.bf16.gmra.mrb[0].mxu0 %v361
      %v566 = vpop.f32.mrb[0].mxu0
      %v567 = vadd.f32 %v282, %v566
      %v568 = vpop.f32.mrb[0].mxu0
      %v569 = vpop.f32.mrb[0].mxu0
      %v570 = vadd.f32 %v282, %v569
      %v571 = vpop.f32.mrb[0].mxu0
      %572 = vmatprep.mubr.bf16.mxu0 0
      %573 = vmatmul.mubr.bf16.gmra.mrb[0].mxu0 %v362
      %v574 = vpop.f32.mrb[0].mxu0
      %v575 = vadd.f32 %v282, %v574
      %v576 = vpop.f32.mrb[0].mxu0
      %v577 = vpop.f32.mrb[0].mxu0
      %v578 = vadd.f32 %v282, %v577
      %v579 = vpop.f32.mrb[0].mxu0
      %580 = vmatprep.mubr.bf16.mxu0 0
      %581 = vmatmul.mubr.bf16.gmra.mrb[0].mxu0 %v363
      %v582 = vpop.f32.mrb[0].mxu0
      %v583 = vadd.f32 %v282, %v582
      %v584 = vpop.f32.mrb[0].mxu0
      %v585 = vpop.f32.mrb[0].mxu0
      %v586 = vadd.f32 %v282, %v585
      %v587 = vpop.f32.mrb[0].mxu0
      %588 = vdwg.mxu0
      %v589 = vmax.f32 %v463, 0.0
      %v590 = vmax.f32 %v466, 0.0
      %v591 = vmax.f32 %v471, 0.0
      %v592 = vmax.f32 %v474, 0.0
      %v593 = vmax.f32 %v479, 0.0
      %v594 = vmax.f32 %v482, 0.0
      %v595 = vmax.f32 %v487, 0.0
      %v596 = vmax.f32 %v490, 0.0
      %v597 = vmax.f32 %v495, 0.0
      %v598 = vmax.f32 %v498, 0.0
      %v599 = vmax.f32 %v503, 0.0
      %v600 = vmax.f32 %v506, 0.0
      %v601 = vmax.f32 %v511, 0.0
      %v602 = vmax.f32 %v514, 0.0
      %v603 = vmax.f32 %v519, 0.0
      %v604 = vmax.f32 %v522, 0.0
      %v605 = vmax.f32 %v527, 0.0
      %v606 = vmax.f32 %v530, 0.0
      %v607 = vmax.f32 %v535, 0.0
      %v608 = vmax.f32 %v538, 0.0
      %v609 = vmax.f32 %v543, 0.0
      %v610 = vmax.f32 %v546, 0.0
      %v611 = vmax.f32 %v551, 0.0
      %v612 = vmax.f32 %v554, 0.0
      %v613 = vmax.f32 %v559, 0.0
      %v614 = vmax.f32 %v562, 0.0
      %v615 = vmax.f32 %v567, 0.0
      %v616 = vmax.f32 %v570, 0.0
      %v617 = vmax.f32 %v575, 0.0
      %v618 = vmax.f32 %v578, 0.0
      %v619 = vmax.f32 %v583, 0.0
      %v620 = vmax.f32 %v586, 0.0
      %v621 = vpack.c.bf16 %v590, %v589
      %v622 = vpack.c.bf16 %v592, %v591
      %v623 = vpack.c.bf16 %v594, %v593
      %v624 = vpack.c.bf16 %v596, %v595
      %v625 = vpack.c.bf16 %v598, %v597
      %v626 = vpack.c.bf16 %v600, %v599
      %v627 = vpack.c.bf16 %v602, %v601
      %v628 = vpack.c.bf16 %v604, %v603
      %v629 = vpack.c.bf16 %v606, %v605
      %v630 = vpack.c.bf16 %v608, %v607
      %v631 = vpack.c.bf16 %v610, %v609
      %v632 = vpack.c.bf16 %v612, %v611
      %v633 = vpack.c.bf16 %v614, %v613
      %v634 = vpack.c.bf16 %v616, %v615
      %v635 = vpack.c.bf16 %v618, %v617
      %v636 = vpack.c.bf16 %v620, %v619
      %v637 = vld [vmem:[%s3] sm:$0xf]
      %v638 = vld [vmem:[%s3 + $0x4] sm:$0xf]
      %v639 = vld [vmem:[%s3 + $0x8] sm:$0xf]
      %v640 = vld [vmem:[%s3 + $0xc] sm:$0xf]
      %v641 = vld [vmem:[%s3 + $0x10] sm:$0xf]
      %v642 = vld [vmem:[%s3 + $0x14] sm:$0xf]
      %v643 = vld [vmem:[%s3 + $0x18] sm:$0xf]
      %v644 = vld [vmem:[%s3 + $0x1c] sm:$0xf]
      %v645 = vld [vmem:[%s3 + $0x20] sm:$0xf]
      %v646 = vld [vmem:[%s3 + $0x24] sm:$0xf]
      %v647 = vld [vmem:[%s3 + $0x28] sm:$0xf]
      %v648 = vld [vmem:[%s3 + $0x2c] sm:$0xf]
      %v649 = vld [vmem:[%s3 + $0x30] sm:$0xf]
      %v650 = vld [vmem:[%s3 + $0x34] sm:$0xf]
      %v651 = vld [vmem:[%s3 + $0x38] sm:$0xf]
      %v652 = vld [vmem:[%s3 + $0x3c] sm:$0xf]
      %v653 = vld [vmem:[%s4] sm:$0x1]
      %v655 = vlaneseq
      %v656 = vshrl.u32 %v655, 7
      %v657 = vsub.s32 0, %v656
      %v658 = vrot.slane %v653, %v657
      %v676 = vunpack.c.l.b16 %v637
      %v677 = vunpack.c.l.b16 %v638
      %v678 = vunpack.c.l.b16 %v639
      %v679 = vunpack.c.l.b16 %v640
      %v680 = vunpack.c.l.b16 %v641
      %v681 = vunpack.c.l.b16 %v642
      %v682 = vunpack.c.l.b16 %v643
      %v683 = vunpack.c.l.b16 %v644
      %v684 = vunpack.c.l.b16 %v645
      %v685 = vunpack.c.l.b16 %v646
      %v686 = vunpack.c.l.b16 %v647
      %v687 = vunpack.c.l.b16 %v648
      %v688 = vunpack.c.l.b16 %v649
      %v689 = vunpack.c.l.b16 %v650
      %v690 = vunpack.c.l.b16 %v651
      %v691 = vunpack.c.l.b16 %v652
      %v692 = vpack.c.b16 %v677, %v676
      %v693 = vpack.c.b16 %v679, %v678
      %v694 = vpack.c.b16 %v681, %v680
      %v695 = vpack.c.b16 %v683, %v682
      %v696 = vpack.c.b16 %v685, %v684
      %v697 = vpack.c.b16 %v687, %v686
      %v698 = vpack.c.b16 %v689, %v688
      %v699 = vpack.c.b16 %v691, %v690
      %708 = vmatprep.subr.bf16.mxu0 0
      %709 = vmatpush1.bf16.msra.mxu0 %v692
      %710 = vmatprep.subr.bf16.mxu0 0
      %711 = vmatpush1.bf16.msra.mxu0 %v693
      %712 = vmatprep.subr.bf16.mxu0 0
      %713 = vmatpush1.bf16.msra.mxu0 %v694
      %714 = vmatprep.subr.bf16.mxu0 0
      %715 = vmatpush1.bf16.msra.mxu0 %v695
      %716 = vmatprep.subr.bf16.mxu0 0
      %717 = vmatpush1.bf16.msra.mxu0 %v696
      %718 = vmatprep.subr.bf16.mxu0 0
      %719 = vmatpush1.bf16.msra.mxu0 %v697
      %720 = vmatprep.subr.bf16.mxu0 0
      %721 = vmatpush1.bf16.msra.mxu0 %v698
      %722 = vmatprep.subr.bf16.mxu0 0
      %723 = vmatpush1.bf16.msra.mxu0 %v699
      %724 = vmatprep.subr.bf16.mxu0 0
      %725 = vmatpush1.bf16.msra.mxu0 0
      %726 = vmatprep.subr.bf16.mxu0 0
      %727 = vmatpush1.bf16.msra.mxu0 0
      %728 = vmatprep.subr.bf16.mxu0 0
      %729 = vmatpush1.bf16.msra.mxu0 0
      %730 = vmatprep.subr.bf16.mxu0 0
      %731 = vmatpush1.bf16.msra.mxu0 0
      %732 = vmatprep.subr.bf16.mxu0 0
      %733 = vmatpush1.bf16.msra.mxu0 0
      %734 = vmatprep.subr.bf16.mxu0 0
      %735 = vmatpush1.bf16.msra.mxu0 0
      %736 = vmatprep.subr.bf16.mxu0 0
      %737 = vmatpush1.bf16.msra.mxu0 0
      %738 = vmatprep.subr.bf16.mxu0 0
      %739 = vmatpush1.bf16.msra.mxu0 0
      %740 = vmatprep.mubr.bf16.mxu0 0
      %741 = vmatmul.mubr.bf16.gmra.mrb[0].mxu0 %v621
      %v742 = vpop.f32.mrb[0].mxu0
      %v743 = vadd.f32 %v658, %v742
      %v744 = vpop.f32.mrb[0].mxu0
      %v745 = vpop.f32.mrb[0].mxu0
      %v746 = vadd.f32 %v658, %v745
      %v747 = vpop.f32.mrb[0].mxu0
      %748 = vmatprep.mubr.bf16.mxu0 0
      %749 = vmatmul.mubr.bf16.gmra.mrb[0].mxu0 %v622
      %v750 = vpop.f32.mrb[0].mxu0
      %v751 = vadd.f32 %v658, %v750
      %v752 = vpop.f32.mrb[0].mxu0
      %v753 = vpop.f32.mrb[0].mxu0
      %v754 = vadd.f32 %v658, %v753
      %v755 = vpop.f32.mrb[0].mxu0
      %756 = vmatprep.mubr.bf16.mxu0 0
      %757 = vmatmul.mubr.bf16.gmra.mrb[0].mxu0 %v623
      %v758 = vpop.f32.mrb[0].mxu0
      %v759 = vadd.f32 %v658, %v758
      %v760 = vpop.f32.mrb[0].mxu0
      %v761 = vpop.f32.mrb[0].mxu0
      %v762 = vadd.f32 %v658, %v761
      %v763 = vpop.f32.mrb[0].mxu0
      %764 = vmatprep.mubr.bf16.mxu0 0
      %765 = vmatmul.mubr.bf16.gmra.mrb[0].mxu0 %v624
      %v766 = vpop.f32.mrb[0].mxu0
      %v767 = vadd.f32 %v658, %v766
      %v768 = vpop.f32.mrb[0].mxu0
      %v769 = vpop.f32.mrb[0].mxu0
      %v770 = vadd.f32 %v658, %v769
      %v771 = vpop.f32.mrb[0].mxu0
      %772 = vmatprep.mubr.bf16.mxu0 0
      %773 = vmatmul.mubr.bf16.gmra.mrb[0].mxu0 %v625
      %v774 = vpop.f32.mrb[0].mxu0
      %v775 = vadd.f32 %v658, %v774
      %v776 = vpop.f32.mrb[0].mxu0
      %v777 = vpop.f32.mrb[0].mxu0
      %v778 = vadd.f32 %v658, %v777
      %v779 = vpop.f32.mrb[0].mxu0
      %780 = vmatprep.mubr.bf16.mxu0 0
      %781 = vmatmul.mubr.bf16.gmra.mrb[0].mxu0 %v626
      %v782 = vpop.f32.mrb[0].mxu0
      %v783 = vadd.f32 %v658, %v782
      %v784 = vpop.f32.mrb[0].mxu0
      %v785 = vpop.f32.mrb[0].mxu0
      %v786 = vadd.f32 %v658, %v785
      %v787 = vpop.f32.mrb[0].mxu0
      %788 = vmatprep.mubr.bf16.mxu0 0
      %789 = vmatmul.mubr.bf16.gmra.mrb[0].mxu0 %v627
      %v790 = vpop.f32.mrb[0].mxu0
      %v791 = vadd.f32 %v658, %v790
      %v792 = vpop.f32.mrb[0].mxu0
      %v793 = vpop.f32.mrb[0].mxu0
      %v794 = vadd.f32 %v658, %v793
      %v795 = vpop.f32.mrb[0].mxu0
      %796 = vmatprep.mubr.bf16.mxu0 0
      %797 = vmatmul.mubr.bf16.gmra.mrb[0].mxu0 %v628
      %v798 = vpop.f32.mrb[0].mxu0
      %v799 = vadd.f32 %v658, %v798
      %v800 = vpop.f32.mrb[0].mxu0
      %v801 = vpop.f32.mrb[0].mxu0
      %v802 = vadd.f32 %v658, %v801
      %v803 = vpop.f32.mrb[0].mxu0
      %804 = vmatprep.mubr.bf16.mxu0 0
      %805 = vmatmul.mubr.bf16.gmra.mrb[0].mxu0 %v629
      %v806 = vpop.f32.mrb[0].mxu0
      %v807 = vadd.f32 %v658, %v806
      %v808 = vpop.f32.mrb[0].mxu0
      %v809 = vpop.f32.mrb[0].mxu0
      %v810 = vadd.f32 %v658, %v809
      %v811 = vpop.f32.mrb[0].mxu0
      %812 = vmatprep.mubr.bf16.mxu0 0
      %813 = vmatmul.mubr.bf16.gmra.mrb[0].mxu0 %v630
      %v814 = vpop.f32.mrb[0].mxu0
      %v815 = vadd.f32 %v658, %v814
      %v816 = vpop.f32.mrb[0].mxu0
      %v817 = vpop.f32.mrb[0].mxu0
      %v818 = vadd.f32 %v658, %v817
      %v819 = vpop.f32.mrb[0].mxu0
      %820 = vmatprep.mubr.bf16.mxu0 0
      %821 = vmatmul.mubr.bf16.gmra.mrb[0].mxu0 %v631
      %v822 = vpop.f32.mrb[0].mxu0
      %v823 = vadd.f32 %v658, %v822
      %v824 = vpop.f32.mrb[0].mxu0
      %v825 = vpop.f32.mrb[0].mxu0
      %v826 = vadd.f32 %v658, %v825
      %v827 = vpop.f32.mrb[0].mxu0
      %828 = vmatprep.mubr.bf16.mxu0 0
      %829 = vmatmul.mubr.bf16.gmra.mrb[0].mxu0 %v632
      %v830 = vpop.f32.mrb[0].mxu0
      %v831 = vadd.f32 %v658, %v830
      %v832 = vpop.f32.mrb[0].mxu0
      %v833 = vpop.f32.mrb[0].mxu0
      %v834 = vadd.f32 %v658, %v833
      %v835 = vpop.f32.mrb[0].mxu0
      %836 = vmatprep.mubr.bf16.mxu0 0
      %837 = vmatmul.mubr.bf16.gmra.mrb[0].mxu0 %v633
      %v838 = vpop.f32.mrb[0].mxu0
      %v839 = vadd.f32 %v658, %v838
      %v840 = vpop.f32.mrb[0].mxu0
      %v841 = vpop.f32.mrb[0].mxu0
      %v842 = vadd.f32 %v658, %v841
      %v843 = vpop.f32.mrb[0].mxu0
      %844 = vmatprep.mubr.bf16.mxu0 0
      %845 = vmatmul.mubr.bf16.gmra.mrb[0].mxu0 %v634
      %v846 = vpop.f32.mrb[0].mxu0
      %v847 = vadd.f32 %v658, %v846
      %v848 = vpop.f32.mrb[0].mxu0
      %v849 = vpop.f32.mrb[0].mxu0
      %v850 = vadd.f32 %v658, %v849
      %v851 = vpop.f32.mrb[0].mxu0
      %852 = vmatprep.mubr.bf16.mxu0 0
      %853 = vmatmul.mubr.bf16.gmra.mrb[0].mxu0 %v635
      %v854 = vpop.f32.mrb[0].mxu0
      %v855 = vadd.f32 %v658, %v854
      %v856 = vpop.f32.mrb[0].mxu0
      %v857 = vpop.f32.mrb[0].mxu0
      %v858 = vadd.f32 %v658, %v857
      %v859 = vpop.f32.mrb[0].mxu0
      %860 = vmatprep.mubr.bf16.mxu0 0
      %861 = vmatmul.mubr.bf16.gmra.mrb[0].mxu0 %v636
      %v862 = vpop.f32.mrb[0].mxu0
      %v863 = vadd.f32 %v658, %v862
      %v864 = vpop.f32.mrb[0].mxu0
      %v865 = vpop.f32.mrb[0].mxu0
      %v866 = vadd.f32 %v658, %v865
      %v867 = vpop.f32.mrb[0].mxu0
      %868 = vdwg.mxu0
      %v869 = vmax.f32 %v743, 0.0
      %v870 = vmax.f32 %v746, 0.0
      %v871 = vmax.f32 %v751, 0.0
      %v872 = vmax.f32 %v754, 0.0
      %v873 = vmax.f32 %v759, 0.0
      %v874 = vmax.f32 %v762, 0.0
      %v875 = vmax.f32 %v767, 0.0
      %v876 = vmax.f32 %v770, 0.0
      %v877 = vmax.f32 %v775, 0.0
      %v878 = vmax.f32 %v778, 0.0
      %v879 = vmax.f32 %v783, 0.0
      %v880 = vmax.f32 %v786, 0.0
      %v881 = vmax.f32 %v791, 0.0
      %v882 = vmax.f32 %v794, 0.0
      %v883 = vmax.f32 %v799, 0.0
      %v884 = vmax.f32 %v802, 0.0
      %v885 = vmax.f32 %v807, 0.0
      %v886 = vmax.f32 %v810, 0.0
      %v887 = vmax.f32 %v815, 0.0
      %v888 = vmax.f32 %v818, 0.0
      %v889 = vmax.f32 %v823, 0.0
      %v890 = vmax.f32 %v826, 0.0
      %v891 = vmax.f32 %v831, 0.0
      %v892 = vmax.f32 %v834, 0.0
      %v893 = vmax.f32 %v839, 0.0
      %v894 = vmax.f32 %v842, 0.0
      %v895 = vmax.f32 %v847, 0.0
      %v896 = vmax.f32 %v850, 0.0
      %v897 = vmax.f32 %v855, 0.0
      %v898 = vmax.f32 %v858, 0.0
      %v899 = vmax.f32 %v863, 0.0
      %v900 = vmax.f32 %v866, 0.0
      %v901 = vmax.f32 %v869, %v870
      %v902 = vrot.slane %v901, 4
      %v903 = vmax.f32 %v901, %v902
      %v904 = vrot.slane %v903, 2
      %v905 = vmax.f32 %v903, %v904
      %v906 = vrot.slane %v905, 1
      %v907 = vmax.f32 %v905, %v906
      %v908 = vmax.f32 %v871, %v872
      %v909 = vrot.slane %v908, 4
      %v910 = vmax.f32 %v908, %v909
      %v911 = vrot.slane %v910, 2
      %v912 = vmax.f32 %v910, %v911
      %v913 = vrot.slane %v912, 1
      %v914 = vmax.f32 %v912, %v913
      %v915 = vmax.f32 %v873, %v874
      %v916 = vrot.slane %v915, 4
      %v917 = vmax.f32 %v915, %v916
      %v918 = vrot.slane %v917, 2
      %v919 = vmax.f32 %v917, %v918
      %v920 = vrot.slane %v919, 1
      %v921 = vmax.f32 %v919, %v920
      %v922 = vmax.f32 %v875, %v876
      %v923 = vrot.slane %v922, 4
      %v924 = vmax.f32 %v922, %v923
      %v925 = vrot.slane %v924, 2
      %v926 = vmax.f32 %v924, %v925
      %v927 = vrot.slane %v926, 1
      %v928 = vmax.f32 %v926, %v927
      %v929 = vmax.f32 %v877, %v878
      %v930 = vrot.slane %v929, 4
      %v931 = vmax.f32 %v929, %v930
      %v932 = vrot.slane %v931, 2
      %v933 = vmax.f32 %v931, %v932
      %v934 = vrot.slane %v933, 1
      %v935 = vmax.f32 %v933, %v934
      %v936 = vmax.f32 %v879, %v880
      %v937 = vrot.slane %v936, 4
      %v938 = vmax.f32 %v936, %v937
      %v939 = vrot.slane %v938, 2
      %v940 = vmax.f32 %v938, %v939
      %v941 = vrot.slane %v940, 1
      %v942 = vmax.f32 %v940, %v941
      %v943 = vmax.f32 %v881, %v882
      %v944 = vrot.slane %v943, 4
      %v945 = vmax.f32 %v943, %v944
      %v946 = vrot.slane %v945, 2
      %v947 = vmax.f32 %v945, %v946
      %v948 = vrot.slane %v947, 1
      %v949 = vmax.f32 %v947, %v948
      %v950 = vmax.f32 %v883, %v884
      %v951 = vrot.slane %v950, 4
      %v952 = vmax.f32 %v950, %v951
      %v953 = vrot.slane %v952, 2
      %v954 = vmax.f32 %v952, %v953
      %v955 = vrot.slane %v954, 1
      %v956 = vmax.f32 %v954, %v955
      %v957 = vmax.f32 %v885, %v886
      %v958 = vrot.slane %v957, 4
      %v959 = vmax.f32 %v957, %v958
      %v960 = vrot.slane %v959, 2
      %v961 = vmax.f32 %v959, %v960
      %v962 = vrot.slane %v961, 1
      %v963 = vmax.f32 %v961, %v962
      %v964 = vmax.f32 %v887, %v888
      %v965 = vrot.slane %v964, 4
      %v966 = vmax.f32 %v964, %v965
      %v967 = vrot.slane %v966, 2
      %v968 = vmax.f32 %v966, %v967
      %v969 = vrot.slane %v968, 1
      %v970 = vmax.f32 %v968, %v969
      %v971 = vmax.f32 %v889, %v890
      %v972 = vrot.slane %v971, 4
      %v973 = vmax.f32 %v971, %v972
      %v974 = vrot.slane %v973, 2
      %v975 = vmax.f32 %v973, %v974
      %v976 = vrot.slane %v975, 1
      %v977 = vmax.f32 %v975, %v976
      %v978 = vmax.f32 %v891, %v892
      %v979 = vrot.slane %v978, 4
      %v980 = vmax.f32 %v978, %v979
      %v981 = vrot.slane %v980, 2
      %v982 = vmax.f32 %v980, %v981
      %v983 = vrot.slane %v982, 1
      %v984 = vmax.f32 %v982, %v983
      %v985 = vmax.f32 %v893, %v894
      %v986 = vrot.slane %v985, 4
      %v987 = vmax.f32 %v985, %v986
      %v988 = vrot.slane %v987, 2
      %v989 = vmax.f32 %v987, %v988
      %v990 = vrot.slane %v989, 1
      %v991 = vmax.f32 %v989, %v990
      %v992 = vmax.f32 %v895, %v896
      %v993 = vrot.slane %v992, 4
      %v994 = vmax.f32 %v992, %v993
      %v995 = vrot.slane %v994, 2
      %v996 = vmax.f32 %v994, %v995
      %v997 = vrot.slane %v996, 1
      %v998 = vmax.f32 %v996, %v997
      %v999 = vmax.f32 %v897, %v898
      %v1000 = vrot.slane %v999, 4
      %v1001 = vmax.f32 %v999, %v1000
      %v1002 = vrot.slane %v1001, 2
      %v1003 = vmax.f32 %v1001, %v1002
      %v1004 = vrot.slane %v1003, 1
      %v1005 = vmax.f32 %v1003, %v1004
      %v1006 = vmax.f32 %v899, %v900
      %v1007 = vrot.slane %v1006, 4
      %v1008 = vmax.f32 %v1006, %v1007
      %v1009 = vrot.slane %v1008, 2
      %v1010 = vmax.f32 %v1008, %v1009
      %v1011 = vrot.slane %v1010, 1
      %v1012 = vmax.f32 %v1010, %v1011
      %vm1029 = vcmask 1041409
      %v1030 = vsel %vm1029, %v914, %v907
      %vm1031 = vcmask 1042434
      %v1032 = vsel %vm1031, %v921, %v1030
      %vm1033 = vcmask 1043459
      %v1034 = vsel %vm1033, %v928, %v1032
      %vm1035 = vcmask 1044484
      %v1036 = vsel %vm1035, %v935, %v1034
      %vm1037 = vcmask 1045509
      %v1038 = vsel %vm1037, %v942, %v1036
      %vm1039 = vcmask 1046534
      %v1040 = vsel %vm1039, %v949, %v1038
      %vm1041 = vcmask 1047559
      %v1042 = vsel %vm1041, %v956, %v1040
      %v1043 = vsel %vm1029, %v970, %v963
      %v1044 = vsel %vm1031, %v977, %v1043
      %v1045 = vsel %vm1033, %v984, %v1044
      %v1046 = vsel %vm1035, %v991, %v1045
      %v1047 = vsel %vm1037, %v998, %v1046
      %v1048 = vsel %vm1039, %v1005, %v1047
      %v1049 = vsel %vm1041, %v1012, %v1048
      %1052 = vst [vmem:[%s226] sm:$0xff] %v1042
      %1053 = vst [vmem:[%s226 + $0x8] sm:$0xff] %v1049
      %s1054 = smul.u32 2, %s16
      %p1055 = scmp.lt.s32.totalorder %s1054, 3
      %s1056 = scalar_select %p1055, %s1054, 3
      %s1057 = smul.addr %s1056, 8
      %s1058 = scalar_lea.vmem %s5, %s1057
      // Predicated region
      $region41: #{pointnet2_backbone_forward.9} parent=39 // pred_check
        %p1059 = pneg %p144
      $region42: #{pointnet2_backbone_forward.9} parent=39 // pred_check_branch
        %1061 = sbr.rel (%p1059) target = $region44
      $region43: #{pointnet2_backbone_forward.9} parent=39 // pred_region
        %s1062 = smul.u32 2, %s16
      $region44: #{pointnet2_backbone_forward.9} parent=39 // pred_fallthru
        _
    $region40: #{pointnet2_backbone_forward.9} parent=5 // pred_fallthru
      _
    %p1063 = scmp.le.s32.totalorder 2, %s11
    // Predicated region
    $region45: #{pointnet2_backbone_forward.9} parent=5 // pred_check
      %p1064 = pneg %p1063
    $region46: #{pointnet2_backbone_forward.9} parent=5 // pred_check_branch
      %1066 = sbr.rel (%p1064) target = $region48
    $region47: #{pointnet2_backbone_forward.9} parent=5 // pred_region
      %s1067 = ssub.s32 %s11, 2
      // Predicated region
      $region49: #{pointnet2_backbone_forward.9} parent=47 // pred_check
        %p1068 = pneg %p150
      $region50: #{pointnet2_backbone_forward.9} parent=47 // pred_check_branch
        %1070 = sbr.rel (%p1068) target = $region52
      $region51: #{pointnet2_backbone_forward.9} parent=47 // pred_region
        %s1071 = smul.u32 2, %s17
        %p1072 = scmp.lt.s32.totalorder %s1071, 3
        %s1073 = scalar_select %p1072, %s1071, 3
        %s1074 = smul.addr %s1073, 8
        %s1075 = scalar_lea.vmem %s5, %s1074
      $region52: #{pointnet2_backbone_forward.9} parent=47 // pred_fallthru
        _
    $region48: #{pointnet2_backbone_forward.9} parent=5 // pred_fallthru
      _
  $region6: #{pointnet2_backbone_forward.9} parent=0 // loop_footer
    %s15 = sadd.s32 1, %s11
  $region7: #{pointnet2_backbone_forward.9} parent=0 // loop_footer_branch
    %10 = sbr.rel target = $region3
  $region8: #{pointnet2_backbone_forward.9} parent=0 // loop_exit
    _

// kernel: neg.14
$region0: #{neg.14}
  #allocation0 [shape = 's32[1]{0}', space=sflag, size = 0x4, scoped, tag = 'scoped memory for neg.14']
  %s0 = inlined_call_operand.vmem [shape: f32[2,64,32], index: 0, kind: input, shape index: {}]
  %s1 = inlined_call_operand.vmem [shape: f32[2,64,32], index: 1, kind: output, shape index: {}]
  %v2 = vld [vmem:[%s0] sm:$0xff]
  %3 = xla_tuple %v2
  %4 = xla_tuple %3
  %v5 = vxor.u32 %v2, 2147483648
  %6 = xla_tuple %v5
  %7 = vst [vmem:[%s1] sm:$0xff] %v5
  %s8 = scalar_lea.vmem %s0, 32
  %v9 = vld [vmem:[%s8] sm:$0xff]
  %10 = xla_tuple %v9
  %11 = xla_tuple %10
  %v12 = vxor.u32 %v9, 2147483648
  %13 = xla_tuple %v12
  %s14 = scalar_lea.vmem %s1, 32
  %15 = vst [vmem:[%s14] sm:$0xff] %v12
  %s16 = scalar_lea.vmem %s0, 8
  %v17 = vld [vmem:[%s16] sm:$0xff]
  %18 = xla_tuple %v17
  %19 = xla_tuple %18
  %v20 = vxor.u32 %v17, 2147483648
  %21 = xla_tuple %v20
  %s22 = scalar_lea.vmem %s1, 8
  %23 = vst [vmem:[%s22] sm:$0xff] %v20
  %s24 = scalar_lea.vmem %s0, 40
  %v25 = vld [vmem:[%s24] sm:$0xff]
  %26 = xla_tuple %v25
  %27 = xla_tuple %26
  %v28 = vxor.u32 %v25, 2147483648
  %29 = xla_tuple %v28
  %s30 = scalar_lea.vmem %s1, 40
  %31 = vst [vmem:[%s30] sm:$0xff] %v28
  %s32 = scalar_lea.vmem %s0, 16
  %v33 = vld [vmem:[%s32] sm:$0xff]
  %34 = xla_tuple %v33
  %35 = xla_tuple %34
  %v36 = vxor.u32 %v33, 2147483648
  %37 = xla_tuple %v36
  %s38 = scalar_lea.vmem %s1, 16
  %39 = vst [vmem:[%s38] sm:$0xff] %v36
  %s40 = scalar_lea.vmem %s0, 48
  %v41 = vld [vmem:[%s40] sm:$0xff]
  %42 = xla_tuple %v41
  %43 = xla_tuple %42
  %v44 = vxor.u32 %v41, 2147483648
  %45 = xla_tuple %v44
  %s46 = scalar_lea.vmem %s1, 48
  %47 = vst [vmem:[%s46] sm:$0xff] %v44
  %s48 = scalar_lea.vmem %s0, 24
  %v49 = vld [vmem:[%s48] sm:$0xff]
  %50 = xla_tuple %v49
  %51 = xla_tuple %50
  %v52 = vxor.u32 %v49, 2147483648
  %53 = xla_tuple %v52
  %s54 = scalar_lea.vmem %s1, 24
  %55 = vst [vmem:[%s54] sm:$0xff] %v52
  %s56 = scalar_lea.vmem %s0, 56
  %v57 = vld [vmem:[%s56] sm:$0xff]
  %58 = xla_tuple %v57
  %59 = xla_tuple %58
  %v60 = vxor.u32 %v57, 2147483648
  %61 = xla_tuple %v60
  %s62 = scalar_lea.vmem %s1, 56
  %63 = vst [vmem:[%s62] sm:$0xff] %v60

// kernel: pointnet2_backbone_forward.10
$region0: #{pointnet2_backbone_forward.10}
  #allocation0 [shape = 'u32[]', space=smem, size = 0x4, offset = 0x4, fixed_abs, tag = 'smem constant byte address 0x4 - core index']
  #allocation1 [shape = 'u32[144,128]{1,0:T(1,128)}', space=vmem, size = 0x12000, scoped, tag = 'internal scratch']
  %s0 = inlined_call_operand.vmem [shape: bf16[64,256], index: 0, kind: input, shape index: {}]
  %s1 = inlined_call_operand.vmem [shape: bf16[256,128], index: 1, kind: input, shape index: {}]
  %s2 = inlined_call_operand.vmem [shape: f32[1,128], index: 2, kind: input, shape index: {}]
  %s3 = inlined_call_operand.vmem [shape: bf16[128,128], index: 3, kind: input, shape index: {}]
  %s4 = inlined_call_operand.vmem [shape: f32[1,128], index: 4, kind: input, shape index: {}]
  %s5 = inlined_call_operand.vmem [shape: f32[64,128], index: 5, kind: output, shape index: {}]
  %s6 = sld [smem:[#allocation0]]
  $region53: #{pointnet2_backbone_forward.10} parent=0
    _
  %s8 = ssub.s32 1, %s6
  %s9 = scalar_select 0, %s8, %s6
  loop: start=0, step=1, limit=4
  $region2: #{pointnet2_backbone_forward.10} parent=0 // loop_pre_header
    _
  $region3: #{pointnet2_backbone_forward.10} parent=0 // loop_header
    %s11 = sphi 0, %s15
    %p12 = scmp.ge.s32.totalorder %s11, 4
    %s21 = sphi 0, %s23
    %s24 = sphi 0, %s21
    %s25 = sphi 0, %s24
    %s41 = sphi 0, %s25
    %s45 = sphi 0, %s45
    %s47 = sphi 0, %s45
    %s48 = sphi 0, %s47
    %s62 = sphi 0, %s48
    %s66 = sphi 0, %s66
    %s68 = sphi 0, %s66
    %s69 = sphi 0, %s68
    %s83 = sphi 0, %s69
    %s87 = sphi 0, %s87
    %s89 = sphi 0, %s87
    %s90 = sphi 0, %s89
    %s104 = sphi 0, %s90
    %s108 = sphi 0, %s108
    %s110 = sphi 0, %s108
    %s111 = sphi 0, %s110
    %s125 = sphi 0, %s111
    %s131 = sphi 0, %s133
    %s134 = sphi 0, %s131
    %s135 = sphi 0, %s134
    %s151 = sphi 0, %s135
  $region4: #{pointnet2_backbone_forward.10} parent=0 // loop_header_branch
    %14 = sbr.rel (%p12) target = $region8
  $region5: #{pointnet2_backbone_forward.10} parent=0 // loop_body
    %s16 = ssub.s32 %s11, 1
    %s17 = ssub.s32 %s11, 2
    %s18 = sadd.s32 %s11, 1
    %s19 = ssub.s32 %s11, %s18
    %p20 = scmp.eq.s32.totalorder %s19, 0
    %s22 = sadd.s32 %s21, 1
    %s23 = scalar_select %p20, %s21, %s22
    %p26 = pneg %p20
    %p27 = scmp.eq.s32.totalorder %s11, 1
    %p28 = por %p26, %p27
    %p29 = scmp.ne.s32.totalorder %s21, %s24
    %p30 = scmp.eq.s32.totalorder %s11, 0
    %p31 = por %p29, %p30
    %p32 = scmp.ne.s32.totalorder %s21, %s24
    %p33 = scmp.eq.s32.totalorder %s16, 1
    %p34 = por %p32, %p33
    %p35 = scmp.ne.s32.totalorder %s24, %s25
    %p36 = scmp.eq.s32.totalorder %s16, 0
    %p37 = por %p35, %p36
    %p38 = scmp.ne.s32.totalorder %s24, %s25
    %p39 = scmp.eq.s32.totalorder %s17, 1
    %p40 = por %p38, %p39
    %p42 = scmp.ne.s32.totalorder %s25, %s41
    %p43 = scmp.eq.s32.totalorder %s17, 0
    %p44 = por %p42, %p43
    %s46 = sadd.s32 %s45, 1
    %p49 = scmp.eq.s32.totalorder %s11, 1
    %p50 = scmp.ne.s32.totalorder %s45, %s47
    %p51 = scmp.eq.s32.totalorder %s11, 0
    %p52 = por %p50, %p51
    %p53 = scmp.ne.s32.totalorder %s45, %s47
    %p54 = scmp.eq.s32.totalorder %s16, 1
    %p55 = por %p53, %p54
    %p56 = scmp.ne.s32.totalorder %s47, %s48
    %p57 = scmp.eq.s32.totalorder %s16, 0
    %p58 = por %p56, %p57
    %p59 = scmp.ne.s32.totalorder %s47, %s48
    %p60 = scmp.eq.s32.totalorder %s17, 1
    %p61 = por %p59, %p60
    %p63 = scmp.ne.s32.totalorder %s48, %s62
    %p64 = scmp.eq.s32.totalorder %s17, 0
    %p65 = por %p63, %p64
    %s67 = sadd.s32 %s66, 1
    %p70 = scmp.eq.s32.totalorder %s11, 1
    %p71 = scmp.ne.s32.totalorder %s66, %s68
    %p72 = scmp.eq.s32.totalorder %s11, 0
    %p73 = por %p71, %p72
    %p74 = scmp.ne.s32.totalorder %s66, %s68
    %p75 = scmp.eq.s32.totalorder %s16, 1
    %p76 = por %p74, %p75
    %p77 = scmp.ne.s32.totalorder %s68, %s69
    %p78 = scmp.eq.s32.totalorder %s16, 0
    %p79 = por %p77, %p78
    %p80 = scmp.ne.s32.totalorder %s68, %s69
    %p81 = scmp.eq.s32.totalorder %s17, 1
    %p82 = por %p80, %p81
    %p84 = scmp.ne.s32.totalorder %s69, %s83
    %p85 = scmp.eq.s32.totalorder %s17, 0
    %p86 = por %p84, %p85
    %s88 = sadd.s32 %s87, 1
    %p91 = scmp.eq.s32.totalorder %s11, 1
    %p92 = scmp.ne.s32.totalorder %s87, %s89
    %p93 = scmp.eq.s32.totalorder %s11, 0
    %p94 = por %p92, %p93
    %p95 = scmp.ne.s32.totalorder %s87, %s89
    %p96 = scmp.eq.s32.totalorder %s16, 1
    %p97 = por %p95, %p96
    %p98 = scmp.ne.s32.totalorder %s89, %s90
    %p99 = scmp.eq.s32.totalorder %s16, 0
    %p100 = por %p98, %p99
    %p101 = scmp.ne.s32.totalorder %s89, %s90
    %p102 = scmp.eq.s32.totalorder %s17, 1
    %p103 = por %p101, %p102
    %p105 = scmp.ne.s32.totalorder %s90, %s104
    %p106 = scmp.eq.s32.totalorder %s17, 0
    %p107 = por %p105, %p106
    %s109 = sadd.s32 %s108, 1
    %p112 = scmp.eq.s32.totalorder %s11, 1
    %p113 = scmp.ne.s32.totalorder %s108, %s110
    %p114 = scmp.eq.s32.totalorder %s11, 0
    %p115 = por %p113, %p114
    %p116 = scmp.ne.s32.totalorder %s108, %s110
    %p117 = scmp.eq.s32.totalorder %s16, 1
    %p118 = por %p116, %p117
    %p119 = scmp.ne.s32.totalorder %s110, %s111
    %p120 = scmp.eq.s32.totalorder %s16, 0
    %p121 = por %p119, %p120
    %p122 = scmp.ne.s32.totalorder %s110, %s111
    %p123 = scmp.eq.s32.totalorder %s17, 1
    %p124 = por %p122, %p123
    %p126 = scmp.ne.s32.totalorder %s111, %s125
    %p127 = scmp.eq.s32.totalorder %s17, 0
    %p128 = por %p126, %p127
    %s129 = ssub.s32 %s11, %s18
    %p130 = scmp.eq.s32.totalorder %s129, 0
    %s132 = sadd.s32 %s131, 1
    %s133 = scalar_select %p130, %s131, %s132
    %p136 = pneg %p130
    %p137 = scmp.eq.s32.totalorder %s11, 1
    %p138 = por %p136, %p137
    %p139 = scmp.ne.s32.totalorder %s131, %s134
    %p140 = scmp.eq.s32.totalorder %s11, 0
    %p141 = por %p139, %p140
    %p142 = scmp.ne.s32.totalorder %s131, %s134
    %p143 = scmp.eq.s32.totalorder %s16, 1
    %p144 = por %p142, %p143
    %p145 = scmp.ne.s32.totalorder %s134, %s135
    %p146 = scmp.eq.s32.totalorder %s16, 0
    %p147 = por %p145, %p146
    %p148 = scmp.ne.s32.totalorder %s134, %s135
    %p149 = scmp.eq.s32.totalorder %s17, 1
    %p150 = por %p148, %p149
    %p152 = scmp.ne.s32.totalorder %s135, %s151
    %p153 = scmp.eq.s32.totalorder %s17, 0
    %p154 = por %p152, %p153
    %p155 = scmp.le.s32.totalorder 1, %s11
    %p156 = scmp.lt.s32.totalorder %s11, 3
    %p157 = pnand %p155, %p156
    %p158 = pneg %p157
    // Predicated region
    $region9: #{pointnet2_backbone_forward.10} parent=5 // pred_check
      _
    $region10: #{pointnet2_backbone_forward.10} parent=5 // pred_check_branch
      %160 = sbr.rel (%p157) target = $region12
    $region11: #{pointnet2_backbone_forward.10} parent=5 // pred_region
      %s161 = ssub.s32 %s11, 1
      // Predicated region
      $region13: #{pointnet2_backbone_forward.10} parent=11 // pred_check
        %p162 = pneg %p58
      $region14: #{pointnet2_backbone_forward.10} parent=11 // pred_check_branch
        %164 = sbr.rel (%p162) target = $region16
      $region15: #{pointnet2_backbone_forward.10} parent=11 // pred_region
        _
      $region16: #{pointnet2_backbone_forward.10} parent=11 // pred_fallthru
        _
      // Predicated region
      $region17: #{pointnet2_backbone_forward.10} parent=11 // pred_check
        %p165 = pneg %p79
      $region18: #{pointnet2_backbone_forward.10} parent=11 // pred_check_branch
        %167 = sbr.rel (%p165) target = $region20
      $region19: #{pointnet2_backbone_forward.10} parent=11 // pred_region
        _
      $region20: #{pointnet2_backbone_forward.10} parent=11 // pred_fallthru
        _
      // Predicated region
      $region21: #{pointnet2_backbone_forward.10} parent=11 // pred_check
        %p168 = pneg %p100
      $region22: #{pointnet2_backbone_forward.10} parent=11 // pred_check_branch
        %170 = sbr.rel (%p168) target = $region24
      $region23: #{pointnet2_backbone_forward.10} parent=11 // pred_region
        _
      $region24: #{pointnet2_backbone_forward.10} parent=11 // pred_fallthru
        _
      // Predicated region
      $region25: #{pointnet2_backbone_forward.10} parent=11 // pred_check
        %p171 = pneg %p121
      $region26: #{pointnet2_backbone_forward.10} parent=11 // pred_check_branch
        %173 = sbr.rel (%p171) target = $region28
      $region27: #{pointnet2_backbone_forward.10} parent=11 // pred_region
        _
      $region28: #{pointnet2_backbone_forward.10} parent=11 // pred_fallthru
        _
    $region12: #{pointnet2_backbone_forward.10} parent=5 // pred_fallthru
      _
    %p174 = scmp.lt.s32.totalorder %s11, 2
    // Predicated region
    $region29: #{pointnet2_backbone_forward.10} parent=5 // pred_check
      %p175 = pneg %p174
    $region30: #{pointnet2_backbone_forward.10} parent=5 // pred_check_branch
      %177 = sbr.rel (%p175) target = $region32
    $region31: #{pointnet2_backbone_forward.10} parent=5 // pred_region
      // Predicated region
      $region33: #{pointnet2_backbone_forward.10} parent=31 // pred_check
        %p178 = pneg %p31
      $region34: #{pointnet2_backbone_forward.10} parent=31 // pred_check_branch
        %180 = sbr.rel (%p178) target = $region36
      $region35: #{pointnet2_backbone_forward.10} parent=31 // pred_region
        %s181 = smul.u32 4, %s11
        %p182 = scmp.lt.s32.totalorder %s181, 7
        %s183 = scalar_select %p182, %s181, 7
        %s184 = smul.addr %s183, 2
        %s185 = smul.addr %s184, 4
        %s186 = scalar_lea.vmem %s0, %s185
        %s187 = smul.u32 4, %s11
      $region36: #{pointnet2_backbone_forward.10} parent=31 // pred_fallthru
        _
    $region32: #{pointnet2_backbone_forward.10} parent=5 // pred_fallthru
      _
    %p188 = scmp.le.s32.totalorder 1, %s11
    %p189 = scmp.lt.s32.totalorder %s11, 3
    %p190 = pnand %p188, %p189
    %p191 = pneg %p190
    // Predicated region
    $region37: #{pointnet2_backbone_forward.10} parent=5 // pred_check
      _
    $region38: #{pointnet2_backbone_forward.10} parent=5 // pred_check_branch
      %193 = sbr.rel (%p190) target = $region40
    $region39: #{pointnet2_backbone_forward.10} parent=5 // pred_region
      %s194 = ssub.s32 %s11, 1
      %s195 = smul.u32 4, %s16
      %p196 = scmp.lt.s32.totalorder %s195, 7
      %s197 = scalar_select %p196, %s195, 7
      %s198 = smul.addr %s197, 2
      %s199 = smul.addr %s198, 4
      %s200 = scalar_lea.vmem %s0, %s199
      %p201 = pneg %p37
      %p202 = pneg %p34
      %p203 = pneg %p58
      %p204 = pneg %p55
      %p205 = pneg %p79
      %p206 = pneg %p76
      %p207 = pneg %p100
      %p208 = pneg %p97
      %p209 = pneg %p121
      %p210 = pneg %p118
      %p211 = pneg %p147
      %p212 = pneg %p144
      %s213 = smul.u32 4, %s16
      %p214 = scmp.lt.s32.totalorder %s213, 7
      %s215 = scalar_select %p214, %s213, 7
      %s216 = smul.addr %s215, 8
      %s217 = scalar_lea.vmem %s5, %s216
      %s218 = smul.u32 4, %s16
      %p219 = scmp.lt.s32.totalorder %s218, 7
      %s220 = scalar_select %p219, %s218, 7
      %s221 = smul.addr %s220, 2
      %s222 = smul.addr %s221, 4
      %s223 = scalar_lea.vmem %s0, %s222
      %s224 = smul.u32 4, %s16
      %s225 = smul.u32 4, %s16
      %p226 = scmp.lt.s32.totalorder %s225, 7
      %s227 = scalar_select %p226, %s225, 7
      %s228 = smul.addr %s227, 8
      %s229 = scalar_lea.vmem %s5, %s228
      %s230 = smul.u32 4, %s16
      %v232 = vld [vmem:[%s223] sm:$0xff]
      %v233 = vld [vmem:[%s223 + $0x8] sm:$0xff]
      %v234 = vld [vmem:[%s223 + $0x10] sm:$0xff]
      %v235 = vld [vmem:[%s223 + $0x18] sm:$0xff]
      %v236 = vld [vmem:[%s1] sm:$0xf]
      %v237 = vld [vmem:[%s1 + $0x4] sm:$0xf]
      %v238 = vld [vmem:[%s1 + $0x8] sm:$0xf]
      %v239 = vld [vmem:[%s1 + $0xc] sm:$0xf]
      %v240 = vld [vmem:[%s1 + $0x10] sm:$0xf]
      %v241 = vld [vmem:[%s1 + $0x14] sm:$0xf]
      %v242 = vld [vmem:[%s1 + $0x18] sm:$0xf]
      %v243 = vld [vmem:[%s1 + $0x1c] sm:$0xf]
      %v244 = vld [vmem:[%s1 + $0x20] sm:$0xf]
      %v245 = vld [vmem:[%s1 + $0x24] sm:$0xf]
      %v246 = vld [vmem:[%s1 + $0x28] sm:$0xf]
      %v247 = vld [vmem:[%s1 + $0x2c] sm:$0xf]
      %v248 = vld [vmem:[%s1 + $0x30] sm:$0xf]
      %v249 = vld [vmem:[%s1 + $0x34] sm:$0xf]
      %v250 = vld [vmem:[%s1 + $0x38] sm:$0xf]
      %v251 = vld [vmem:[%s1 + $0x3c] sm:$0xf]
      %v252 = vld [vmem:[%s1 + $0x40] sm:$0xf]
      %v253 = vld [vmem:[%s1 + $0x44] sm:$0xf]
      %v254 = vld [vmem:[%s1 + $0x48] sm:$0xf]
      %v255 = vld [vmem:[%s1 + $0x4c] sm:$0xf]
      %v256 = vld [vmem:[%s1 + $0x50] sm:$0xf]
      %v257 = vld [vmem:[%s1 + $0x54] sm:$0xf]
      %v258 = vld [vmem:[%s1 + $0x58] sm:$0xf]
      %v259 = vld [vmem:[%s1 + $0x5c] sm:$0xf]
      %v260 = vld [vmem:[%s1 + $0x60] sm:$0xf]
      %v261 = vld [vmem:[%s1 + $0x64] sm:$0xf]
      %v262 = vld [vmem:[%s1 + $0x68] sm:$0xf]
      %v263 = vld [vmem:[%s1 + $0x6c] sm:$0xf]
      %v264 = vld [vmem:[%s1 + $0x70] sm:$0xf]
      %v265 = vld [vmem:[%s1 + $0x74] sm:$0xf]
      %v266 = vld [vmem:[%s1 + $0x78] sm:$0xf]
      %v267 = vld [vmem:[%s1 + $0x7c] sm:$0xf]
      %v268 = vld [vmem:[%s2] sm:$0x1]
      %v270 = vlaneseq
      %v271 = vshrl.u32 %v270, 7
      %v272 = vsub.s32 0, %v271
      %v273 = vrot.slane %v268, %v272
      %v279 = vunpack.c.l.b16 %v232
      %v280 = vunpack.c.h.b16 %v232
      %v281 = vunpack.c.l.b16 %v233
      %v282 = vunpack.c.h.b16 %v233
      %v283 = vunpack.c.l.b16 %v234
      %v284 = vunpack.c.h.b16 %v234
      %v285 = vunpack.c.l.b16 %v235
      %v286 = vunpack.c.h.b16 %v235
      %v287 = vpack.c.b16 %v281, %v279
      %v288 = vpack.c.b16 %v282, %v280
      %v289 = vpack.c.b16 %v285, %v283
      %v290 = vpack.c.b16 %v286, %v284
      %v327 = vunpack.c.l.b16 %v236
      %v328 = vunpack.c.l.b16 %v237
      %v329 = vunpack.c.l.b16 %v238
      %v330 = vunpack.c.l.b16 %v239
      %v331 = vunpack.c.l.b16 %v240
      %v332 = vunpack.c.l.b16 %v241
      %v333 = vunpack.c.l.b16 %v242
      %v334 = vunpack.c.l.b16 %v243
      %v335 = vunpack.c.l.b16 %v244
      %v336 = vunpack.c.l.b16 %v245
      %v337 = vunpack.c.l.b16 %v246
      %v338 = vunpack.c.l.b16 %v247
      %v339 = vunpack.c.l.b16 %v248
      %v340 = vunpack.c.l.b16 %v249
      %v341 = vunpack.c.l.b16 %v250
      %v342 = vunpack.c.l.b16 %v251
      %v343 = vunpack.c.l.b16 %v252
      %v344 = vunpack.c.l.b16 %v253
      %v345 = vunpack.c.l.b16 %v254
      %v346 = vunpack.c.l.b16 %v255
      %v347 = vunpack.c.l.b16 %v256
      %v348 = vunpack.c.l.b16 %v257
      %v349 = vunpack.c.l.b16 %v258
      %v350 = vunpack.c.l.b16 %v259
      %v351 = vunpack.c.l.b16 %v260
      %v352 = vunpack.c.l.b16 %v261
      %v353 = vunpack.c.l.b16 %v262
      %v354 = vunpack.c.l.b16 %v263
      %v355 = vunpack.c.l.b16 %v264
      %v356 = vunpack.c.l.b16 %v265
      %v357 = vunpack.c.l.b16 %v266
      %v358 = vunpack.c.l.b16 %v267
      %v359 = vpack.c.b16 %v328, %v327
      %v360 = vpack.c.b16 %v330, %v329
      %v361 = vpack.c.b16 %v332, %v331
      %v362 = vpack.c.b16 %v334, %v333
      %v363 = vpack.c.b16 %v336, %v335
      %v364 = vpack.c.b16 %v338, %v337
      %v365 = vpack.c.b16 %v340, %v339
      %v366 = vpack.c.b16 %v342, %v341
      %v367 = vpack.c.b16 %v344, %v343
      %v368 = vpack.c.b16 %v346, %v345
      %v369 = vpack.c.b16 %v348, %v347
      %v370 = vpack.c.b16 %v350, %v349
      %v371 = vpack.c.b16 %v352, %v351
      %v372 = vpack.c.b16 %v354, %v353
      %v373 = vpack.c.b16 %v356, %v355
      %v374 = vpack.c.b16 %v358, %v357
      %391 = vmatprep.subr.bf16.mxu0 0
      %392 = vmatpush1.bf16.msra.mxu0 %v359
      %393 = vmatprep.subr.bf16.mxu0 0
      %394 = vmatpush1.bf16.msra.mxu0 %v360
      %395 = vmatprep.subr.bf16.mxu0 0
      %396 = vmatpush1.bf16.msra.mxu0 %v361
      %397 = vmatprep.subr.bf16.mxu0 0
      %398 = vmatpush1.bf16.msra.mxu0 %v362
      %399 = vmatprep.subr.bf16.mxu0 0
      %400 = vmatpush1.bf16.msra.mxu0 %v363
      %401 = vmatprep.subr.bf16.mxu0 0
      %402 = vmatpush1.bf16.msra.mxu0 %v364
      %403 = vmatprep.subr.bf16.mxu0 0
      %404 = vmatpush1.bf16.msra.mxu0 %v365
      %405 = vmatprep.subr.bf16.mxu0 0
      %406 = vmatpush1.bf16.msra.mxu0 %v366
      %407 = vmatprep.subr.bf16.mxu0 0
      %408 = vmatpush1.bf16.msra.mxu0 %v367
      %409 = vmatprep.subr.bf16.mxu0 0
      %410 = vmatpush1.bf16.msra.mxu0 %v368
      %411 = vmatprep.subr.bf16.mxu0 0
      %412 = vmatpush1.bf16.msra.mxu0 %v369
      %413 = vmatprep.subr.bf16.mxu0 0
      %414 = vmatpush1.bf16.msra.mxu0 %v370
      %415 = vmatprep.subr.bf16.mxu0 0
      %416 = vmatpush1.bf16.msra.mxu0 %v371
      %417 = vmatprep.subr.bf16.mxu0 0
      %418 = vmatpush1.bf16.msra.mxu0 %v372
      %419 = vmatprep.subr.bf16.mxu0 0
      %420 = vmatpush1.bf16.msra.mxu0 %v373
      %421 = vmatprep.subr.bf16.mxu0 0
      %422 = vmatpush1.bf16.msra.mxu0 %v374
      %423 = vmatprep.mubr.bf16.mxu0 %v288
      %424 = vmatmul.mubr.bf16.gmra.mrb[0].mxu0 %v287
      %v425 = vpop.f32.mrb[0].mxu0
      %v426 = vadd.f32 %v273, %v425
      %v427 = vpop.f32.mrb[0].mxu0
      %v428 = vpop.f32.mrb[0].mxu0
      %v429 = vadd.f32 %v273, %v428
      %v430 = vpop.f32.mrb[0].mxu0
      %431 = vmatprep.mubr.bf16.mxu0 %v290
      %432 = vmatmul.mubr.bf16.gmra.mrb[0].mxu0 %v289
      %v433 = vpop.f32.mrb[0].mxu0
      %v434 = vadd.f32 %v273, %v433
      %v435 = vpop.f32.mrb[0].mxu0
      %v436 = vpop.f32.mrb[0].mxu0
      %v437 = vadd.f32 %v273, %v436
      %v438 = vpop.f32.mrb[0].mxu0
      %439 = vdwg.mxu0
      %v440 = vmax.f32 %v426, 0.0
      %v441 = vmax.f32 %v429, 0.0
      %v442 = vmax.f32 %v434, 0.0
      %v443 = vmax.f32 %v437, 0.0
      %v444 = vpack.c.bf16 %v441, %v440
      %v445 = vpack.c.bf16 %v443, %v442
      %v446 = vld [vmem:[%s3] sm:$0xf]
      %v447 = vld [vmem:[%s3 + $0x4] sm:$0xf]
      %v448 = vld [vmem:[%s3 + $0x8] sm:$0xf]
      %v449 = vld [vmem:[%s3 + $0xc] sm:$0xf]
      %v450 = vld [vmem:[%s3 + $0x10] sm:$0xf]
      %v451 = vld [vmem:[%s3 + $0x14] sm:$0xf]
      %v452 = vld [vmem:[%s3 + $0x18] sm:$0xf]
      %v453 = vld [vmem:[%s3 + $0x1c] sm:$0xf]
      %v454 = vld [vmem:[%s3 + $0x20] sm:$0xf]
      %v455 = vld [vmem:[%s3 + $0x24] sm:$0xf]
      %v456 = vld [vmem:[%s3 + $0x28] sm:$0xf]
      %v457 = vld [vmem:[%s3 + $0x2c] sm:$0xf]
      %v458 = vld [vmem:[%s3 + $0x30] sm:$0xf]
      %v459 = vld [vmem:[%s3 + $0x34] sm:$0xf]
      %v460 = vld [vmem:[%s3 + $0x38] sm:$0xf]
      %v461 = vld [vmem:[%s3 + $0x3c] sm:$0xf]
      %v462 = vld [vmem:[%s4] sm:$0x1]
      %v464 = vlaneseq
      %v465 = vshrl.u32 %v464, 7
      %v466 = vsub.s32 0, %v465
      %v467 = vrot.slane %v462, %v466
      %v485 = vunpack.c.l.b16 %v446
      %v486 = vunpack.c.l.b16 %v447
      %v487 = vunpack.c.l.b16 %v448
      %v488 = vunpack.c.l.b16 %v449
      %v489 = vunpack.c.l.b16 %v450
      %v490 = vunpack.c.l.b16 %v451
      %v491 = vunpack.c.l.b16 %v452
      %v492 = vunpack.c.l.b16 %v453
      %v493 = vunpack.c.l.b16 %v454
      %v494 = vunpack.c.l.b16 %v455
      %v495 = vunpack.c.l.b16 %v456
      %v496 = vunpack.c.l.b16 %v457
      %v497 = vunpack.c.l.b16 %v458
      %v498 = vunpack.c.l.b16 %v459
      %v499 = vunpack.c.l.b16 %v460
      %v500 = vunpack.c.l.b16 %v461
      %v501 = vpack.c.b16 %v486, %v485
      %v502 = vpack.c.b16 %v488, %v487
      %v503 = vpack.c.b16 %v490, %v489
      %v504 = vpack.c.b16 %v492, %v491
      %v505 = vpack.c.b16 %v494, %v493
      %v506 = vpack.c.b16 %v496, %v495
      %v507 = vpack.c.b16 %v498, %v497
      %v508 = vpack.c.b16 %v500, %v499
      %517 = vmatprep.subr.bf16.mxu0 0
      %518 = vmatpush1.bf16.msra.mxu0 %v501
      %519 = vmatprep.subr.bf16.mxu0 0
      %520 = vmatpush1.bf16.msra.mxu0 %v502
      %521 = vmatprep.subr.bf16.mxu0 0
      %522 = vmatpush1.bf16.msra.mxu0 %v503
      %523 = vmatprep.subr.bf16.mxu0 0
      %524 = vmatpush1.bf16.msra.mxu0 %v504
      %525 = vmatprep.subr.bf16.mxu0 0
      %526 = vmatpush1.bf16.msra.mxu0 %v505
      %527 = vmatprep.subr.bf16.mxu0 0
      %528 = vmatpush1.bf16.msra.mxu0 %v506
      %529 = vmatprep.subr.bf16.mxu0 0
      %530 = vmatpush1.bf16.msra.mxu0 %v507
      %531 = vmatprep.subr.bf16.mxu0 0
      %532 = vmatpush1.bf16.msra.mxu0 %v508
      %533 = vmatprep.subr.bf16.mxu0 0
      %534 = vmatpush1.bf16.msra.mxu0 0
      %535 = vmatprep.subr.bf16.mxu0 0
      %536 = vmatpush1.bf16.msra.mxu0 0
      %537 = vmatprep.subr.bf16.mxu0 0
      %538 = vmatpush1.bf16.msra.mxu0 0
      %539 = vmatprep.subr.bf16.mxu0 0
      %540 = vmatpush1.bf16.msra.mxu0 0
      %541 = vmatprep.subr.bf16.mxu0 0
      %542 = vmatpush1.bf16.msra.mxu0 0
      %543 = vmatprep.subr.bf16.mxu0 0
      %544 = vmatpush1.bf16.msra.mxu0 0
      %545 = vmatprep.subr.bf16.mxu0 0
      %546 = vmatpush1.bf16.msra.mxu0 0
      %547 = vmatprep.subr.bf16.mxu0 0
      %548 = vmatpush1.bf16.msra.mxu0 0
      %549 = vmatprep.mubr.bf16.mxu0 0
      %550 = vmatmul.mubr.bf16.gmra.mrb[0].mxu0 %v444
      %v551 = vpop.f32.mrb[0].mxu0
      %v552 = vadd.f32 %v467, %v551
      %v553 = vpop.f32.mrb[0].mxu0
      %v554 = vpop.f32.mrb[0].mxu0
      %v555 = vadd.f32 %v467, %v554
      %v556 = vpop.f32.mrb[0].mxu0
      %557 = vmatprep.mubr.bf16.mxu0 0
      %558 = vmatmul.mubr.bf16.gmra.mrb[0].mxu0 %v445
      %v559 = vpop.f32.mrb[0].mxu0
      %v560 = vadd.f32 %v467, %v559
      %v561 = vpop.f32.mrb[0].mxu0
      %v562 = vpop.f32.mrb[0].mxu0
      %v563 = vadd.f32 %v467, %v562
      %v564 = vpop.f32.mrb[0].mxu0
      %565 = vdwg.mxu0
      %v566 = vmax.f32 %v552, 0.0
      %v567 = vmax.f32 %v555, 0.0
      %v568 = vmax.f32 %v560, 0.0
      %v569 = vmax.f32 %v563, 0.0
      %570 = vst [vmem:[%s229] sm:$0xff] %v566
      %571 = vst [vmem:[%s229 + $0x8] sm:$0xff] %v567
      %572 = vst [vmem:[%s229 + $0x10] sm:$0xff] %v568
      %573 = vst [vmem:[%s229 + $0x18] sm:$0xff] %v569
      %s574 = smul.u32 4, %s16
      %p575 = scmp.lt.s32.totalorder %s574, 7
      %s576 = scalar_select %p575, %s574, 7
      %s577 = smul.addr %s576, 8
      %s578 = scalar_lea.vmem %s5, %s577
      // Predicated region
      $region41: #{pointnet2_backbone_forward.10} parent=39 // pred_check
        %p579 = pneg %p144
      $region42: #{pointnet2_backbone_forward.10} parent=39 // pred_check_branch
        %581 = sbr.rel (%p579) target = $region44
      $region43: #{pointnet2_backbone_forward.10} parent=39 // pred_region
        %s582 = smul.u32 4, %s16
      $region44: #{pointnet2_backbone_forward.10} parent=39 // pred_fallthru
        _
    $region40: #{pointnet2_backbone_forward.10} parent=5 // pred_fallthru
      _
    %p583 = scmp.le.s32.totalorder 2, %s11
    // Predicated region
    $region45: #{pointnet2_backbone_forward.10} parent=5 // pred_check
      %p584 = pneg %p583
    $region46: #{pointnet2_backbone_forward.10} parent=5 // pred_check_branch
      %586 = sbr.rel (%p584) target = $region48
    $region47: #{pointnet2_backbone_forward.10} parent=5 // pred_region
      %s587 = ssub.s32 %s11, 2
      // Predicated region
      $region49: #{pointnet2_backbone_forward.10} parent=47 // pred_check
        %p588 = pneg %p150
      $region50: #{pointnet2_backbone_forward.10} parent=47 // pred_check_branch
        %590 = sbr.rel (%p588) target = $region52
      $region51: #{pointnet2_backbone_forward.10} parent=47 // pred_region
        %s591 = smul.u32 4, %s17
        %p592 = scmp.lt.s32.totalorder %s591, 7
        %s593 = scalar_select %p592, %s591, 7
        %s594 = smul.addr %s593, 8
        %s595 = scalar_lea.vmem %s5, %s594
      $region52: #{pointnet2_backbone_forward.10} parent=47 // pred_fallthru
        _
    $region48: #{pointnet2_backbone_forward.10} parent=5 // pred_fallthru
      _
  $region6: #{pointnet2_backbone_forward.10} parent=0 // loop_footer
    %s15 = sadd.s32 1, %s11
  $region7: #{pointnet2_backbone_forward.10} parent=0 // loop_footer_branch
    %10 = sbr.rel target = $region3
  $region8: #{pointnet2_backbone_forward.10} parent=0 // loop_exit
    _

// kernel: pointnet2_backbone_forward.11
$region0: #{pointnet2_backbone_forward.11}
  #allocation0 [shape = 'u32[]', space=smem, size = 0x4, offset = 0x4, fixed_abs, tag = 'smem constant byte address 0x4 - core index']
  #allocation1 [shape = 'u32[144,128]{1,0:T(1,128)}', space=vmem, size = 0x12000, scoped, tag = 'internal scratch']
  %s0 = inlined_call_operand.vmem [shape: bf16[128,128], index: 0, kind: input, shape index: {}]
  %s1 = inlined_call_operand.vmem [shape: bf16[128,128], index: 1, kind: input, shape index: {}]
  %s2 = inlined_call_operand.vmem [shape: f32[1,128], index: 2, kind: input, shape index: {}]
  %s3 = inlined_call_operand.vmem [shape: bf16[128,128], index: 3, kind: input, shape index: {}]
  %s4 = inlined_call_operand.vmem [shape: f32[1,128], index: 4, kind: input, shape index: {}]
  %s5 = inlined_call_operand.vmem [shape: f32[128,128], index: 5, kind: output, shape index: {}]
  %s6 = sld [smem:[#allocation0]]
  $region53: #{pointnet2_backbone_forward.11} parent=0
    _
  %s8 = ssub.s32 1, %s6
  %s9 = scalar_select 0, %s8, %s6
  loop: start=0, step=1, limit=4
  $region2: #{pointnet2_backbone_forward.11} parent=0 // loop_pre_header
    _
  $region3: #{pointnet2_backbone_forward.11} parent=0 // loop_header
    %s11 = sphi 0, %s15
    %p12 = scmp.ge.s32.totalorder %s11, 4
    %s21 = sphi 0, %s23
    %s24 = sphi 0, %s21
    %s25 = sphi 0, %s24
    %s41 = sphi 0, %s25
    %s45 = sphi 0, %s45
    %s47 = sphi 0, %s45
    %s48 = sphi 0, %s47
    %s62 = sphi 0, %s48
    %s66 = sphi 0, %s66
    %s68 = sphi 0, %s66
    %s69 = sphi 0, %s68
    %s83 = sphi 0, %s69
    %s87 = sphi 0, %s87
    %s89 = sphi 0, %s87
    %s90 = sphi 0, %s89
    %s104 = sphi 0, %s90
    %s108 = sphi 0, %s108
    %s110 = sphi 0, %s108
    %s111 = sphi 0, %s110
    %s125 = sphi 0, %s111
    %s131 = sphi 0, %s133
    %s134 = sphi 0, %s131
    %s135 = sphi 0, %s134
    %s151 = sphi 0, %s135
  $region4: #{pointnet2_backbone_forward.11} parent=0 // loop_header_branch
    %14 = sbr.rel (%p12) target = $region8
  $region5: #{pointnet2_backbone_forward.11} parent=0 // loop_body
    %s16 = ssub.s32 %s11, 1
    %s17 = ssub.s32 %s11, 2
    %s18 = sadd.s32 %s11, 1
    %s19 = ssub.s32 %s11, %s18
    %p20 = scmp.eq.s32.totalorder %s19, 0
    %s22 = sadd.s32 %s21, 1
    %s23 = scalar_select %p20, %s21, %s22
    %p26 = pneg %p20
    %p27 = scmp.eq.s32.totalorder %s11, 1
    %p28 = por %p26, %p27
    %p29 = scmp.ne.s32.totalorder %s21, %s24
    %p30 = scmp.eq.s32.totalorder %s11, 0
    %p31 = por %p29, %p30
    %p32 = scmp.ne.s32.totalorder %s21, %s24
    %p33 = scmp.eq.s32.totalorder %s16, 1
    %p34 = por %p32, %p33
    %p35 = scmp.ne.s32.totalorder %s24, %s25
    %p36 = scmp.eq.s32.totalorder %s16, 0
    %p37 = por %p35, %p36
    %p38 = scmp.ne.s32.totalorder %s24, %s25
    %p39 = scmp.eq.s32.totalorder %s17, 1
    %p40 = por %p38, %p39
    %p42 = scmp.ne.s32.totalorder %s25, %s41
    %p43 = scmp.eq.s32.totalorder %s17, 0
    %p44 = por %p42, %p43
    %s46 = sadd.s32 %s45, 1
    %p49 = scmp.eq.s32.totalorder %s11, 1
    %p50 = scmp.ne.s32.totalorder %s45, %s47
    %p51 = scmp.eq.s32.totalorder %s11, 0
    %p52 = por %p50, %p51
    %p53 = scmp.ne.s32.totalorder %s45, %s47
    %p54 = scmp.eq.s32.totalorder %s16, 1
    %p55 = por %p53, %p54
    %p56 = scmp.ne.s32.totalorder %s47, %s48
    %p57 = scmp.eq.s32.totalorder %s16, 0
    %p58 = por %p56, %p57
    %p59 = scmp.ne.s32.totalorder %s47, %s48
    %p60 = scmp.eq.s32.totalorder %s17, 1
    %p61 = por %p59, %p60
    %p63 = scmp.ne.s32.totalorder %s48, %s62
    %p64 = scmp.eq.s32.totalorder %s17, 0
    %p65 = por %p63, %p64
    %s67 = sadd.s32 %s66, 1
    %p70 = scmp.eq.s32.totalorder %s11, 1
    %p71 = scmp.ne.s32.totalorder %s66, %s68
    %p72 = scmp.eq.s32.totalorder %s11, 0
    %p73 = por %p71, %p72
    %p74 = scmp.ne.s32.totalorder %s66, %s68
    %p75 = scmp.eq.s32.totalorder %s16, 1
    %p76 = por %p74, %p75
    %p77 = scmp.ne.s32.totalorder %s68, %s69
    %p78 = scmp.eq.s32.totalorder %s16, 0
    %p79 = por %p77, %p78
    %p80 = scmp.ne.s32.totalorder %s68, %s69
    %p81 = scmp.eq.s32.totalorder %s17, 1
    %p82 = por %p80, %p81
    %p84 = scmp.ne.s32.totalorder %s69, %s83
    %p85 = scmp.eq.s32.totalorder %s17, 0
    %p86 = por %p84, %p85
    %s88 = sadd.s32 %s87, 1
    %p91 = scmp.eq.s32.totalorder %s11, 1
    %p92 = scmp.ne.s32.totalorder %s87, %s89
    %p93 = scmp.eq.s32.totalorder %s11, 0
    %p94 = por %p92, %p93
    %p95 = scmp.ne.s32.totalorder %s87, %s89
    %p96 = scmp.eq.s32.totalorder %s16, 1
    %p97 = por %p95, %p96
    %p98 = scmp.ne.s32.totalorder %s89, %s90
    %p99 = scmp.eq.s32.totalorder %s16, 0
    %p100 = por %p98, %p99
    %p101 = scmp.ne.s32.totalorder %s89, %s90
    %p102 = scmp.eq.s32.totalorder %s17, 1
    %p103 = por %p101, %p102
    %p105 = scmp.ne.s32.totalorder %s90, %s104
    %p106 = scmp.eq.s32.totalorder %s17, 0
    %p107 = por %p105, %p106
    %s109 = sadd.s32 %s108, 1
    %p112 = scmp.eq.s32.totalorder %s11, 1
    %p113 = scmp.ne.s32.totalorder %s108, %s110
    %p114 = scmp.eq.s32.totalorder %s11, 0
    %p115 = por %p113, %p114
    %p116 = scmp.ne.s32.totalorder %s108, %s110
    %p117 = scmp.eq.s32.totalorder %s16, 1
    %p118 = por %p116, %p117
    %p119 = scmp.ne.s32.totalorder %s110, %s111
    %p120 = scmp.eq.s32.totalorder %s16, 0
    %p121 = por %p119, %p120
    %p122 = scmp.ne.s32.totalorder %s110, %s111
    %p123 = scmp.eq.s32.totalorder %s17, 1
    %p124 = por %p122, %p123
    %p126 = scmp.ne.s32.totalorder %s111, %s125
    %p127 = scmp.eq.s32.totalorder %s17, 0
    %p128 = por %p126, %p127
    %s129 = ssub.s32 %s11, %s18
    %p130 = scmp.eq.s32.totalorder %s129, 0
    %s132 = sadd.s32 %s131, 1
    %s133 = scalar_select %p130, %s131, %s132
    %p136 = pneg %p130
    %p137 = scmp.eq.s32.totalorder %s11, 1
    %p138 = por %p136, %p137
    %p139 = scmp.ne.s32.totalorder %s131, %s134
    %p140 = scmp.eq.s32.totalorder %s11, 0
    %p141 = por %p139, %p140
    %p142 = scmp.ne.s32.totalorder %s131, %s134
    %p143 = scmp.eq.s32.totalorder %s16, 1
    %p144 = por %p142, %p143
    %p145 = scmp.ne.s32.totalorder %s134, %s135
    %p146 = scmp.eq.s32.totalorder %s16, 0
    %p147 = por %p145, %p146
    %p148 = scmp.ne.s32.totalorder %s134, %s135
    %p149 = scmp.eq.s32.totalorder %s17, 1
    %p150 = por %p148, %p149
    %p152 = scmp.ne.s32.totalorder %s135, %s151
    %p153 = scmp.eq.s32.totalorder %s17, 0
    %p154 = por %p152, %p153
    %p155 = scmp.le.s32.totalorder 1, %s11
    %p156 = scmp.lt.s32.totalorder %s11, 3
    %p157 = pnand %p155, %p156
    %p158 = pneg %p157
    // Predicated region
    $region9: #{pointnet2_backbone_forward.11} parent=5 // pred_check
      _
    $region10: #{pointnet2_backbone_forward.11} parent=5 // pred_check_branch
      %160 = sbr.rel (%p157) target = $region12
    $region11: #{pointnet2_backbone_forward.11} parent=5 // pred_region
      %s161 = ssub.s32 %s11, 1
      // Predicated region
      $region13: #{pointnet2_backbone_forward.11} parent=11 // pred_check
        %p162 = pneg %p58
      $region14: #{pointnet2_backbone_forward.11} parent=11 // pred_check_branch
        %164 = sbr.rel (%p162) target = $region16
      $region15: #{pointnet2_backbone_forward.11} parent=11 // pred_region
        _
      $region16: #{pointnet2_backbone_forward.11} parent=11 // pred_fallthru
        _
      // Predicated region
      $region17: #{pointnet2_backbone_forward.11} parent=11 // pred_check
        %p165 = pneg %p79
      $region18: #{pointnet2_backbone_forward.11} parent=11 // pred_check_branch
        %167 = sbr.rel (%p165) target = $region20
      $region19: #{pointnet2_backbone_forward.11} parent=11 // pred_region
        _
      $region20: #{pointnet2_backbone_forward.11} parent=11 // pred_fallthru
        _
      // Predicated region
      $region21: #{pointnet2_backbone_forward.11} parent=11 // pred_check
        %p168 = pneg %p100
      $region22: #{pointnet2_backbone_forward.11} parent=11 // pred_check_branch
        %170 = sbr.rel (%p168) target = $region24
      $region23: #{pointnet2_backbone_forward.11} parent=11 // pred_region
        _
      $region24: #{pointnet2_backbone_forward.11} parent=11 // pred_fallthru
        _
      // Predicated region
      $region25: #{pointnet2_backbone_forward.11} parent=11 // pred_check
        %p171 = pneg %p121
      $region26: #{pointnet2_backbone_forward.11} parent=11 // pred_check_branch
        %173 = sbr.rel (%p171) target = $region28
      $region27: #{pointnet2_backbone_forward.11} parent=11 // pred_region
        _
      $region28: #{pointnet2_backbone_forward.11} parent=11 // pred_fallthru
        _
    $region12: #{pointnet2_backbone_forward.11} parent=5 // pred_fallthru
      _
    %p174 = scmp.lt.s32.totalorder %s11, 2
    // Predicated region
    $region29: #{pointnet2_backbone_forward.11} parent=5 // pred_check
      %p175 = pneg %p174
    $region30: #{pointnet2_backbone_forward.11} parent=5 // pred_check_branch
      %177 = sbr.rel (%p175) target = $region32
    $region31: #{pointnet2_backbone_forward.11} parent=5 // pred_region
      // Predicated region
      $region33: #{pointnet2_backbone_forward.11} parent=31 // pred_check
        %p178 = pneg %p31
      $region34: #{pointnet2_backbone_forward.11} parent=31 // pred_check_branch
        %180 = sbr.rel (%p178) target = $region36
      $region35: #{pointnet2_backbone_forward.11} parent=31 // pred_region
        %s181 = smul.u32 8, %s11
        %p182 = scmp.lt.s32.totalorder %s181, 15
        %s183 = scalar_select %p182, %s181, 15
        %s184 = smul.addr %s183, 4
        %s185 = scalar_lea.vmem %s0, %s184
        %s186 = smul.u32 8, %s11
      $region36: #{pointnet2_backbone_forward.11} parent=31 // pred_fallthru
        _
    $region32: #{pointnet2_backbone_forward.11} parent=5 // pred_fallthru
      _
    %p187 = scmp.le.s32.totalorder 1, %s11
    %p188 = scmp.lt.s32.totalorder %s11, 3
    %p189 = pnand %p187, %p188
    %p190 = pneg %p189
    // Predicated region
    $region37: #{pointnet2_backbone_forward.11} parent=5 // pred_check
      _
    $region38: #{pointnet2_backbone_forward.11} parent=5 // pred_check_branch
      %192 = sbr.rel (%p189) target = $region40
    $region39: #{pointnet2_backbone_forward.11} parent=5 // pred_region
      %s193 = ssub.s32 %s11, 1
      %s194 = smul.u32 8, %s16
      %p195 = scmp.lt.s32.totalorder %s194, 15
      %s196 = scalar_select %p195, %s194, 15
      %s197 = smul.addr %s196, 4
      %s198 = scalar_lea.vmem %s0, %s197
      %p199 = pneg %p37
      %p200 = pneg %p34
      %p201 = pneg %p58
      %p202 = pneg %p55
      %p203 = pneg %p79
      %p204 = pneg %p76
      %p205 = pneg %p100
      %p206 = pneg %p97
      %p207 = pneg %p121
      %p208 = pneg %p118
      %p209 = pneg %p147
      %p210 = pneg %p144
      %s211 = smul.u32 8, %s16
      %p212 = scmp.lt.s32.totalorder %s211, 15
      %s213 = scalar_select %p212, %s211, 15
      %s214 = smul.addr %s213, 8
      %s215 = scalar_lea.vmem %s5, %s214
      %s216 = smul.u32 8, %s16
      %p217 = scmp.lt.s32.totalorder %s216, 15
      %s218 = scalar_select %p217, %s216, 15
      %s219 = smul.addr %s218, 4
      %s220 = scalar_lea.vmem %s0, %s219
      %s221 = smul.u32 8, %s16
      %s222 = smul.u32 8, %s16
      %p223 = scmp.lt.s32.totalorder %s222, 15
      %s224 = scalar_select %p223, %s222, 15
      %s225 = smul.addr %s224, 8
      %s226 = scalar_lea.vmem %s5, %s225
      %s227 = smul.u32 8, %s16
      %v229 = vld [vmem:[%s220] sm:$0xf]
      %v230 = vld [vmem:[%s220 + $0x4] sm:$0xf]
      %v231 = vld [vmem:[%s220 + $0x8] sm:$0xf]
      %v232 = vld [vmem:[%s220 + $0xc] sm:$0xf]
      %v233 = vld [vmem:[%s220 + $0x10] sm:$0xf]
      %v234 = vld [vmem:[%s220 + $0x14] sm:$0xf]
      %v235 = vld [vmem:[%s220 + $0x18] sm:$0xf]
      %v236 = vld [vmem:[%s220 + $0x1c] sm:$0xf]
      %v237 = vld [vmem:[%s1] sm:$0xf]
      %v238 = vld [vmem:[%s1 + $0x4] sm:$0xf]
      %v239 = vld [vmem:[%s1 + $0x8] sm:$0xf]
      %v240 = vld [vmem:[%s1 + $0xc] sm:$0xf]
      %v241 = vld [vmem:[%s1 + $0x10] sm:$0xf]
      %v242 = vld [vmem:[%s1 + $0x14] sm:$0xf]
      %v243 = vld [vmem:[%s1 + $0x18] sm:$0xf]
      %v244 = vld [vmem:[%s1 + $0x1c] sm:$0xf]
      %v245 = vld [vmem:[%s1 + $0x20] sm:$0xf]
      %v246 = vld [vmem:[%s1 + $0x24] sm:$0xf]
      %v247 = vld [vmem:[%s1 + $0x28] sm:$0xf]
      %v248 = vld [vmem:[%s1 + $0x2c] sm:$0xf]
      %v249 = vld [vmem:[%s1 + $0x30] sm:$0xf]
      %v250 = vld [vmem:[%s1 + $0x34] sm:$0xf]
      %v251 = vld [vmem:[%s1 + $0x38] sm:$0xf]
      %v252 = vld [vmem:[%s1 + $0x3c] sm:$0xf]
      %v253 = vld [vmem:[%s2] sm:$0x1]
      %v255 = vlaneseq
      %v256 = vshrl.u32 %v255, 7
      %v257 = vsub.s32 0, %v256
      %v258 = vrot.slane %v253, %v257
      %v268 = vunpack.c.l.b16 %v229
      %v269 = vunpack.c.l.b16 %v230
      %v270 = vunpack.c.l.b16 %v231
      %v271 = vunpack.c.l.b16 %v232
      %v272 = vunpack.c.l.b16 %v233
      %v273 = vunpack.c.l.b16 %v234
      %v274 = vunpack.c.l.b16 %v235
      %v275 = vunpack.c.l.b16 %v236
      %v276 = vpack.c.b16 %v269, %v268
      %v277 = vpack.c.b16 %v271, %v270
      %v278 = vpack.c.b16 %v273, %v272
      %v279 = vpack.c.b16 %v275, %v274
      %v300 = vunpack.c.l.b16 %v237
      %v301 = vunpack.c.l.b16 %v238
      %v302 = vunpack.c.l.b16 %v239
      %v303 = vunpack.c.l.b16 %v240
      %v304 = vunpack.c.l.b16 %v241
      %v305 = vunpack.c.l.b16 %v242
      %v306 = vunpack.c.l.b16 %v243
      %v307 = vunpack.c.l.b16 %v244
      %v308 = vunpack.c.l.b16 %v245
      %v309 = vunpack.c.l.b16 %v246
      %v310 = vunpack.c.l.b16 %v247
      %v311 = vunpack.c.l.b16 %v248
      %v312 = vunpack.c.l.b16 %v249
      %v313 = vunpack.c.l.b16 %v250
      %v314 = vunpack.c.l.b16 %v251
      %v315 = vunpack.c.l.b16 %v252
      %v316 = vpack.c.b16 %v301, %v300
      %v317 = vpack.c.b16 %v303, %v302
      %v318 = vpack.c.b16 %v305, %v304
      %v319 = vpack.c.b16 %v307, %v306
      %v320 = vpack.c.b16 %v309, %v308
      %v321 = vpack.c.b16 %v311, %v310
      %v322 = vpack.c.b16 %v313, %v312
      %v323 = vpack.c.b16 %v315, %v314
      %332 = vmatprep.subr.bf16.mxu0 0
      %333 = vmatpush1.bf16.msra.mxu0 %v316
      %334 = vmatprep.subr.bf16.mxu0 0
      %335 = vmatpush1.bf16.msra.mxu0 %v317
      %336 = vmatprep.subr.bf16.mxu0 0
      %337 = vmatpush1.bf16.msra.mxu0 %v318
      %338 = vmatprep.subr.bf16.mxu0 0
      %339 = vmatpush1.bf16.msra.mxu0 %v319
      %340 = vmatprep.subr.bf16.mxu0 0
      %341 = vmatpush1.bf16.msra.mxu0 %v320
      %342 = vmatprep.subr.bf16.mxu0 0
      %343 = vmatpush1.bf16.msra.mxu0 %v321
      %344 = vmatprep.subr.bf16.mxu0 0
      %345 = vmatpush1.bf16.msra.mxu0 %v322
      %346 = vmatprep.subr.bf16.mxu0 0
      %347 = vmatpush1.bf16.msra.mxu0 %v323
      %348 = vmatprep.subr.bf16.mxu0 0
      %349 = vmatpush1.bf16.msra.mxu0 0
      %350 = vmatprep.subr.bf16.mxu0 0
      %351 = vmatpush1.bf16.msra.mxu0 0
      %352 = vmatprep.subr.bf16.mxu0 0
      %353 = vmatpush1.bf16.msra.mxu0 0
      %354 = vmatprep.subr.bf16.mxu0 0
      %355 = vmatpush1.bf16.msra.mxu0 0
      %356 = vmatprep.subr.bf16.mxu0 0
      %357 = vmatpush1.bf16.msra.mxu0 0
      %358 = vmatprep.subr.bf16.mxu0 0
      %359 = vmatpush1.bf16.msra.mxu0 0
      %360 = vmatprep.subr.bf16.mxu0 0
      %361 = vmatpush1.bf16.msra.mxu0 0
      %362 = vmatprep.subr.bf16.mxu0 0
      %363 = vmatpush1.bf16.msra.mxu0 0
      %364 = vmatprep.mubr.bf16.mxu0 0
      %365 = vmatmul.mubr.bf16.gmra.mrb[0].mxu0 %v276
      %v366 = vpop.f32.mrb[0].mxu0
      %v367 = vadd.f32 %v258, %v366
      %v368 = vpop.f32.mrb[0].mxu0
      %v369 = vpop.f32.mrb[0].mxu0
      %v370 = vadd.f32 %v258, %v369
      %v371 = vpop.f32.mrb[0].mxu0
      %372 = vmatprep.mubr.bf16.mxu0 0
      %373 = vmatmul.mubr.bf16.gmra.mrb[0].mxu0 %v277
      %v374 = vpop.f32.mrb[0].mxu0
      %v375 = vadd.f32 %v258, %v374
      %v376 = vpop.f32.mrb[0].mxu0
      %v377 = vpop.f32.mrb[0].mxu0
      %v378 = vadd.f32 %v258, %v377
      %v379 = vpop.f32.mrb[0].mxu0
      %380 = vmatprep.mubr.bf16.mxu0 0
      %381 = vmatmul.mubr.bf16.gmra.mrb[0].mxu0 %v278
      %v382 = vpop.f32.mrb[0].mxu0
      %v383 = vadd.f32 %v258, %v382
      %v384 = vpop.f32.mrb[0].mxu0
      %v385 = vpop.f32.mrb[0].mxu0
      %v386 = vadd.f32 %v258, %v385
      %v387 = vpop.f32.mrb[0].mxu0
      %388 = vmatprep.mubr.bf16.mxu0 0
      %389 = vmatmul.mubr.bf16.gmra.mrb[0].mxu0 %v279
      %v390 = vpop.f32.mrb[0].mxu0
      %v391 = vadd.f32 %v258, %v390
      %v392 = vpop.f32.mrb[0].mxu0
      %v393 = vpop.f32.mrb[0].mxu0
      %v394 = vadd.f32 %v258, %v393
      %v395 = vpop.f32.mrb[0].mxu0
      %396 = vdwg.mxu0
      %v397 = vmax.f32 %v367, 0.0
      %v398 = vmax.f32 %v370, 0.0
      %v399 = vmax.f32 %v375, 0.0
      %v400 = vmax.f32 %v378, 0.0
      %v401 = vmax.f32 %v383, 0.0
      %v402 = vmax.f32 %v386, 0.0
      %v403 = vmax.f32 %v391, 0.0
      %v404 = vmax.f32 %v394, 0.0
      %v405 = vpack.c.bf16 %v398, %v397
      %v406 = vpack.c.bf16 %v400, %v399
      %v407 = vpack.c.bf16 %v402, %v401
      %v408 = vpack.c.bf16 %v404, %v403
      %v409 = vld [vmem:[%s3] sm:$0xf]
      %v410 = vld [vmem:[%s3 + $0x4] sm:$0xf]
      %v411 = vld [vmem:[%s3 + $0x8] sm:$0xf]
      %v412 = vld [vmem:[%s3 + $0xc] sm:$0xf]
      %v413 = vld [vmem:[%s3 + $0x10] sm:$0xf]
      %v414 = vld [vmem:[%s3 + $0x14] sm:$0xf]
      %v415 = vld [vmem:[%s3 + $0x18] sm:$0xf]
      %v416 = vld [vmem:[%s3 + $0x1c] sm:$0xf]
      %v417 = vld [vmem:[%s3 + $0x20] sm:$0xf]
      %v418 = vld [vmem:[%s3 + $0x24] sm:$0xf]
      %v419 = vld [vmem:[%s3 + $0x28] sm:$0xf]
      %v420 = vld [vmem:[%s3 + $0x2c] sm:$0xf]
      %v421 = vld [vmem:[%s3 + $0x30] sm:$0xf]
      %v422 = vld [vmem:[%s3 + $0x34] sm:$0xf]
      %v423 = vld [vmem:[%s3 + $0x38] sm:$0xf]
      %v424 = vld [vmem:[%s3 + $0x3c] sm:$0xf]
      %v425 = vld [vmem:[%s4] sm:$0x1]
      %v427 = vlaneseq
      %v428 = vshrl.u32 %v427, 7
      %v429 = vsub.s32 0, %v428
      %v430 = vrot.slane %v425, %v429
      %v448 = vunpack.c.l.b16 %v409
      %v449 = vunpack.c.l.b16 %v410
      %v450 = vunpack.c.l.b16 %v411
      %v451 = vunpack.c.l.b16 %v412
      %v452 = vunpack.c.l.b16 %v413
      %v453 = vunpack.c.l.b16 %v414
      %v454 = vunpack.c.l.b16 %v415
      %v455 = vunpack.c.l.b16 %v416
      %v456 = vunpack.c.l.b16 %v417
      %v457 = vunpack.c.l.b16 %v418
      %v458 = vunpack.c.l.b16 %v419
      %v459 = vunpack.c.l.b16 %v420
      %v460 = vunpack.c.l.b16 %v421
      %v461 = vunpack.c.l.b16 %v422
      %v462 = vunpack.c.l.b16 %v423
      %v463 = vunpack.c.l.b16 %v424
      %v464 = vpack.c.b16 %v449, %v448
      %v465 = vpack.c.b16 %v451, %v450
      %v466 = vpack.c.b16 %v453, %v452
      %v467 = vpack.c.b16 %v455, %v454
      %v468 = vpack.c.b16 %v457, %v456
      %v469 = vpack.c.b16 %v459, %v458
      %v470 = vpack.c.b16 %v461, %v460
      %v471 = vpack.c.b16 %v463, %v462
      %480 = vmatprep.subr.bf16.mxu0 0
      %481 = vmatpush1.bf16.msra.mxu0 %v464
      %482 = vmatprep.subr.bf16.mxu0 0
      %483 = vmatpush1.bf16.msra.mxu0 %v465
      %484 = vmatprep.subr.bf16.mxu0 0
      %485 = vmatpush1.bf16.msra.mxu0 %v466
      %486 = vmatprep.subr.bf16.mxu0 0
      %487 = vmatpush1.bf16.msra.mxu0 %v467
      %488 = vmatprep.subr.bf16.mxu0 0
      %489 = vmatpush1.bf16.msra.mxu0 %v468
      %490 = vmatprep.subr.bf16.mxu0 0
      %491 = vmatpush1.bf16.msra.mxu0 %v469
      %492 = vmatprep.subr.bf16.mxu0 0
      %493 = vmatpush1.bf16.msra.mxu0 %v470
      %494 = vmatprep.subr.bf16.mxu0 0
      %495 = vmatpush1.bf16.msra.mxu0 %v471
      %496 = vmatprep.subr.bf16.mxu0 0
      %497 = vmatpush1.bf16.msra.mxu0 0
      %498 = vmatprep.subr.bf16.mxu0 0
      %499 = vmatpush1.bf16.msra.mxu0 0
      %500 = vmatprep.subr.bf16.mxu0 0
      %501 = vmatpush1.bf16.msra.mxu0 0
      %502 = vmatprep.subr.bf16.mxu0 0
      %503 = vmatpush1.bf16.msra.mxu0 0
      %504 = vmatprep.subr.bf16.mxu0 0
      %505 = vmatpush1.bf16.msra.mxu0 0
      %506 = vmatprep.subr.bf16.mxu0 0
      %507 = vmatpush1.bf16.msra.mxu0 0
      %508 = vmatprep.subr.bf16.mxu0 0
      %509 = vmatpush1.bf16.msra.mxu0 0
      %510 = vmatprep.subr.bf16.mxu0 0
      %511 = vmatpush1.bf16.msra.mxu0 0
      %512 = vmatprep.mubr.bf16.mxu0 0
      %513 = vmatmul.mubr.bf16.gmra.mrb[0].mxu0 %v405
      %v514 = vpop.f32.mrb[0].mxu0
      %v515 = vadd.f32 %v430, %v514
      %v516 = vpop.f32.mrb[0].mxu0
      %v517 = vpop.f32.mrb[0].mxu0
      %v518 = vadd.f32 %v430, %v517
      %v519 = vpop.f32.mrb[0].mxu0
      %520 = vmatprep.mubr.bf16.mxu0 0
      %521 = vmatmul.mubr.bf16.gmra.mrb[0].mxu0 %v406
      %v522 = vpop.f32.mrb[0].mxu0
      %v523 = vadd.f32 %v430, %v522
      %v524 = vpop.f32.mrb[0].mxu0
      %v525 = vpop.f32.mrb[0].mxu0
      %v526 = vadd.f32 %v430, %v525
      %v527 = vpop.f32.mrb[0].mxu0
      %528 = vmatprep.mubr.bf16.mxu0 0
      %529 = vmatmul.mubr.bf16.gmra.mrb[0].mxu0 %v407
      %v530 = vpop.f32.mrb[0].mxu0
      %v531 = vadd.f32 %v430, %v530
      %v532 = vpop.f32.mrb[0].mxu0
      %v533 = vpop.f32.mrb[0].mxu0
      %v534 = vadd.f32 %v430, %v533
      %v535 = vpop.f32.mrb[0].mxu0
      %536 = vmatprep.mubr.bf16.mxu0 0
      %537 = vmatmul.mubr.bf16.gmra.mrb[0].mxu0 %v408
      %v538 = vpop.f32.mrb[0].mxu0
      %v539 = vadd.f32 %v430, %v538
      %v540 = vpop.f32.mrb[0].mxu0
      %v541 = vpop.f32.mrb[0].mxu0
      %v542 = vadd.f32 %v430, %v541
      %v543 = vpop.f32.mrb[0].mxu0
      %544 = vdwg.mxu0
      %v545 = vmax.f32 %v515, 0.0
      %v546 = vmax.f32 %v518, 0.0
      %v547 = vmax.f32 %v523, 0.0
      %v548 = vmax.f32 %v526, 0.0
      %v549 = vmax.f32 %v531, 0.0
      %v550 = vmax.f32 %v534, 0.0
      %v551 = vmax.f32 %v539, 0.0
      %v552 = vmax.f32 %v542, 0.0
      %553 = vst [vmem:[%s226] sm:$0xff] %v545
      %554 = vst [vmem:[%s226 + $0x8] sm:$0xff] %v546
      %555 = vst [vmem:[%s226 + $0x10] sm:$0xff] %v547
      %556 = vst [vmem:[%s226 + $0x18] sm:$0xff] %v548
      %557 = vst [vmem:[%s226 + $0x20] sm:$0xff] %v549
      %558 = vst [vmem:[%s226 + $0x28] sm:$0xff] %v550
      %559 = vst [vmem:[%s226 + $0x30] sm:$0xff] %v551
      %560 = vst [vmem:[%s226 + $0x38] sm:$0xff] %v552
      %s561 = smul.u32 8, %s16
      %p562 = scmp.lt.s32.totalorder %s561, 15
      %s563 = scalar_select %p562, %s561, 15
      %s564 = smul.addr %s563, 8
      %s565 = scalar_lea.vmem %s5, %s564
      // Predicated region
      $region41: #{pointnet2_backbone_forward.11} parent=39 // pred_check
        %p566 = pneg %p144
      $region42: #{pointnet2_backbone_forward.11} parent=39 // pred_check_branch
        %568 = sbr.rel (%p566) target = $region44
      $region43: #{pointnet2_backbone_forward.11} parent=39 // pred_region
        %s569 = smul.u32 8, %s16
      $region44: #{pointnet2_backbone_forward.11} parent=39 // pred_fallthru
        _
    $region40: #{pointnet2_backbone_forward.11} parent=5 // pred_fallthru
      _
    %p570 = scmp.le.s32.totalorder 2, %s11
    // Predicated region
    $region45: #{pointnet2_backbone_forward.11} parent=5 // pred_check
      %p571 = pneg %p570
    $region46: #{pointnet2_backbone_forward.11} parent=5 // pred_check_branch
      %573 = sbr.rel (%p571) target = $region48
    $region47: #{pointnet2_backbone_forward.11} parent=5 // pred_region
      %s574 = ssub.s32 %s11, 2
      // Predicated region
      $region49: #{pointnet2_backbone_forward.11} parent=47 // pred_check
        %p575 = pneg %p150
      $region50: #{pointnet2_backbone_forward.11} parent=47 // pred_check_branch
        %577 = sbr.rel (%p575) target = $region52
      $region51: #{pointnet2_backbone_forward.11} parent=47 // pred_region
        %s578 = smul.u32 8, %s17
        %p579 = scmp.lt.s32.totalorder %s578, 15
        %s580 = scalar_select %p579, %s578, 15
        %s581 = smul.addr %s580, 8
        %s582 = scalar_lea.vmem %s5, %s581
      $region52: #{pointnet2_backbone_forward.11} parent=47 // pred_fallthru
        _
    $region48: #{pointnet2_backbone_forward.11} parent=5 // pred_fallthru
      _
  $region6: #{pointnet2_backbone_forward.11} parent=0 // loop_footer
    %s15 = sadd.s32 1, %s11
  $region7: #{pointnet2_backbone_forward.11} parent=0 // loop_footer_branch
    %10 = sbr.rel target = $region3
  $region8: #{pointnet2_backbone_forward.11} parent=0 // loop_exit
    _

</llo_original>
